<compile_context>
chip_gen: v5e
topology: v5e:2x2
jax: 0.10.0
libtpu: 0.0.40
codegen_flags: <defaults>
</compile_context>

<pallas_src>
import math
from functools import partial

import jax
import jax.numpy as jnp
from jax.experimental import pallas as pl
from jax.experimental.pallas import tpu as pltpu

LN_EPS = 1e-5                      # torch.nn.LayerNorm default
VMEM_LIMIT = 48 * 1024 * 1024      # headroom on v7x (64 MiB physical per TC)


def _ln_normalize(x):
    """(x - mean) * rsqrt(var + eps) in f32; affine applied by the caller."""
    x = x.astype(jnp.float32)
    mu = jnp.mean(x, axis=-1, keepdims=True)
    var = jnp.mean((x - mu) ** 2, axis=-1, keepdims=True)
    return (x - mu) * jax.lax.rsqrt(var + LN_EPS)


# ---------------------------------------------------------------------------
# Fused kernel: K/V projection (cached per batch) + q_proj + masked SDPA + o_proj
# ---------------------------------------------------------------------------
def _cross_attn_kernel(*refs, num_heads, head_dim, has_mask):
    if has_mask:
        (q_ref, vl_ref, mask_ref,
         qg_ref, qb_ref, kg_ref, kb_ref, vg_ref, vb_ref,
         wq_ref, wk_ref, wv_ref, wo_ref,
         out_ref, k_sc, v_sc, o_sc) = refs
    else:
        (q_ref, vl_ref,
         qg_ref, qb_ref, kg_ref, kb_ref, vg_ref, vb_ref,
         wq_ref, wk_ref, wv_ref, wo_ref,
         out_ref, k_sc, v_sc, o_sc) = refs
        mask_ref = None

    # --- K/V projection once per batch element (Q-tile axis is "arbitrary") --
    @pl.when(pl.program_id(1) == 0)
    def _():
        xn = _ln_normalize(vl_ref[0])                           # (V, kv_dim) f32, stats once
        ln_k = (xn * kg_ref[...] + kb_ref[...]).astype(jnp.bfloat16)
        ln_v = (xn * vg_ref[...] + vb_ref[...]).astype(jnp.bfloat16)
        # one wide matmul per projection (fills the 256-wide MXU on v6e/v7x)
        k_sc[...] = jnp.dot(ln_k, wk_ref[...],
                            preferred_element_type=jnp.float32).astype(jnp.bfloat16)
        v_sc[...] = jnp.dot(ln_v, wv_ref[...],
                            preferred_element_type=jnp.float32).astype(jnp.bfloat16)

    # --- q_proj: LN stats once + one wide matmul; 1/sqrt(hd) folded into qn ---
    scale = 1.0 / math.sqrt(head_dim)
    qn = ((_ln_normalize(q_ref[0]) * qg_ref[...] + qb_ref[...]) * scale
          ).astype(jnp.bfloat16)                                # (tq, q_dim)
    qh_all = jnp.dot(qn, wq_ref[...],
                     preferred_element_type=jnp.float32).astype(jnp.bfloat16)  # (tq, hidden)

    if has_mask:
        mask = mask_ref[0].astype(jnp.float32)                  # (tq, V) additive

    hd = head_dim
    for h in range(num_heads):                                  # static unroll over heads
        lo = h * hd                                             # 128-aligned lane offset
        qh = qh_all[:, lo:lo + hd]                              # (tq, hd) bf16
        kh = k_sc[:, lo:lo + hd]                                # (V, hd)  bf16
        s = jax.lax.dot_general(qh, kh, (((1,), (1,)), ((), ())),
                                preferred_element_type=jnp.float32)   # (tq, V)
        if has_mask:
            s = s + mask
        s = s - jnp.max(s, axis=-1, keepdims=True)
        p = jnp.exp(s)                                          # f32 softmax math
        p = p * pl.reciprocal(jnp.sum(p, axis=-1, keepdims=True), approx=True)
        oh = jnp.dot(p.astype(jnp.bfloat16), v_sc[:, lo:lo + hd],
                     preferred_element_type=jnp.float32)        # (tq, hd)
        o_sc[:, lo:lo + hd] = oh.astype(jnp.bfloat16)           # lane-aligned store

    # --- o_proj: single K=hidden matmul against lane-dense head buffer --------
    out_ref[0] = jnp.dot(o_sc[...], wo_ref[...],
                         preferred_element_type=jnp.float32).astype(out_ref.dtype)


def _pick_q_block(q_len):
    for tq in (256, 128):
        if q_len % tq == 0:
            return tq
    return q_len


def cross_attention(params, vision_latents, queries, attention_mask=None):
    """Mirrors CrossAttention.forward(vision_latents, queries, attention_mask)."""
    B, Q, q_dim = queries.shape
    _, V, kv_dim = vision_latents.shape
    H = params["num_heads"]
    hidden = params["wq"].shape[1]
    hd = hidden // H

    # Lane-dense output: pad o_proj columns to a multiple of 128, slice after.
    q_pad = ((q_dim + 127) // 128) * 128
    wo = params["wo"]
    if q_pad != q_dim:
        wo = jnp.pad(wo, ((0, 0), (0, q_pad - q_dim)))

    has_mask = attention_mask is not None
    tq = _pick_q_block(Q)
    grid = (B, Q // tq)

    operands = [queries, vision_latents]
    if has_mask:
        mask = attention_mask
        if mask.dtype == jnp.bool_:
            mask = jnp.where(mask, 0.0, -1e9)   # torch bool mask: True = keep
        # torch-SDPA additive mask broadcastable to (B, 1, Q, V); bf16 halves traffic
        mask = jnp.broadcast_to(mask.astype(jnp.bfloat16), (B, 1, Q, V)).reshape(B, Q, V)
        operands.append(mask)
    operands += [
        params["q_g"], params["q_b"],
        params["k_g"], params["k_b"],
        params["v_g"], params["v_b"],
        params["wq"], params["wk"], params["wv"], wo,
    ]

    kernel = partial(_cross_attn_kernel, num_heads=H, head_dim=hd, has_mask=has_mask)

    def run(single_buffer_weights):
        def const_spec(shape):
            idx = lambda b, qi: (0,) * len(shape)
            if single_buffer_weights:
                # grid-invariant operand -> single buffer (halves its VMEM footprint)
                return pl.BlockSpec(shape, idx, pipeline_mode=pl.Buffered(1))
            return pl.BlockSpec(shape, idx)

        in_specs = [
            pl.BlockSpec((1, tq, q_dim), lambda b, qi: (b, qi, 0)),
            pl.BlockSpec((1, V, kv_dim), lambda b, qi: (b, 0, 0)),
        ]
        if has_mask:
            in_specs.append(pl.BlockSpec((1, tq, V), lambda b, qi: (b, qi, 0)))
        in_specs += [
            const_spec((1, q_dim)), const_spec((1, q_dim)),
            const_spec((1, kv_dim)), const_spec((1, kv_dim)),
            const_spec((1, kv_dim)), const_spec((1, kv_dim)),
            const_spec((q_dim, hidden)),
            const_spec((kv_dim, hidden)),
            const_spec((kv_dim, hidden)),
            const_spec((hidden, q_pad)),
        ]
        return pl.pallas_call(
            kernel,
            out_shape=jax.ShapeDtypeStruct((B, Q, q_pad), queries.dtype),
            grid=grid,
            in_specs=in_specs,
            out_specs=pl.BlockSpec((1, tq, q_pad), lambda b, qi: (b, qi, 0)),
            scratch_shapes=[
                pltpu.VMEM((V, hidden), jnp.bfloat16),    # cached K (all heads)
                pltpu.VMEM((V, hidden), jnp.bfloat16),    # cached V (all heads)
                pltpu.VMEM((tq, hidden), jnp.bfloat16),   # per-head context buffer
            ],
            compiler_params=pltpu.CompilerParams(
                dimension_semantics=("parallel", "arbitrary"),
                vmem_limit_bytes=VMEM_LIMIT),
        )(*operands)

    try:
        out = run(single_buffer_weights=True)
    except Exception:
        # Fallback if this jax build does not support pipeline_mode=Buffered(1).
        out = run(single_buffer_weights=False)
    return out[..., :q_dim] if q_pad != q_dim else out


# ---------------------------------------------------------------------------
# Deterministic parameter init, already in kernel layout:
#   LN params as (1, D) f32; Linear weights (in_features, out_features) bf16.
#   (Equivalent to transposing the PyTorch (out, in) weights once.)
# ---------------------------------------------------------------------------
def init_params(key, q_dim, kv_dim, hidden, num_heads):
    keys = iter(jax.random.split(key, 16))

    def w(shape, fan_in):
        return (jax.random.normal(next(keys), shape, jnp.float32)
                * (0.5 / math.sqrt(fan_in))).astype(jnp.bfloat16)

    def lnp(d, is_gamma):
        base = 1.0 if is_gamma else 0.0
        return base + 0.1 * jax.random.normal(next(keys), (1, d), jnp.float32)

    return {
        "num_heads": num_heads,
        "q_g": lnp(q_dim, True), "q_b": lnp(q_dim, False),
        "k_g": lnp(kv_dim, True), "k_b": lnp(kv_dim, False),
        "v_g": lnp(kv_dim, True), "v_b": lnp(kv_dim, False),
        "wq": w((q_dim, hidden), q_dim),      # q_proj Linear (no bias)
        "wk": w((kv_dim, hidden), kv_dim),    # k_proj Linear
        "wv": w((kv_dim, hidden), kv_dim),    # v_proj Linear
        "wo": w((hidden, q_dim), hidden),     # o_proj Linear
    }


# ---------------------------------------------------------------------------
# Pure-JAX f32 reference mirroring the PyTorch forward (weights upcast to f32)
# ---------------------------------------------------------------------------
def reference_forward(params, vision_latents, queries, attention_mask):
    H = params["num_heads"]

    def ln(x, g, b):
        mu = x.mean(-1, keepdims=True)
        var = ((x - mu) ** 2).mean(-1, keepdims=True)
        return (x - mu) / jnp.sqrt(var + LN_EPS) * g + b

    wq = params["wq"].astype(jnp.float32)
    wk = params["wk"].astype(jnp.float32)
    wv = params["wv"].astype(jnp.float32)
    wo = params["wo"].astype(jnp.float32)
    hidden = wq.shape[1]
    hd = hidden // H
    B, Q, _ = queries.shape
    V = vision_latents.shape[1]

    q = (ln(queries, params["q_g"], params["q_b"]) @ wq
         ).reshape(B, Q, H, hd).transpose(0, 2, 1, 3)
    k = (ln(vision_latents, params["k_g"], params["k_b"]) @ wk
         ).reshape(B, V, H, hd).transpose(0, 2, 1, 3)
    v = (ln(vision_latents, params["v_g"], params["v_b"]) @ wv
         ).reshape(B, V, H, hd).transpose(0, 2, 1, 3)
    s = jnp.einsum("bhqd,bhvd->bhqv", q, k) / math.sqrt(hd)
    if attention_mask is not None:
        s = s + attention_mask                          # (B,1,Q,V) broadcasts over heads
    p = jax.nn.softmax(s, axis=-1)
    o = jnp.einsum("bhqv,bhvd->bhqd", p, v)
    o = o.transpose(0, 2, 1, 3).reshape(B, Q, hidden)
    return o @ wo


if __name__ == "__main__":
    B, Q, V = 2, 8, 16
    q_dim, kv_dim = 64, 80
    num_heads, hidden = 4, 512                          # head_dim = 128 (lane-aligned)

    key = jax.random.PRNGKey(0)
    k_p, k_q, k_v = jax.random.split(key, 3)
    params = init_params(k_p, q_dim, kv_dim, hidden, num_heads)

    queries = jax.random.normal(k_q, (B, Q, q_dim), jnp.float32)
    vision_latents = jax.random.normal(k_v, (B, V, kv_dim), jnp.float32)

    # additive float attn_mask of shape (B, 1, Q, V): 0 keep / -1e9 masked
    attn_mask = jnp.zeros((B, 1, Q, V), jnp.float32).at[1, :, :, -3:].set(-1e9)

    out = jax.block_until_ready(
        cross_attention(params, vision_latents, queries, attn_mask))
    ref = reference_forward(params, vision_latents, queries, attn_mask)
    assert out.shape == (B, Q, q_dim)
    err = float(jnp.max(jnp.abs(out - ref)))
    assert jnp.allclose(out, ref, atol=1e-2, rtol=1e-2), f"masked: max abs err {err}"

    # no-mask fast path (separate compile; mask operand and add are elided)
    out_nm = jax.block_until_ready(
        cross_attention(params, vision_latents, queries, None))
    ref_nm = reference_forward(params, vision_latents, queries, None)
    err_nm = float(jnp.max(jnp.abs(out_nm - ref_nm)))
    assert jnp.allclose(out_nm, ref_nm, atol=1e-2, rtol=1e-2), f"nomask: max abs err {err_nm}"

    print("KERNEL_OK")
</pallas_src>

<mosaic_0001>
module attributes {stable_mosaic.version = 11 : i64} {
  func.func @_cross_attn_kernel(%arg0: i32, %arg1: i32, %arg2: memref<1x8x64xf32, #tpu.memory_space<vmem>>, %arg3: memref<1x16x80xf32, #tpu.memory_space<vmem>>, %arg4: memref<1x8x16xbf16, #tpu.memory_space<vmem>>, %arg5: memref<1x64xf32, #tpu.memory_space<vmem>>, %arg6: memref<1x64xf32, #tpu.memory_space<vmem>>, %arg7: memref<1x80xf32, #tpu.memory_space<vmem>>, %arg8: memref<1x80xf32, #tpu.memory_space<vmem>>, %arg9: memref<1x80xf32, #tpu.memory_space<vmem>>, %arg10: memref<1x80xf32, #tpu.memory_space<vmem>>, %arg11: memref<64x512xbf16, #tpu.memory_space<vmem>>, %arg12: memref<80x512xbf16, #tpu.memory_space<vmem>>, %arg13: memref<80x512xbf16, #tpu.memory_space<vmem>>, %arg14: memref<512x128xbf16, #tpu.memory_space<vmem>>, %arg15: memref<1x8x128xf32, #tpu.memory_space<vmem>>, %arg16: memref<16x512xbf16, #tpu.memory_space<vmem>>, %arg17: memref<16x512xbf16, #tpu.memory_space<vmem>>, %arg18: memref<8x512xbf16, #tpu.memory_space<vmem>>) attributes {dimension_semantics = [#tpu.dimension_semantics<parallel>, #tpu.dimension_semantics<arbitrary>], iteration_bounds = array<i64: 2, 1>, scalar_prefetch = 0 : i64, scratch_operands = 3 : i64, tpu.core_type = #tpu.core_type<tc>, window_params = [{transform_indices = @transform_0, window_bounds = array<i64: 1, 8, 64>}, {transform_indices = @transform_1, window_bounds = array<i64: 1, 16, 80>}, {transform_indices = @transform_2, window_bounds = array<i64: 1, 8, 16>}, {pipeline_mode = #tpu.pipeline_mode<synchronous>, transform_indices = @transform_3, window_bounds = array<i64: 1, 64>}, {pipeline_mode = #tpu.pipeline_mode<synchronous>, transform_indices = @transform_4, window_bounds = array<i64: 1, 64>}, {pipeline_mode = #tpu.pipeline_mode<synchronous>, transform_indices = @transform_5, window_bounds = array<i64: 1, 80>}, {pipeline_mode = #tpu.pipeline_mode<synchronous>, transform_indices = @transform_6, window_bounds = array<i64: 1, 80>}, {pipeline_mode = #tpu.pipeline_mode<synchronous>, transform_indices = @transform_7, window_bounds = array<i64: 1, 80>}, {pipeline_mode = #tpu.pipeline_mode<synchronous>, transform_indices = @transform_8, window_bounds = array<i64: 1, 80>}, {pipeline_mode = #tpu.pipeline_mode<synchronous>, transform_indices = @transform_9, window_bounds = array<i64: 64, 512>}, {pipeline_mode = #tpu.pipeline_mode<synchronous>, transform_indices = @transform_10, window_bounds = array<i64: 80, 512>}, {pipeline_mode = #tpu.pipeline_mode<synchronous>, transform_indices = @transform_11, window_bounds = array<i64: 80, 512>}, {pipeline_mode = #tpu.pipeline_mode<synchronous>, transform_indices = @transform_12, window_bounds = array<i64: 512, 128>}, {transform_indices = @transform_13, window_bounds = array<i64: 1, 8, 128>}]} {
    %c0_i32 = arith.constant 0 : i32
    %0 = arith.cmpi eq, %arg1, %c0_i32 : i32
    %1 = arith.extui %0 : i1 to i32
    %c0_i32_0 = arith.constant 0 : i32
    %2 = arith.cmpi ne, %1, %c0_i32_0 : i32
    scf.if %2 {
      %c0_63 = arith.constant 0 : index
      %c0_64 = arith.constant 0 : index
      %c0_65 = arith.constant 0 : index
      %120 = vector.load %arg3[%c0_63, %c0_64, %c0_65] : memref<1x16x80xf32, #tpu.memory_space<vmem>>, vector<1x16x80xf32>
      %121 = vector.shape_cast %120 : vector<1x16x80xf32> to vector<16x80xf32>
      %cst_66 = arith.constant dense<0.000000e+00> : vector<16xf32>
      %122 = vector.multi_reduction <add>, %121, %cst_66 [1] : vector<16x80xf32> to vector<16xf32>
      %123 = vector.shape_cast %122 : vector<16xf32> to vector<16x1xf32>
      %cst_67 = arith.constant 8.000000e+01 : f32
      %124 = vector.broadcast %cst_67 : f32 to vector<16x1xf32>
      %125 = arith.divf %123, %124 : vector<16x1xf32>
      %126 = vector.broadcast %125 : vector<16x1xf32> to vector<16x80xf32>
      %127 = arith.subf %121, %126 : vector<16x80xf32>
      %128 = arith.mulf %127, %127 : vector<16x80xf32>
      %cst_68 = arith.constant dense<0.000000e+00> : vector<16xf32>
      %129 = vector.multi_reduction <add>, %128, %cst_68 [1] : vector<16x80xf32> to vector<16xf32>
      %130 = vector.shape_cast %129 : vector<16xf32> to vector<16x1xf32>
      %cst_69 = arith.constant 8.000000e+01 : f32
      %131 = vector.broadcast %cst_69 : f32 to vector<16x1xf32>
      %132 = arith.divf %130, %131 : vector<16x1xf32>
      %133 = vector.broadcast %125 : vector<16x1xf32> to vector<16x80xf32>
      %134 = arith.subf %121, %133 : vector<16x80xf32>
      %cst_70 = arith.constant 9.99999974E-6 : f32
      %135 = vector.broadcast %cst_70 : f32 to vector<16x1xf32>
      %136 = arith.addf %132, %135 : vector<16x1xf32>
      %137 = math.rsqrt %136 : vector<16x1xf32>
      %138 = vector.broadcast %137 : vector<16x1xf32> to vector<16x80xf32>
      %139 = arith.mulf %134, %138 : vector<16x80xf32>
      %c0_71 = arith.constant 0 : index
      %c0_72 = arith.constant 0 : index
      %140 = vector.load %arg7[%c0_71, %c0_72] : memref<1x80xf32, #tpu.memory_space<vmem>>, vector<1x80xf32>
      %141 = vector.broadcast %140 : vector<1x80xf32> to vector<16x80xf32>
      %142 = arith.mulf %139, %141 : vector<16x80xf32>
      %c0_73 = arith.constant 0 : index
      %c0_74 = arith.constant 0 : index
      %143 = vector.load %arg8[%c0_73, %c0_74] : memref<1x80xf32, #tpu.memory_space<vmem>>, vector<1x80xf32>
      %144 = vector.broadcast %143 : vector<1x80xf32> to vector<16x80xf32>
      %145 = arith.addf %142, %144 : vector<16x80xf32>
      %146 = arith.truncf %145 : vector<16x80xf32> to vector<16x80xbf16>
      %c0_75 = arith.constant 0 : index
      %c0_76 = arith.constant 0 : index
      %147 = vector.load %arg9[%c0_75, %c0_76] : memref<1x80xf32, #tpu.memory_space<vmem>>, vector<1x80xf32>
      %148 = vector.broadcast %147 : vector<1x80xf32> to vector<16x80xf32>
      %149 = arith.mulf %139, %148 : vector<16x80xf32>
      %c0_77 = arith.constant 0 : index
      %c0_78 = arith.constant 0 : index
      %150 = vector.load %arg10[%c0_77, %c0_78] : memref<1x80xf32, #tpu.memory_space<vmem>>, vector<1x80xf32>
      %151 = vector.broadcast %150 : vector<1x80xf32> to vector<16x80xf32>
      %152 = arith.addf %149, %151 : vector<16x80xf32>
      %153 = arith.truncf %152 : vector<16x80xf32> to vector<16x80xbf16>
      %c0_79 = arith.constant 0 : index
      %c0_80 = arith.constant 0 : index
      %154 = vector.load %arg12[%c0_79, %c0_80] : memref<80x512xbf16, #tpu.memory_space<vmem>>, vector<80x512xbf16>
      %cst_81 = arith.constant dense<0.000000e+00> : vector<16x512xf32>
      %155 = tpu.matmul %146, %154, %cst_81 {dimension_numbers = #tpu.dot_dimension_numbers<[1], [0], [0], [1], [0, 0, 1, 1], [], []>} : vector<16x80xbf16>, vector<80x512xbf16>, vector<16x512xf32> -> vector<16x512xf32>
      %156 = arith.truncf %155 : vector<16x512xf32> to vector<16x512xbf16>
      %c0_82 = arith.constant 0 : index
      %c0_83 = arith.constant 0 : index
      %157 = vector.load %arg16[%c0_82, %c0_83] : memref<16x512xbf16, #tpu.memory_space<vmem>>, vector<16x512xbf16>
      tpu.vector_store %arg16[%c0_82, %c0_83], %156 {strides = array<i32>} : memref<16x512xbf16, #tpu.memory_space<vmem>>, vector<16x512xbf16>,
      %c0_84 = arith.constant 0 : index
      %c0_85 = arith.constant 0 : index
      %158 = vector.load %arg13[%c0_84, %c0_85] : memref<80x512xbf16, #tpu.memory_space<vmem>>, vector<80x512xbf16>
      %cst_86 = arith.constant dense<0.000000e+00> : vector<16x512xf32>
      %159 = tpu.matmul %153, %158, %cst_86 {dimension_numbers = #tpu.dot_dimension_numbers<[1], [0], [0], [1], [0, 0, 1, 1], [], []>} : vector<16x80xbf16>, vector<80x512xbf16>, vector<16x512xf32> -> vector<16x512xf32>
      %160 = arith.truncf %159 : vector<16x512xf32> to vector<16x512xbf16>
      %c0_87 = arith.constant 0 : index
      %c0_88 = arith.constant 0 : index
      %161 = vector.load %arg17[%c0_87, %c0_88] : memref<16x512xbf16, #tpu.memory_space<vmem>>, vector<16x512xbf16>
      tpu.vector_store %arg17[%c0_87, %c0_88], %160 {strides = array<i32>} : memref<16x512xbf16, #tpu.memory_space<vmem>>, vector<16x512xbf16>,
    } else {
    }
    %c0 = arith.constant 0 : index
    %c0_1 = arith.constant 0 : index
    %c0_2 = arith.constant 0 : index
    %3 = vector.load %arg2[%c0, %c0_1, %c0_2] : memref<1x8x64xf32, #tpu.memory_space<vmem>>, vector<1x8x64xf32>
    %4 = vector.shape_cast %3 : vector<1x8x64xf32> to vector<8x64xf32>
    %cst = arith.constant dense<0.000000e+00> : vector<8xf32>
    %5 = vector.multi_reduction <add>, %4, %cst [1] : vector<8x64xf32> to vector<8xf32>
    %6 = vector.shape_cast %5 : vector<8xf32> to vector<8x1xf32>
    %cst_3 = arith.constant 6.400000e+01 : f32
    %7 = vector.broadcast %cst_3 : f32 to vector<8x1xf32>
    %8 = arith.divf %6, %7 : vector<8x1xf32>
    %9 = vector.broadcast %8 : vector<8x1xf32> to vector<8x64xf32>
    %10 = arith.subf %4, %9 : vector<8x64xf32>
    %11 = arith.mulf %10, %10 : vector<8x64xf32>
    %cst_4 = arith.constant dense<0.000000e+00> : vector<8xf32>
    %12 = vector.multi_reduction <add>, %11, %cst_4 [1] : vector<8x64xf32> to vector<8xf32>
    %13 = vector.shape_cast %12 : vector<8xf32> to vector<8x1xf32>
    %cst_5 = arith.constant 6.400000e+01 : f32
    %14 = vector.broadcast %cst_5 : f32 to vector<8x1xf32>
    %15 = arith.divf %13, %14 : vector<8x1xf32>
    %16 = vector.broadcast %8 : vector<8x1xf32> to vector<8x64xf32>
    %17 = arith.subf %4, %16 : vector<8x64xf32>
    %cst_6 = arith.constant 9.99999974E-6 : f32
    %18 = vector.broadcast %cst_6 : f32 to vector<8x1xf32>
    %19 = arith.addf %15, %18 : vector<8x1xf32>
    %20 = math.rsqrt %19 : vector<8x1xf32>
    %21 = vector.broadcast %20 : vector<8x1xf32> to vector<8x64xf32>
    %22 = arith.mulf %17, %21 : vector<8x64xf32>
    %c0_7 = arith.constant 0 : index
    %c0_8 = arith.constant 0 : index
    %23 = vector.load %arg5[%c0_7, %c0_8] : memref<1x64xf32, #tpu.memory_space<vmem>>, vector<1x64xf32>
    %24 = vector.broadcast %23 : vector<1x64xf32> to vector<8x64xf32>
    %25 = arith.mulf %22, %24 : vector<8x64xf32>
    %c0_9 = arith.constant 0 : index
    %c0_10 = arith.constant 0 : index
    %26 = vector.load %arg6[%c0_9, %c0_10] : memref<1x64xf32, #tpu.memory_space<vmem>>, vector<1x64xf32>
    %27 = vector.broadcast %26 : vector<1x64xf32> to vector<8x64xf32>
    %28 = arith.addf %25, %27 : vector<8x64xf32>
    %cst_11 = arith.constant 0.0883883461 : f32
    %29 = vector.broadcast %cst_11 : f32 to vector<8x64xf32>
    %30 = arith.mulf %28, %29 : vector<8x64xf32>
    %31 = arith.truncf %30 : vector<8x64xf32> to vector<8x64xbf16>
    %c0_12 = arith.constant 0 : index
    %c0_13 = arith.constant 0 : index
    %32 = vector.load %arg11[%c0_12, %c0_13] : memref<64x512xbf16, #tpu.memory_space<vmem>>, vector<64x512xbf16>
    %cst_14 = arith.constant dense<0.000000e+00> : vector<8x512xf32>
    %33 = tpu.matmul %31, %32, %cst_14 {dimension_numbers = #tpu.dot_dimension_numbers<[1], [0], [0], [1], [0, 0, 1, 1], [], []>} : vector<8x64xbf16>, vector<64x512xbf16>, vector<8x512xf32> -> vector<8x512xf32>
    %34 = arith.truncf %33 : vector<8x512xf32> to vector<8x512xbf16>
    %c0_15 = arith.constant 0 : index
    %c0_16 = arith.constant 0 : index
    %c0_17 = arith.constant 0 : index
    %35 = vector.load %arg4[%c0_15, %c0_16, %c0_17] : memref<1x8x16xbf16, #tpu.memory_space<vmem>>, vector<1x8x16xbf16>
    %36 = vector.shape_cast %35 : vector<1x8x16xbf16> to vector<8x16xbf16>
    %37 = arith.extf %36 : vector<8x16xbf16> to vector<8x16xf32>
    %38 = vector.extract_strided_slice %34 {offsets = [0, 0], sizes = [8, 128], strides = [1, 1]} : vector<8x512xbf16> to vector<8x128xbf16>
    %c0_18 = arith.constant 0 : index
    %c0_19 = arith.constant 0 : index
    %39 = vector.load %arg16[%c0_18, %c0_19] : memref<16x512xbf16, #tpu.memory_space<vmem>>, vector<16x128xbf16>
    %cst_20 = arith.constant dense<0.000000e+00> : vector<8x16xf32>
    %40 = tpu.matmul %38, %39, %cst_20 {dimension_numbers = #tpu.dot_dimension_numbers<[1], [1], [0], [0], [0, 0, 1, 0], [], []>} : vector<8x128xbf16>, vector<16x128xbf16>, vector<8x16xf32> -> vector<8x16xf32>
    %41 = arith.addf %40, %37 : vector<8x16xf32>
    %cst_21 = arith.constant dense<0xFF800000> : vector<8xf32>
    %42 = vector.multi_reduction <maximumf>, %41, %cst_21 [1] : vector<8x16xf32> to vector<8xf32>
    %43 = vector.shape_cast %42 : vector<8xf32> to vector<8x1xf32>
    %44 = vector.broadcast %43 : vector<8x1xf32> to vector<8x16xf32>
    %45 = arith.subf %41, %44 : vector<8x16xf32>
    %46 = math.exp %45 : vector<8x16xf32>
    %cst_22 = arith.constant dense<0.000000e+00> : vector<8xf32>
    %47 = vector.multi_reduction <add>, %46, %cst_22 [1] : vector<8x16xf32> to vector<8xf32>
    %48 = vector.shape_cast %47 : vector<8xf32> to vector<8x1xf32>
    %49 = tpu.reciprocal %48 {approx = true} : vector<8x1xf32> -> vector<8x1xf32>
    %50 = vector.broadcast %49 : vector<8x1xf32> to vector<8x16xf32>
    %51 = arith.mulf %46, %50 : vector<8x16xf32>
    %52 = arith.truncf %51 : vector<8x16xf32> to vector<8x16xbf16>
    %c0_23 = arith.constant 0 : index
    %c0_24 = arith.constant 0 : index
    %53 = vector.load %arg17[%c0_23, %c0_24] : memref<16x512xbf16, #tpu.memory_space<vmem>>, vector<16x128xbf16>
    %cst_25 = arith.constant dense<0.000000e+00> : vector<8x128xf32>
    %54 = tpu.matmul %52, %53, %cst_25 {dimension_numbers = #tpu.dot_dimension_numbers<[1], [0], [0], [1], [0, 0, 1, 1], [], []>} : vector<8x16xbf16>, vector<16x128xbf16>, vector<8x128xf32> -> vector<8x128xf32>
    %55 = arith.truncf %54 : vector<8x128xf32> to vector<8x128xbf16>
    %c0_26 = arith.constant 0 : index
    %c0_27 = arith.constant 0 : index
    %56 = vector.load %arg18[%c0_26, %c0_27] : memref<8x512xbf16, #tpu.memory_space<vmem>>, vector<8x128xbf16>
    tpu.vector_store %arg18[%c0_26, %c0_27], %55 {strides = array<i32>} : memref<8x512xbf16, #tpu.memory_space<vmem>>, vector<8x128xbf16>,
    %57 = vector.extract_strided_slice %34 {offsets = [0, 128], sizes = [8, 128], strides = [1, 1]} : vector<8x512xbf16> to vector<8x128xbf16>
    %c0_28 = arith.constant 0 : index
    %c128 = arith.constant 128 : index
    %58 = vector.load %arg16[%c0_28, %c128] : memref<16x512xbf16, #tpu.memory_space<vmem>>, vector<16x128xbf16>
    %cst_29 = arith.constant dense<0.000000e+00> : vector<8x16xf32>
    %59 = tpu.matmul %57, %58, %cst_29 {dimension_numbers = #tpu.dot_dimension_numbers<[1], [1], [0], [0], [0, 0, 1, 0], [], []>} : vector<8x128xbf16>, vector<16x128xbf16>, vector<8x16xf32> -> vector<8x16xf32>
    %60 = arith.addf %59, %37 : vector<8x16xf32>
    %cst_30 = arith.constant dense<0xFF800000> : vector<8xf32>
    %61 = vector.multi_reduction <maximumf>, %60, %cst_30 [1] : vector<8x16xf32> to vector<8xf32>
    %62 = vector.shape_cast %61 : vector<8xf32> to vector<8x1xf32>
    %63 = vector.broadcast %62 : vector<8x1xf32> to vector<8x16xf32>
    %64 = arith.subf %60, %63 : vector<8x16xf32>
    %65 = math.exp %64 : vector<8x16xf32>
    %cst_31 = arith.constant dense<0.000000e+00> : vector<8xf32>
    %66 = vector.multi_reduction <add>, %65, %cst_31 [1] : vector<8x16xf32> to vector<8xf32>
    %67 = vector.shape_cast %66 : vector<8xf32> to vector<8x1xf32>
    %68 = tpu.reciprocal %67 {approx = true} : vector<8x1xf32> -> vector<8x1xf32>
    %69 = vector.broadcast %68 : vector<8x1xf32> to vector<8x16xf32>
    %70 = arith.mulf %65, %69 : vector<8x16xf32>
    %71 = arith.truncf %70 : vector<8x16xf32> to vector<8x16xbf16>
    %c0_32 = arith.constant 0 : index
    %c128_33 = arith.constant 128 : index
    %72 = vector.load %arg17[%c0_32, %c128_33] : memref<16x512xbf16, #tpu.memory_space<vmem>>, vector<16x128xbf16>
    %cst_34 = arith.constant dense<0.000000e+00> : vector<8x128xf32>
    %73 = tpu.matmul %71, %72, %cst_34 {dimension_numbers = #tpu.dot_dimension_numbers<[1], [0], [0], [1], [0, 0, 1, 1], [], []>} : vector<8x16xbf16>, vector<16x128xbf16>, vector<8x128xf32> -> vector<8x128xf32>
    %74 = arith.truncf %73 : vector<8x128xf32> to vector<8x128xbf16>
    %c0_35 = arith.constant 0 : index
    %c128_36 = arith.constant 128 : index
    %75 = vector.load %arg18[%c0_35, %c128_36] : memref<8x512xbf16, #tpu.memory_space<vmem>>, vector<8x128xbf16>
    tpu.vector_store %arg18[%c0_35, %c128_36], %74 {strides = array<i32>} : memref<8x512xbf16, #tpu.memory_space<vmem>>, vector<8x128xbf16>,
    %76 = vector.extract_strided_slice %34 {offsets = [0, 256], sizes = [8, 128], strides = [1, 1]} : vector<8x512xbf16> to vector<8x128xbf16>
    %c0_37 = arith.constant 0 : index
    %c256 = arith.constant 256 : index
    %77 = vector.load %arg16[%c0_37, %c256] : memref<16x512xbf16, #tpu.memory_space<vmem>>, vector<16x128xbf16>
    %cst_38 = arith.constant dense<0.000000e+00> : vector<8x16xf32>
    %78 = tpu.matmul %76, %77, %cst_38 {dimension_numbers = #tpu.dot_dimension_numbers<[1], [1], [0], [0], [0, 0, 1, 0], [], []>} : vector<8x128xbf16>, vector<16x128xbf16>, vector<8x16xf32> -> vector<8x16xf32>
    %79 = arith.addf %78, %37 : vector<8x16xf32>
    %cst_39 = arith.constant dense<0xFF800000> : vector<8xf32>
    %80 = vector.multi_reduction <maximumf>, %79, %cst_39 [1] : vector<8x16xf32> to vector<8xf32>
    %81 = vector.shape_cast %80 : vector<8xf32> to vector<8x1xf32>
    %82 = vector.broadcast %81 : vector<8x1xf32> to vector<8x16xf32>
    %83 = arith.subf %79, %82 : vector<8x16xf32>
    %84 = math.exp %83 : vector<8x16xf32>
    %cst_40 = arith.constant dense<0.000000e+00> : vector<8xf32>
    %85 = vector.multi_reduction <add>, %84, %cst_40 [1] : vector<8x16xf32> to vector<8xf32>
    %86 = vector.shape_cast %85 : vector<8xf32> to vector<8x1xf32>
    %87 = tpu.reciprocal %86 {approx = true} : vector<8x1xf32> -> vector<8x1xf32>
    %88 = vector.broadcast %87 : vector<8x1xf32> to vector<8x16xf32>
    %89 = arith.mulf %84, %88 : vector<8x16xf32>
    %90 = arith.truncf %89 : vector<8x16xf32> to vector<8x16xbf16>
    %c0_41 = arith.constant 0 : index
    %c256_42 = arith.constant 256 : index
    %91 = vector.load %arg17[%c0_41, %c256_42] : memref<16x512xbf16, #tpu.memory_space<vmem>>, vector<16x128xbf16>
    %cst_43 = arith.constant dense<0.000000e+00> : vector<8x128xf32>
    %92 = tpu.matmul %90, %91, %cst_43 {dimension_numbers = #tpu.dot_dimension_numbers<[1], [0], [0], [1], [0, 0, 1, 1], [], []>} : vector<8x16xbf16>, vector<16x128xbf16>, vector<8x128xf32> -> vector<8x128xf32>
    %93 = arith.truncf %92 : vector<8x128xf32> to vector<8x128xbf16>
    %c0_44 = arith.constant 0 : index
    %c256_45 = arith.constant 256 : index
    %94 = vector.load %arg18[%c0_44, %c256_45] : memref<8x512xbf16, #tpu.memory_space<vmem>>, vector<8x128xbf16>
    tpu.vector_store %arg18[%c0_44, %c256_45], %93 {strides = array<i32>} : memref<8x512xbf16, #tpu.memory_space<vmem>>, vector<8x128xbf16>,
    %95 = vector.extract_strided_slice %34 {offsets = [0, 384], sizes = [8, 128], strides = [1, 1]} : vector<8x512xbf16> to vector<8x128xbf16>
    %c0_46 = arith.constant 0 : index
    %c384 = arith.constant 384 : index
    %96 = vector.load %arg16[%c0_46, %c384] : memref<16x512xbf16, #tpu.memory_space<vmem>>, vector<16x128xbf16>
    %cst_47 = arith.constant dense<0.000000e+00> : vector<8x16xf32>
    %97 = tpu.matmul %95, %96, %cst_47 {dimension_numbers = #tpu.dot_dimension_numbers<[1], [1], [0], [0], [0, 0, 1, 0], [], []>} : vector<8x128xbf16>, vector<16x128xbf16>, vector<8x16xf32> -> vector<8x16xf32>
    %98 = arith.addf %97, %37 : vector<8x16xf32>
    %cst_48 = arith.constant dense<0xFF800000> : vector<8xf32>
    %99 = vector.multi_reduction <maximumf>, %98, %cst_48 [1] : vector<8x16xf32> to vector<8xf32>
    %100 = vector.shape_cast %99 : vector<8xf32> to vector<8x1xf32>
    %101 = vector.broadcast %100 : vector<8x1xf32> to vector<8x16xf32>
    %102 = arith.subf %98, %101 : vector<8x16xf32>
    %103 = math.exp %102 : vector<8x16xf32>
    %cst_49 = arith.constant dense<0.000000e+00> : vector<8xf32>
    %104 = vector.multi_reduction <add>, %103, %cst_49 [1] : vector<8x16xf32> to vector<8xf32>
    %105 = vector.shape_cast %104 : vector<8xf32> to vector<8x1xf32>
    %106 = tpu.reciprocal %105 {approx = true} : vector<8x1xf32> -> vector<8x1xf32>
    %107 = vector.broadcast %106 : vector<8x1xf32> to vector<8x16xf32>
    %108 = arith.mulf %103, %107 : vector<8x16xf32>
    %109 = arith.truncf %108 : vector<8x16xf32> to vector<8x16xbf16>
    %c0_50 = arith.constant 0 : index
    %c384_51 = arith.constant 384 : index
    %110 = vector.load %arg17[%c0_50, %c384_51] : memref<16x512xbf16, #tpu.memory_space<vmem>>, vector<16x128xbf16>
    %cst_52 = arith.constant dense<0.000000e+00> : vector<8x128xf32>
    %111 = tpu.matmul %109, %110, %cst_52 {dimension_numbers = #tpu.dot_dimension_numbers<[1], [0], [0], [1], [0, 0, 1, 1], [], []>} : vector<8x16xbf16>, vector<16x128xbf16>, vector<8x128xf32> -> vector<8x128xf32>
    %112 = arith.truncf %111 : vector<8x128xf32> to vector<8x128xbf16>
    %c0_53 = arith.constant 0 : index
    %c384_54 = arith.constant 384 : index
    %113 = vector.load %arg18[%c0_53, %c384_54] : memref<8x512xbf16, #tpu.memory_space<vmem>>, vector<8x128xbf16>
    tpu.vector_store %arg18[%c0_53, %c384_54], %112 {strides = array<i32>} : memref<8x512xbf16, #tpu.memory_space<vmem>>, vector<8x128xbf16>,
    %c0_55 = arith.constant 0 : index
    %c0_56 = arith.constant 0 : index
    %114 = vector.load %arg18[%c0_55, %c0_56] : memref<8x512xbf16, #tpu.memory_space<vmem>>, vector<8x512xbf16>
    %c0_57 = arith.constant 0 : index
    %c0_58 = arith.constant 0 : index
    %115 = vector.load %arg14[%c0_57, %c0_58] : memref<512x128xbf16, #tpu.memory_space<vmem>>, vector<512x128xbf16>
    %cst_59 = arith.constant dense<0.000000e+00> : vector<8x128xf32>
    %116 = tpu.matmul %114, %115, %cst_59 {dimension_numbers = #tpu.dot_dimension_numbers<[1], [0], [0], [1], [0, 0, 1, 1], [], []>} : vector<8x512xbf16>, vector<512x128xbf16>, vector<8x128xf32> -> vector<8x128xf32>
    %c0_60 = arith.constant 0 : index
    %c0_61 = arith.constant 0 : index
    %c0_62 = arith.constant 0 : index
    %117 = vector.load %arg15[%c0_60, %c0_61, %c0_62] : memref<1x8x128xf32, #tpu.memory_space<vmem>>, vector<1x8x128xf32>
    %118 = vector.shape_cast %117 : vector<1x8x128xf32> to vector<8x128xf32>
    %119 = vector.shape_cast %116 : vector<8x128xf32> to vector<1x8x128xf32>
    tpu.vector_store %arg15[%c0_60, %c0_61, %c0_62], %119 {strides = array<i32>} : memref<1x8x128xf32, #tpu.memory_space<vmem>>, vector<1x8x128xf32>,
    return
  }
  func.func @transform_0(%arg0: i32, %arg1: i32) -> (i32, i32, i32) {
    %c0_i32 = arith.constant 0 : i32
    %c0_i32_0 = arith.constant 0 : i32
    return %arg0, %arg1, %c0_i32 : i32, i32, i32
  }
  func.func @transform_1(%arg0: i32, %arg1: i32) -> (i32, i32, i32) {
    %c0_i32 = arith.constant 0 : i32
    %c0_i32_0 = arith.constant 0 : i32
    %c0_i32_1 = arith.constant 0 : i32
    return %arg0, %c0_i32, %c0_i32_0 : i32, i32, i32
  }
  func.func @transform_2(%arg0: i32, %arg1: i32) -> (i32, i32, i32) {
    %c0_i32 = arith.constant 0 : i32
    %c0_i32_0 = arith.constant 0 : i32
    return %arg0, %arg1, %c0_i32 : i32, i32, i32
  }
  func.func @transform_3(%arg0: i32, %arg1: i32) -> (i32, i32) {
    %c0_i32 = arith.constant 0 : i32
    %c0_i32_0 = arith.constant 0 : i32
    %c0_i32_1 = arith.constant 0 : i32
    return %c0_i32, %c0_i32_0 : i32, i32
  }
  func.func @transform_4(%arg0: i32, %arg1: i32) -> (i32, i32) {
    %c0_i32 = arith.constant 0 : i32
    %c0_i32_0 = arith.constant 0 : i32
    %c0_i32_1 = arith.constant 0 : i32
    return %c0_i32, %c0_i32_0 : i32, i32
  }
  func.func @transform_5(%arg0: i32, %arg1: i32) -> (i32, i32) {
    %c0_i32 = arith.constant 0 : i32
    %c0_i32_0 = arith.constant 0 : i32
    %c0_i32_1 = arith.constant 0 : i32
    return %c0_i32, %c0_i32_0 : i32, i32
  }
  func.func @transform_6(%arg0: i32, %arg1: i32) -> (i32, i32) {
    %c0_i32 = arith.constant 0 : i32
    %c0_i32_0 = arith.constant 0 : i32
    %c0_i32_1 = arith.constant 0 : i32
    return %c0_i32, %c0_i32_0 : i32, i32
  }
  func.func @transform_7(%arg0: i32, %arg1: i32) -> (i32, i32) {
    %c0_i32 = arith.constant 0 : i32
    %c0_i32_0 = arith.constant 0 : i32
    %c0_i32_1 = arith.constant 0 : i32
    return %c0_i32, %c0_i32_0 : i32, i32
  }
  func.func @transform_8(%arg0: i32, %arg1: i32) -> (i32, i32) {
    %c0_i32 = arith.constant 0 : i32
    %c0_i32_0 = arith.constant 0 : i32
    %c0_i32_1 = arith.constant 0 : i32
    return %c0_i32, %c0_i32_0 : i32, i32
  }
  func.func @transform_9(%arg0: i32, %arg1: i32) -> (i32, i32) {
    %c0_i32 = arith.constant 0 : i32
    %c0_i32_0 = arith.constant 0 : i32
    %c0_i32_1 = arith.constant 0 : i32
    return %c0_i32, %c0_i32_0 : i32, i32
  }
  func.func @transform_10(%arg0: i32, %arg1: i32) -> (i32, i32) {
    %c0_i32 = arith.constant 0 : i32
    %c0_i32_0 = arith.constant 0 : i32
    %c0_i32_1 = arith.constant 0 : i32
    return %c0_i32, %c0_i32_0 : i32, i32
  }
  func.func @transform_11(%arg0: i32, %arg1: i32) -> (i32, i32) {
    %c0_i32 = arith.constant 0 : i32
    %c0_i32_0 = arith.constant 0 : i32
    %c0_i32_1 = arith.constant 0 : i32
    return %c0_i32, %c0_i32_0 : i32, i32
  }
  func.func @transform_12(%arg0: i32, %arg1: i32) -> (i32, i32) {
    %c0_i32 = arith.constant 0 : i32
    %c0_i32_0 = arith.constant 0 : i32
    %c0_i32_1 = arith.constant 0 : i32
    return %c0_i32, %c0_i32_0 : i32, i32
  }
  func.func @transform_13(%arg0: i32, %arg1: i32) -> (i32, i32, i32) {
    %c0_i32 = arith.constant 0 : i32
    %c0_i32_0 = arith.constant 0 : i32
    return %arg0, %arg1, %c0_i32 : i32, i32, i32
  }
}

module attributes {stable_mosaic.version = 11 : i64} {
  func.func @_cross_attn_kernel(%arg0: i32, %arg1: i32, %arg2: memref<1x8x64xf32, #tpu.memory_space<vmem>>, %arg3: memref<1x16x80xf32, #tpu.memory_space<vmem>>, %arg4: memref<1x8x16xbf16, #tpu.memory_space<vmem>>, %arg5: memref<1x64xf32, #tpu.memory_space<vmem>>, %arg6: memref<1x64xf32, #tpu.memory_space<vmem>>, %arg7: memref<1x80xf32, #tpu.memory_space<vmem>>, %arg8: memref<1x80xf32, #tpu.memory_space<vmem>>, %arg9: memref<1x80xf32, #tpu.memory_space<vmem>>, %arg10: memref<1x80xf32, #tpu.memory_space<vmem>>, %arg11: memref<64x512xbf16, #tpu.memory_space<vmem>>, %arg12: memref<80x512xbf16, #tpu.memory_space<vmem>>, %arg13: memref<80x512xbf16, #tpu.memory_space<vmem>>, %arg14: memref<512x128xbf16, #tpu.memory_space<vmem>>, %arg15: memref<1x8x128xf32, #tpu.memory_space<vmem>>, %arg16: memref<16x512xbf16, #tpu.memory_space<vmem>>, %arg17: memref<16x512xbf16, #tpu.memory_space<vmem>>, %arg18: memref<8x512xbf16, #tpu.memory_space<vmem>>) attributes {dimension_semantics = [#tpu.dimension_semantics<parallel>, #tpu.dimension_semantics<arbitrary>], iteration_bounds = array<i64: 2, 1>, scalar_prefetch = 0 : i64, scratch_operands = 3 : i64, tpu.core_type = #tpu.core_type<tc>, window_params = [{transform_indices = @transform_0, window_bounds = array<i64: 1, 8, 64>}, {transform_indices = @transform_1, window_bounds = array<i64: 1, 16, 80>}, {transform_indices = @transform_2, window_bounds = array<i64: 1, 8, 16>}, {pipeline_mode = #tpu.pipeline_mode<synchronous>, transform_indices = @transform_3, window_bounds = array<i64: 1, 64>}, {pipeline_mode = #tpu.pipeline_mode<synchronous>, transform_indices = @transform_4, window_bounds = array<i64: 1, 64>}, {pipeline_mode = #tpu.pipeline_mode<synchronous>, transform_indices = @transform_5, window_bounds = array<i64: 1, 80>}, {pipeline_mode = #tpu.pipeline_mode<synchronous>, transform_indices = @transform_6, window_bounds = array<i64: 1, 80>}, {pipeline_mode = #tpu.pipeline_mode<synchronous>, transform_indices = @transform_7, window_bounds = array<i64: 1, 80>}, {pipeline_mode = #tpu.pipeline_mode<synchronous>, transform_indices = @transform_8, window_bounds = array<i64: 1, 80>}, {pipeline_mode = #tpu.pipeline_mode<synchronous>, transform_indices = @transform_9, window_bounds = array<i64: 64, 512>}, {pipeline_mode = #tpu.pipeline_mode<synchronous>, transform_indices = @transform_10, window_bounds = array<i64: 80, 512>}, {pipeline_mode = #tpu.pipeline_mode<synchronous>, transform_indices = @transform_11, window_bounds = array<i64: 80, 512>}, {pipeline_mode = #tpu.pipeline_mode<synchronous>, transform_indices = @transform_12, window_bounds = array<i64: 512, 128>}, {transform_indices = @transform_13, window_bounds = array<i64: 1, 8, 128>}]} {
    %c0_i32 = arith.constant 0 : i32
    %0 = arith.cmpi eq, %arg1, %c0_i32 : i32
    %1 = arith.extui %0 : i1 to i32
    %c0_i32_0 = arith.constant 0 : i32
    %2 = arith.cmpi ne, %1, %c0_i32_0 : i32
    scf.if %2 {
      %c0_63 = arith.constant 0 : index
      %c0_64 = arith.constant 0 : index
      %c0_65 = arith.constant 0 : index
      %120 = vector.load %arg3[%c0_63, %c0_64, %c0_65] : memref<1x16x80xf32, #tpu.memory_space<vmem>>, vector<1x16x80xf32>
      %121 = vector.shape_cast %120 : vector<1x16x80xf32> to vector<16x80xf32>
      %cst_66 = arith.constant dense<0.000000e+00> : vector<16xf32>
      %122 = vector.multi_reduction <add>, %121, %cst_66 [1] : vector<16x80xf32> to vector<16xf32>
      %123 = vector.shape_cast %122 : vector<16xf32> to vector<16x1xf32>
      %cst_67 = arith.constant 8.000000e+01 : f32
      %124 = vector.broadcast %cst_67 : f32 to vector<16x1xf32>
      %125 = arith.divf %123, %124 : vector<16x1xf32>
      %126 = vector.broadcast %125 : vector<16x1xf32> to vector<16x80xf32>
      %127 = arith.subf %121, %126 : vector<16x80xf32>
      %128 = arith.mulf %127, %127 : vector<16x80xf32>
      %cst_68 = arith.constant dense<0.000000e+00> : vector<16xf32>
      %129 = vector.multi_reduction <add>, %128, %cst_68 [1] : vector<16x80xf32> to vector<16xf32>
      %130 = vector.shape_cast %129 : vector<16xf32> to vector<16x1xf32>
      %cst_69 = arith.constant 8.000000e+01 : f32
      %131 = vector.broadcast %cst_69 : f32 to vector<16x1xf32>
      %132 = arith.divf %130, %131 : vector<16x1xf32>
      %133 = vector.broadcast %125 : vector<16x1xf32> to vector<16x80xf32>
      %134 = arith.subf %121, %133 : vector<16x80xf32>
      %cst_70 = arith.constant 9.99999974E-6 : f32
      %135 = vector.broadcast %cst_70 : f32 to vector<16x1xf32>
      %136 = arith.addf %132, %135 : vector<16x1xf32>
      %137 = math.rsqrt %136 : vector<16x1xf32>
      %138 = vector.broadcast %137 : vector<16x1xf32> to vector<16x80xf32>
      %139 = arith.mulf %134, %138 : vector<16x80xf32>
      %c0_71 = arith.constant 0 : index
      %c0_72 = arith.constant 0 : index
      %140 = vector.load %arg7[%c0_71, %c0_72] : memref<1x80xf32, #tpu.memory_space<vmem>>, vector<1x80xf32>
      %141 = vector.broadcast %140 : vector<1x80xf32> to vector<16x80xf32>
      %142 = arith.mulf %139, %141 : vector<16x80xf32>
      %c0_73 = arith.constant 0 : index
      %c0_74 = arith.constant 0 : index
      %143 = vector.load %arg8[%c0_73, %c0_74] : memref<1x80xf32, #tpu.memory_space<vmem>>, vector<1x80xf32>
      %144 = vector.broadcast %143 : vector<1x80xf32> to vector<16x80xf32>
      %145 = arith.addf %142, %144 : vector<16x80xf32>
      %146 = arith.truncf %145 : vector<16x80xf32> to vector<16x80xbf16>
      %c0_75 = arith.constant 0 : index
      %c0_76 = arith.constant 0 : index
      %147 = vector.load %arg9[%c0_75, %c0_76] : memref<1x80xf32, #tpu.memory_space<vmem>>, vector<1x80xf32>
      %148 = vector.broadcast %147 : vector<1x80xf32> to vector<16x80xf32>
      %149 = arith.mulf %139, %148 : vector<16x80xf32>
      %c0_77 = arith.constant 0 : index
      %c0_78 = arith.constant 0 : index
      %150 = vector.load %arg10[%c0_77, %c0_78] : memref<1x80xf32, #tpu.memory_space<vmem>>, vector<1x80xf32>
      %151 = vector.broadcast %150 : vector<1x80xf32> to vector<16x80xf32>
      %152 = arith.addf %149, %151 : vector<16x80xf32>
      %153 = arith.truncf %152 : vector<16x80xf32> to vector<16x80xbf16>
      %c0_79 = arith.constant 0 : index
      %c0_80 = arith.constant 0 : index
      %154 = vector.load %arg12[%c0_79, %c0_80] : memref<80x512xbf16, #tpu.memory_space<vmem>>, vector<80x512xbf16>
      %cst_81 = arith.constant dense<0.000000e+00> : vector<16x512xf32>
      %155 = tpu.matmul %146, %154, %cst_81 {dimension_numbers = #tpu.dot_dimension_numbers<[1], [0], [0], [1], [0, 0, 1, 1], [], []>} : vector<16x80xbf16>, vector<80x512xbf16>, vector<16x512xf32> -> vector<16x512xf32>
      %156 = arith.truncf %155 : vector<16x512xf32> to vector<16x512xbf16>
      %c0_82 = arith.constant 0 : index
      %c0_83 = arith.constant 0 : index
      %157 = vector.load %arg16[%c0_82, %c0_83] : memref<16x512xbf16, #tpu.memory_space<vmem>>, vector<16x512xbf16>
      tpu.vector_store %arg16[%c0_82, %c0_83], %156 {strides = array<i32>} : memref<16x512xbf16, #tpu.memory_space<vmem>>, vector<16x512xbf16>,
      %c0_84 = arith.constant 0 : index
      %c0_85 = arith.constant 0 : index
      %158 = vector.load %arg13[%c0_84, %c0_85] : memref<80x512xbf16, #tpu.memory_space<vmem>>, vector<80x512xbf16>
      %cst_86 = arith.constant dense<0.000000e+00> : vector<16x512xf32>
      %159 = tpu.matmul %153, %158, %cst_86 {dimension_numbers = #tpu.dot_dimension_numbers<[1], [0], [0], [1], [0, 0, 1, 1], [], []>} : vector<16x80xbf16>, vector<80x512xbf16>, vector<16x512xf32> -> vector<16x512xf32>
      %160 = arith.truncf %159 : vector<16x512xf32> to vector<16x512xbf16>
      %c0_87 = arith.constant 0 : index
      %c0_88 = arith.constant 0 : index
      %161 = vector.load %arg17[%c0_87, %c0_88] : memref<16x512xbf16, #tpu.memory_space<vmem>>, vector<16x512xbf16>
      tpu.vector_store %arg17[%c0_87, %c0_88], %160 {strides = array<i32>} : memref<16x512xbf16, #tpu.memory_space<vmem>>, vector<16x512xbf16>,
    } else {
    }
    %c0 = arith.constant 0 : index
    %c0_1 = arith.constant 0 : index
    %c0_2 = arith.constant 0 : index
    %3 = vector.load %arg2[%c0, %c0_1, %c0_2] : memref<1x8x64xf32, #tpu.memory_space<vmem>>, vector<1x8x64xf32>
    %4 = vector.shape_cast %3 : vector<1x8x64xf32> to vector<8x64xf32>
    %cst = arith.constant dense<0.000000e+00> : vector<8xf32>
    %5 = vector.multi_reduction <add>, %4, %cst [1] : vector<8x64xf32> to vector<8xf32>
    %6 = vector.shape_cast %5 : vector<8xf32> to vector<8x1xf32>
    %cst_3 = arith.constant 6.400000e+01 : f32
    %7 = vector.broadcast %cst_3 : f32 to vector<8x1xf32>
    %8 = arith.divf %6, %7 : vector<8x1xf32>
    %9 = vector.broadcast %8 : vector<8x1xf32> to vector<8x64xf32>
    %10 = arith.subf %4, %9 : vector<8x64xf32>
    %11 = arith.mulf %10, %10 : vector<8x64xf32>
    %cst_4 = arith.constant dense<0.000000e+00> : vector<8xf32>
    %12 = vector.multi_reduction <add>, %11, %cst_4 [1] : vector<8x64xf32> to vector<8xf32>
    %13 = vector.shape_cast %12 : vector<8xf32> to vector<8x1xf32>
    %cst_5 = arith.constant 6.400000e+01 : f32
    %14 = vector.broadcast %cst_5 : f32 to vector<8x1xf32>
    %15 = arith.divf %13, %14 : vector<8x1xf32>
    %16 = vector.broadcast %8 : vector<8x1xf32> to vector<8x64xf32>
    %17 = arith.subf %4, %16 : vector<8x64xf32>
    %cst_6 = arith.constant 9.99999974E-6 : f32
    %18 = vector.broadcast %cst_6 : f32 to vector<8x1xf32>
    %19 = arith.addf %15, %18 : vector<8x1xf32>
    %20 = math.rsqrt %19 : vector<8x1xf32>
    %21 = vector.broadcast %20 : vector<8x1xf32> to vector<8x64xf32>
    %22 = arith.mulf %17, %21 : vector<8x64xf32>
    %c0_7 = arith.constant 0 : index
    %c0_8 = arith.constant 0 : index
    %23 = vector.load %arg5[%c0_7, %c0_8] : memref<1x64xf32, #tpu.memory_space<vmem>>, vector<1x64xf32>
    %24 = vector.broadcast %23 : vector<1x64xf32> to vector<8x64xf32>
    %25 = arith.mulf %22, %24 : vector<8x64xf32>
    %c0_9 = arith.constant 0 : index
    %c0_10 = arith.constant 0 : index
    %26 = vector.load %arg6[%c0_9, %c0_10] : memref<1x64xf32, #tpu.memory_space<vmem>>, vector<1x64xf32>
    %27 = vector.broadcast %26 : vector<1x64xf32> to vector<8x64xf32>
    %28 = arith.addf %25, %27 : vector<8x64xf32>
    %cst_11 = arith.constant 0.0883883461 : f32
    %29 = vector.broadcast %cst_11 : f32 to vector<8x64xf32>
    %30 = arith.mulf %28, %29 : vector<8x64xf32>
    %31 = arith.truncf %30 : vector<8x64xf32> to vector<8x64xbf16>
    %c0_12 = arith.constant 0 : index
    %c0_13 = arith.constant 0 : index
    %32 = vector.load %arg11[%c0_12, %c0_13] : memref<64x512xbf16, #tpu.memory_space<vmem>>, vector<64x512xbf16>
    %cst_14 = arith.constant dense<0.000000e+00> : vector<8x512xf32>
    %33 = tpu.matmul %31, %32, %cst_14 {dimension_numbers = #tpu.dot_dimension_numbers<[1], [0], [0], [1], [0, 0, 1, 1], [], []>} : vector<8x64xbf16>, vector<64x512xbf16>, vector<8x512xf32> -> vector<8x512xf32>
    %34 = arith.truncf %33 : vector<8x512xf32> to vector<8x512xbf16>
    %c0_15 = arith.constant 0 : index
    %c0_16 = arith.constant 0 : index
    %c0_17 = arith.constant 0 : index
    %35 = vector.load %arg4[%c0_15, %c0_16, %c0_17] : memref<1x8x16xbf16, #tpu.memory_space<vmem>>, vector<1x8x16xbf16>
    %36 = vector.shape_cast %35 : vector<1x8x16xbf16> to vector<8x16xbf16>
    %37 = arith.extf %36 : vector<8x16xbf16> to vector<8x16xf32>
    %38 = vector.extract_strided_slice %34 {offsets = [0, 0], sizes = [8, 128], strides = [1, 1]} : vector<8x512xbf16> to vector<8x128xbf16>
    %c0_18 = arith.constant 0 : index
    %c0_19 = arith.constant 0 : index
    %39 = vector.load %arg16[%c0_18, %c0_19] : memref<16x512xbf16, #tpu.memory_space<vmem>>, vector<16x128xbf16>
    %cst_20 = arith.constant dense<0.000000e+00> : vector<8x16xf32>
    %40 = tpu.matmul %38, %39, %cst_20 {dimension_numbers = #tpu.dot_dimension_numbers<[1], [1], [0], [0], [0, 0, 1, 0], [], []>} : vector<8x128xbf16>, vector<16x128xbf16>, vector<8x16xf32> -> vector<8x16xf32>
    %41 = arith.addf %40, %37 : vector<8x16xf32>
    %cst_21 = arith.constant dense<0xFF800000> : vector<8xf32>
    %42 = vector.multi_reduction <maximumf>, %41, %cst_21 [1] : vector<8x16xf32> to vector<8xf32>
    %43 = vector.shape_cast %42 : vector<8xf32> to vector<8x1xf32>
    %44 = vector.broadcast %43 : vector<8x1xf32> to vector<8x16xf32>
    %45 = arith.subf %41, %44 : vector<8x16xf32>
    %46 = math.exp %45 : vector<8x16xf32>
    %cst_22 = arith.constant dense<0.000000e+00> : vector<8xf32>
    %47 = vector.multi_reduction <add>, %46, %cst_22 [1] : vector<8x16xf32> to vector<8xf32>
    %48 = vector.shape_cast %47 : vector<8xf32> to vector<8x1xf32>
    %49 = tpu.reciprocal %48 {approx = true} : vector<8x1xf32> -> vector<8x1xf32>
    %50 = vector.broadcast %49 : vector<8x1xf32> to vector<8x16xf32>
    %51 = arith.mulf %46, %50 : vector<8x16xf32>
    %52 = arith.truncf %51 : vector<8x16xf32> to vector<8x16xbf16>
    %c0_23 = arith.constant 0 : index
    %c0_24 = arith.constant 0 : index
    %53 = vector.load %arg17[%c0_23, %c0_24] : memref<16x512xbf16, #tpu.memory_space<vmem>>, vector<16x128xbf16>
    %cst_25 = arith.constant dense<0.000000e+00> : vector<8x128xf32>
    %54 = tpu.matmul %52, %53, %cst_25 {dimension_numbers = #tpu.dot_dimension_numbers<[1], [0], [0], [1], [0, 0, 1, 1], [], []>} : vector<8x16xbf16>, vector<16x128xbf16>, vector<8x128xf32> -> vector<8x128xf32>
    %55 = arith.truncf %54 : vector<8x128xf32> to vector<8x128xbf16>
    %c0_26 = arith.constant 0 : index
    %c0_27 = arith.constant 0 : index
    %56 = vector.load %arg18[%c0_26, %c0_27] : memref<8x512xbf16, #tpu.memory_space<vmem>>, vector<8x128xbf16>
    tpu.vector_store %arg18[%c0_26, %c0_27], %55 {strides = array<i32>} : memref<8x512xbf16, #tpu.memory_space<vmem>>, vector<8x128xbf16>,
    %57 = vector.extract_strided_slice %34 {offsets = [0, 128], sizes = [8, 128], strides = [1, 1]} : vector<8x512xbf16> to vector<8x128xbf16>
    %c0_28 = arith.constant 0 : index
    %c128 = arith.constant 128 : index
    %58 = vector.load %arg16[%c0_28, %c128] : memref<16x512xbf16, #tpu.memory_space<vmem>>, vector<16x128xbf16>
    %cst_29 = arith.constant dense<0.000000e+00> : vector<8x16xf32>
    %59 = tpu.matmul %57, %58, %cst_29 {dimension_numbers = #tpu.dot_dimension_numbers<[1], [1], [0], [0], [0, 0, 1, 0], [], []>} : vector<8x128xbf16>, vector<16x128xbf16>, vector<8x16xf32> -> vector<8x16xf32>
    %60 = arith.addf %59, %37 : vector<8x16xf32>
    %cst_30 = arith.constant dense<0xFF800000> : vector<8xf32>
    %61 = vector.multi_reduction <maximumf>, %60, %cst_30 [1] : vector<8x16xf32> to vector<8xf32>
    %62 = vector.shape_cast %61 : vector<8xf32> to vector<8x1xf32>
    %63 = vector.broadcast %62 : vector<8x1xf32> to vector<8x16xf32>
    %64 = arith.subf %60, %63 : vector<8x16xf32>
    %65 = math.exp %64 : vector<8x16xf32>
    %cst_31 = arith.constant dense<0.000000e+00> : vector<8xf32>
    %66 = vector.multi_reduction <add>, %65, %cst_31 [1] : vector<8x16xf32> to vector<8xf32>
    %67 = vector.shape_cast %66 : vector<8xf32> to vector<8x1xf32>
    %68 = tpu.reciprocal %67 {approx = true} : vector<8x1xf32> -> vector<8x1xf32>
    %69 = vector.broadcast %68 : vector<8x1xf32> to vector<8x16xf32>
    %70 = arith.mulf %65, %69 : vector<8x16xf32>
    %71 = arith.truncf %70 : vector<8x16xf32> to vector<8x16xbf16>
    %c0_32 = arith.constant 0 : index
    %c128_33 = arith.constant 128 : index
    %72 = vector.load %arg17[%c0_32, %c128_33] : memref<16x512xbf16, #tpu.memory_space<vmem>>, vector<16x128xbf16>
    %cst_34 = arith.constant dense<0.000000e+00> : vector<8x128xf32>
    %73 = tpu.matmul %71, %72, %cst_34 {dimension_numbers = #tpu.dot_dimension_numbers<[1], [0], [0], [1], [0, 0, 1, 1], [], []>} : vector<8x16xbf16>, vector<16x128xbf16>, vector<8x128xf32> -> vector<8x128xf32>
    %74 = arith.truncf %73 : vector<8x128xf32> to vector<8x128xbf16>
    %c0_35 = arith.constant 0 : index
    %c128_36 = arith.constant 128 : index
    %75 = vector.load %arg18[%c0_35, %c128_36] : memref<8x512xbf16, #tpu.memory_space<vmem>>, vector<8x128xbf16>
    tpu.vector_store %arg18[%c0_35, %c128_36], %74 {strides = array<i32>} : memref<8x512xbf16, #tpu.memory_space<vmem>>, vector<8x128xbf16>,
    %76 = vector.extract_strided_slice %34 {offsets = [0, 256], sizes = [8, 128], strides = [1, 1]} : vector<8x512xbf16> to vector<8x128xbf16>
    %c0_37 = arith.constant 0 : index
    %c256 = arith.constant 256 : index
    %77 = vector.load %arg16[%c0_37, %c256] : memref<16x512xbf16, #tpu.memory_space<vmem>>, vector<16x128xbf16>
    %cst_38 = arith.constant dense<0.000000e+00> : vector<8x16xf32>
    %78 = tpu.matmul %76, %77, %cst_38 {dimension_numbers = #tpu.dot_dimension_numbers<[1], [1], [0], [0], [0, 0, 1, 0], [], []>} : vector<8x128xbf16>, vector<16x128xbf16>, vector<8x16xf32> -> vector<8x16xf32>
    %79 = arith.addf %78, %37 : vector<8x16xf32>
    %cst_39 = arith.constant dense<0xFF800000> : vector<8xf32>
    %80 = vector.multi_reduction <maximumf>, %79, %cst_39 [1] : vector<8x16xf32> to vector<8xf32>
    %81 = vector.shape_cast %80 : vector<8xf32> to vector<8x1xf32>
    %82 = vector.broadcast %81 : vector<8x1xf32> to vector<8x16xf32>
    %83 = arith.subf %79, %82 : vector<8x16xf32>
    %84 = math.exp %83 : vector<8x16xf32>
    %cst_40 = arith.constant dense<0.000000e+00> : vector<8xf32>
    %85 = vector.multi_reduction <add>, %84, %cst_40 [1] : vector<8x16xf32> to vector<8xf32>
    %86 = vector.shape_cast %85 : vector<8xf32> to vector<8x1xf32>
    %87 = tpu.reciprocal %86 {approx = true} : vector<8x1xf32> -> vector<8x1xf32>
    %88 = vector.broadcast %87 : vector<8x1xf32> to vector<8x16xf32>
    %89 = arith.mulf %84, %88 : vector<8x16xf32>
    %90 = arith.truncf %89 : vector<8x16xf32> to vector<8x16xbf16>
    %c0_41 = arith.constant 0 : index
    %c256_42 = arith.constant 256 : index
    %91 = vector.load %arg17[%c0_41, %c256_42] : memref<16x512xbf16, #tpu.memory_space<vmem>>, vector<16x128xbf16>
    %cst_43 = arith.constant dense<0.000000e+00> : vector<8x128xf32>
    %92 = tpu.matmul %90, %91, %cst_43 {dimension_numbers = #tpu.dot_dimension_numbers<[1], [0], [0], [1], [0, 0, 1, 1], [], []>} : vector<8x16xbf16>, vector<16x128xbf16>, vector<8x128xf32> -> vector<8x128xf32>
    %93 = arith.truncf %92 : vector<8x128xf32> to vector<8x128xbf16>
    %c0_44 = arith.constant 0 : index
    %c256_45 = arith.constant 256 : index
    %94 = vector.load %arg18[%c0_44, %c256_45] : memref<8x512xbf16, #tpu.memory_space<vmem>>, vector<8x128xbf16>
    tpu.vector_store %arg18[%c0_44, %c256_45], %93 {strides = array<i32>} : memref<8x512xbf16, #tpu.memory_space<vmem>>, vector<8x128xbf16>,
    %95 = vector.extract_strided_slice %34 {offsets = [0, 384], sizes = [8, 128], strides = [1, 1]} : vector<8x512xbf16> to vector<8x128xbf16>
    %c0_46 = arith.constant 0 : index
    %c384 = arith.constant 384 : index
    %96 = vector.load %arg16[%c0_46, %c384] : memref<16x512xbf16, #tpu.memory_space<vmem>>, vector<16x128xbf16>
    %cst_47 = arith.constant dense<0.000000e+00> : vector<8x16xf32>
    %97 = tpu.matmul %95, %96, %cst_47 {dimension_numbers = #tpu.dot_dimension_numbers<[1], [1], [0], [0], [0, 0, 1, 0], [], []>} : vector<8x128xbf16>, vector<16x128xbf16>, vector<8x16xf32> -> vector<8x16xf32>
    %98 = arith.addf %97, %37 : vector<8x16xf32>
    %cst_48 = arith.constant dense<0xFF800000> : vector<8xf32>
    %99 = vector.multi_reduction <maximumf>, %98, %cst_48 [1] : vector<8x16xf32> to vector<8xf32>
    %100 = vector.shape_cast %99 : vector<8xf32> to vector<8x1xf32>
    %101 = vector.broadcast %100 : vector<8x1xf32> to vector<8x16xf32>
    %102 = arith.subf %98, %101 : vector<8x16xf32>
    %103 = math.exp %102 : vector<8x16xf32>
    %cst_49 = arith.constant dense<0.000000e+00> : vector<8xf32>
    %104 = vector.multi_reduction <add>, %103, %cst_49 [1] : vector<8x16xf32> to vector<8xf32>
    %105 = vector.shape_cast %104 : vector<8xf32> to vector<8x1xf32>
    %106 = tpu.reciprocal %105 {approx = true} : vector<8x1xf32> -> vector<8x1xf32>
    %107 = vector.broadcast %106 : vector<8x1xf32> to vector<8x16xf32>
    %108 = arith.mulf %103, %107 : vector<8x16xf32>
    %109 = arith.truncf %108 : vector<8x16xf32> to vector<8x16xbf16>
    %c0_50 = arith.constant 0 : index
    %c384_51 = arith.constant 384 : index
    %110 = vector.load %arg17[%c0_50, %c384_51] : memref<16x512xbf16, #tpu.memory_space<vmem>>, vector<16x128xbf16>
    %cst_52 = arith.constant dense<0.000000e+00> : vector<8x128xf32>
    %111 = tpu.matmul %109, %110, %cst_52 {dimension_numbers = #tpu.dot_dimension_numbers<[1], [0], [0], [1], [0, 0, 1, 1], [], []>} : vector<8x16xbf16>, vector<16x128xbf16>, vector<8x128xf32> -> vector<8x128xf32>
    %112 = arith.truncf %111 : vector<8x128xf32> to vector<8x128xbf16>
    %c0_53 = arith.constant 0 : index
    %c384_54 = arith.constant 384 : index
    %113 = vector.load %arg18[%c0_53, %c384_54] : memref<8x512xbf16, #tpu.memory_space<vmem>>, vector<8x128xbf16>
    tpu.vector_store %arg18[%c0_53, %c384_54], %112 {strides = array<i32>} : memref<8x512xbf16, #tpu.memory_space<vmem>>, vector<8x128xbf16>,
    %c0_55 = arith.constant 0 : index
    %c0_56 = arith.constant 0 : index
    %114 = vector.load %arg18[%c0_55, %c0_56] : memref<8x512xbf16, #tpu.memory_space<vmem>>, vector<8x512xbf16>
    %c0_57 = arith.constant 0 : index
    %c0_58 = arith.constant 0 : index
    %115 = vector.load %arg14[%c0_57, %c0_58] : memref<512x128xbf16, #tpu.memory_space<vmem>>, vector<512x128xbf16>
    %cst_59 = arith.constant dense<0.000000e+00> : vector<8x128xf32>
    %116 = tpu.matmul %114, %115, %cst_59 {dimension_numbers = #tpu.dot_dimension_numbers<[1], [0], [0], [1], [0, 0, 1, 1], [], []>} : vector<8x512xbf16>, vector<512x128xbf16>, vector<8x128xf32> -> vector<8x128xf32>
    %c0_60 = arith.constant 0 : index
    %c0_61 = arith.constant 0 : index
    %c0_62 = arith.constant 0 : index
    %117 = vector.load %arg15[%c0_60, %c0_61, %c0_62] : memref<1x8x128xf32, #tpu.memory_space<vmem>>, vector<1x8x128xf32>
    %118 = vector.shape_cast %117 : vector<1x8x128xf32> to vector<8x128xf32>
    %119 = vector.shape_cast %116 : vector<8x128xf32> to vector<1x8x128xf32>
    tpu.vector_store %arg15[%c0_60, %c0_61, %c0_62], %119 {strides = array<i32>} : memref<1x8x128xf32, #tpu.memory_space<vmem>>, vector<1x8x128xf32>,
    return
  }
  func.func @transform_0(%arg0: i32, %arg1: i32) -> (i32, i32, i32) {
    %c0_i32 = arith.constant 0 : i32
    %c0_i32_0 = arith.constant 0 : i32
    return %arg0, %arg1, %c0_i32 : i32, i32, i32
  }
  func.func @transform_1(%arg0: i32, %arg1: i32) -> (i32, i32, i32) {
    %c0_i32 = arith.constant 0 : i32
    %c0_i32_0 = arith.constant 0 : i32
    %c0_i32_1 = arith.constant 0 : i32
    return %arg0, %c0_i32, %c0_i32_0 : i32, i32, i32
  }
  func.func @transform_2(%arg0: i32, %arg1: i32) -> (i32, i32, i32) {
    %c0_i32 = arith.constant 0 : i32
    %c0_i32_0 = arith.constant 0 : i32
    return %arg0, %arg1, %c0_i32 : i32, i32, i32
  }
  func.func @transform_3(%arg0: i32, %arg1: i32) -> (i32, i32) {
    %c0_i32 = arith.constant 0 : i32
    %c0_i32_0 = arith.constant 0 : i32
    %c0_i32_1 = arith.constant 0 : i32
    return %c0_i32, %c0_i32_0 : i32, i32
  }
  func.func @transform_4(%arg0: i32, %arg1: i32) -> (i32, i32) {
    %c0_i32 = arith.constant 0 : i32
    %c0_i32_0 = arith.constant 0 : i32
    %c0_i32_1 = arith.constant 0 : i32
    return %c0_i32, %c0_i32_0 : i32, i32
  }
  func.func @transform_5(%arg0: i32, %arg1: i32) -> (i32, i32) {
    %c0_i32 = arith.constant 0 : i32
    %c0_i32_0 = arith.constant 0 : i32
    %c0_i32_1 = arith.constant 0 : i32
    return %c0_i32, %c0_i32_0 : i32, i32
  }
  func.func @transform_6(%arg0: i32, %arg1: i32) -> (i32, i32) {
    %c0_i32 = arith.constant 0 : i32
    %c0_i32_0 = arith.constant 0 : i32
    %c0_i32_1 = arith.constant 0 : i32
    return %c0_i32, %c0_i32_0 : i32, i32
  }
  func.func @transform_7(%arg0: i32, %arg1: i32) -> (i32, i32) {
    %c0_i32 = arith.constant 0 : i32
    %c0_i32_0 = arith.constant 0 : i32
    %c0_i32_1 = arith.constant 0 : i32
    return %c0_i32, %c0_i32_0 : i32, i32
  }
  func.func @transform_8(%arg0: i32, %arg1: i32) -> (i32, i32) {
    %c0_i32 = arith.constant 0 : i32
    %c0_i32_0 = arith.constant 0 : i32
    %c0_i32_1 = arith.constant 0 : i32
    return %c0_i32, %c0_i32_0 : i32, i32
  }
  func.func @transform_9(%arg0: i32, %arg1: i32) -> (i32, i32) {
    %c0_i32 = arith.constant 0 : i32
    %c0_i32_0 = arith.constant 0 : i32
    %c0_i32_1 = arith.constant 0 : i32
    return %c0_i32, %c0_i32_0 : i32, i32
  }
  func.func @transform_10(%arg0: i32, %arg1: i32) -> (i32, i32) {
    %c0_i32 = arith.constant 0 : i32
    %c0_i32_0 = arith.constant 0 : i32
    %c0_i32_1 = arith.constant 0 : i32
    return %c0_i32, %c0_i32_0 : i32, i32
  }
  func.func @transform_11(%arg0: i32, %arg1: i32) -> (i32, i32) {
    %c0_i32 = arith.constant 0 : i32
    %c0_i32_0 = arith.constant 0 : i32
    %c0_i32_1 = arith.constant 0 : i32
    return %c0_i32, %c0_i32_0 : i32, i32
  }
  func.func @transform_12(%arg0: i32, %arg1: i32) -> (i32, i32) {
    %c0_i32 = arith.constant 0 : i32
    %c0_i32_0 = arith.constant 0 : i32
    %c0_i32_1 = arith.constant 0 : i32
    return %c0_i32, %c0_i32_0 : i32, i32
  }
  func.func @transform_13(%arg0: i32, %arg1: i32) -> (i32, i32, i32) {
    %c0_i32 = arith.constant 0 : i32
    %c0_i32_0 = arith.constant 0 : i32
    return %arg0, %arg1, %c0_i32 : i32, i32, i32
  }
}

</mosaic_0001>

<llo_original>
// kernel: tpu_custom_call.1
$region0: #{tpu_custom_call.1}
  #allocation0 [shape = 'u32[]', space=smem, size = 0x4, offset = 0x4, fixed_abs, tag = 'smem constant byte address 0x4 - core index']
  #allocation1 [shape = 'u32[72,128]{1,0:T(1,128)}', space=vmem, size = 0x9000, scoped, tag = 'internal scratch']
  #allocation2 [shape = 'bf16[16,512]{1,0:T(8,128)(2,1)}', space=vmem, size = 0x4000, scoped, tag = 'scratch operand']
  #allocation3 [shape = 'bf16[16,512]{1,0:T(8,128)(2,1)}', space=vmem, size = 0x4000, scoped, tag = 'scratch operand']
  #allocation4 [shape = 'bf16[8,512]{1,0:T(8,128)(2,1)}', space=vmem, size = 0x2000, scoped, tag = 'scratch operand']
  %s0 = inlined_call_operand.hbm [shape: f32[2,8,64], index: 0, kind: input, shape index: {}]
  %s1 = inlined_call_operand.hbm [shape: f32[2,16,80], index: 1, kind: input, shape index: {}]
  %s2 = inlined_call_operand.hbm [shape: bf16[2,8,16], index: 2, kind: input, shape index: {}]
  %s3 = inlined_call_operand.vmem [shape: f32[1,64], index: 3, kind: input, shape index: {}]
  %s4 = inlined_call_operand.vmem [shape: f32[1,64], index: 4, kind: input, shape index: {}]
  %s5 = inlined_call_operand.vmem [shape: f32[1,80], index: 5, kind: input, shape index: {}]
  %s6 = inlined_call_operand.vmem [shape: f32[1,80], index: 6, kind: input, shape index: {}]
  %s7 = inlined_call_operand.vmem [shape: f32[1,80], index: 7, kind: input, shape index: {}]
  %s8 = inlined_call_operand.vmem [shape: f32[1,80], index: 8, kind: input, shape index: {}]
  %s9 = inlined_call_operand.hbm [shape: bf16[64,512], index: 9, kind: input, shape index: {}]
  %s10 = inlined_call_operand.hbm [shape: bf16[80,512], index: 10, kind: input, shape index: {}]
  %s11 = inlined_call_operand.hbm [shape: bf16[80,512], index: 11, kind: input, shape index: {}]
  %s12 = inlined_call_operand.hbm [shape: bf16[512,128], index: 12, kind: input, shape index: {}]
  %s13 = inlined_call_operand.hbm [shape: f32[2,8,128], index: 13, kind: output, shape index: {}]
  %s14 = sld [smem:[#allocation0]]
  $region117: #{tpu_custom_call.1} parent=0
    _
  %s16 = ssub.s32 1, %s14
  %s17 = scalar_select 0, %s16, %s14
  $region1: #{tpu_custom_call.1} parent=0
    #allocation5 [shape = 'u8[8192]{0}', space=vmem, size = 0x2000, scoped, tag = 'input window, operand 0']
    #allocation6 [shape = 's32[2]{0}', space=sflag, size = 0x8, scoped, tag = 'scoped memory for tpu_custom_call.1']
    #allocation7 [shape = 's32[2]{0}', space=sflag, size = 0x8, scoped, tag = 'scoped memory for tpu_custom_call.1']
    #allocation8 [shape = 'u8[16384]{0}', space=vmem, size = 0x4000, scoped, tag = 'input window, operand 1']
    #allocation9 [shape = 's32[2]{0}', space=sflag, size = 0x8, scoped, tag = 'scoped memory for tpu_custom_call.1']
    #allocation10 [shape = 'u8[4096]{0}', space=vmem, size = 0x1000, scoped, tag = 'input window, operand 2']
    #allocation11 [shape = 'u8[65536]{0}', space=vmem, size = 0x10000, scoped, tag = 'input window, operand 9, single buffered']
    #allocation12 [shape = 's32[1]{0}', space=sflag, size = 0x4, scoped, tag = 'scoped memory for tpu_custom_call.1']
    #allocation13 [shape = 'u8[81920]{0}', space=vmem, size = 0x14000, scoped, tag = 'input window, operand 10, single buffered']
    #allocation14 [shape = 'u8[81920]{0}', space=vmem, size = 0x14000, scoped, tag = 'input window, operand 11, single buffered']
    #allocation15 [shape = 's32[1]{0}', space=sflag, size = 0x4, scoped, tag = 'scoped memory for tpu_custom_call.1']
    #allocation16 [shape = 'u8[131072]{0}', space=vmem, size = 0x20000, scoped, tag = 'input window, operand 12, single buffered']
    #allocation17 [shape = 'u8[8192]{0}', space=vmem, size = 0x2000, scoped, tag = 'output window, operand 0']
    %18 = vsyncpa [#allocation6], 0
    %s19 = scalar_lea.sflag [#allocation6], 1
    %20 = vsyncpa %s19, 0
    %21 = vsyncpa [#allocation9], 0
    %s22 = scalar_lea.sflag [#allocation9], 1
    %23 = vsyncpa %s22, 0
    %24 = vsyncpa [#allocation12], 0
    %25 = vsyncpa [#allocation15], 0
    %26 = vsyncpa [#allocation7], 0
    %s27 = scalar_lea.sflag [#allocation7], 1
    %28 = vsyncpa %s27, 0
    loop: start=0, step=1, limit=4
    $region2: #{tpu_custom_call.1} parent=1 // loop_pre_header
      _
    $region3: #{tpu_custom_call.1} parent=1 // loop_header
      %s30 = sphi 0, %s34
      %p31 = scmp.ge.s32.totalorder %s30, 4
      %s37 = sphi 0, %s49
      %s38 = sphi 0, %s45
      %s39 = sphi 0, %s37
      %s40 = sphi 0, %s38
      %s41 = sphi 0, %s39
      %s42 = sphi 0, %s40
      %s54 = sphi 0, %s56
      %s57 = sphi 0, %s54
      %s58 = sphi 0, %s57
      %s74 = sphi 0, %s58
      %s80 = sphi 0, %s82
      %s83 = sphi 0, %s80
      %s84 = sphi 0, %s83
      %s100 = sphi 0, %s84
      %s108 = sphi 0, %s110
      %s111 = sphi 0, %s108
      %s112 = sphi 0, %s111
      %s128 = sphi 0, %s112
      %s132 = sphi 0, %s132
      %s134 = sphi 0, %s132
      %s135 = sphi 0, %s134
      %s149 = sphi 0, %s135
      %s153 = sphi 0, %s153
      %s155 = sphi 0, %s153
      %s156 = sphi 0, %s155
      %s170 = sphi 0, %s156
      %s174 = sphi 0, %s174
      %s176 = sphi 0, %s174
      %s177 = sphi 0, %s176
      %s191 = sphi 0, %s177
      %s195 = sphi 0, %s195
      %s197 = sphi 0, %s195
      %s198 = sphi 0, %s197
      %s212 = sphi 0, %s198
      %s216 = sphi 0, %s216
      %s218 = sphi 0, %s216
      %s219 = sphi 0, %s218
      %s233 = sphi 0, %s219
      %s237 = sphi 0, %s237
      %s239 = sphi 0, %s237
      %s240 = sphi 0, %s239
      %s254 = sphi 0, %s240
      %s258 = sphi 0, %s258
      %s260 = sphi 0, %s258
      %s261 = sphi 0, %s260
      %s275 = sphi 0, %s261
      %s279 = sphi 0, %s279
      %s281 = sphi 0, %s279
      %s282 = sphi 0, %s281
      %s296 = sphi 0, %s282
      %s300 = sphi 0, %s300
      %s302 = sphi 0, %s300
      %s303 = sphi 0, %s302
      %s317 = sphi 0, %s303
      %s321 = sphi 0, %s321
      %s323 = sphi 0, %s321
      %s324 = sphi 0, %s323
      %s338 = sphi 0, %s324
      %s346 = sphi 0, %s348
      %s349 = sphi 0, %s346
      %s350 = sphi 0, %s349
      %s366 = sphi 0, %s350
    $region4: #{tpu_custom_call.1} parent=1 // loop_header_branch
      %33 = sbr.rel (%p31) target = $region8
    $region5: #{tpu_custom_call.1} parent=1 // loop_body
      %s35 = ssub.s32 %s30, 1
      %s36 = ssub.s32 %s30, 2
      %s43 = sadd.s32 1, %s38
      %p44 = scmp.ge.s32.totalorder %s43, 1
      %s45 = scalar_select %p44, 0, %s43
      %s46 = sadd.s32 1, %s37
      %s47 = scalar_select %p44, %s46, %s37
      %p48 = scmp.ge.s32.totalorder %s47, 2
      %s49 = scalar_select %p48, 0, %s47
      %s50 = ssub.s32 %s37, %s49
      %s51 = ssub.s32 %s38, %s45
      %s52 = sor.u32 %s50, %s51
      %p53 = scmp.eq.s32.totalorder %s52, 0
      %s55 = sadd.s32 %s54, 1
      %s56 = scalar_select %p53, %s54, %s55
      %p59 = pneg %p53
      %p60 = scmp.eq.s32.totalorder %s30, 1
      %p61 = por %p59, %p60
      %p62 = scmp.ne.s32.totalorder %s54, %s57
      %p63 = scmp.eq.s32.totalorder %s30, 0
      %p64 = por %p62, %p63
      %p65 = scmp.ne.s32.totalorder %s54, %s57
      %p66 = scmp.eq.s32.totalorder %s35, 1
      %p67 = por %p65, %p66
      %p68 = scmp.ne.s32.totalorder %s57, %s58
      %p69 = scmp.eq.s32.totalorder %s35, 0
      %p70 = por %p68, %p69
      %p71 = scmp.ne.s32.totalorder %s57, %s58
      %p72 = scmp.eq.s32.totalorder %s36, 1
      %p73 = por %p71, %p72
      %p75 = scmp.ne.s32.totalorder %s58, %s74
      %p76 = scmp.eq.s32.totalorder %s36, 0
      %p77 = por %p75, %p76
      %s78 = ssub.s32 %s37, %s49
      %p79 = scmp.eq.s32.totalorder %s78, 0
      %s81 = sadd.s32 %s80, 1
      %s82 = scalar_select %p79, %s80, %s81
      %p85 = pneg %p79
      %p86 = scmp.eq.s32.totalorder %s30, 1
      %p87 = por %p85, %p86
      %p88 = scmp.ne.s32.totalorder %s80, %s83
      %p89 = scmp.eq.s32.totalorder %s30, 0
      %p90 = por %p88, %p89
      %p91 = scmp.ne.s32.totalorder %s80, %s83
      %p92 = scmp.eq.s32.totalorder %s35, 1
      %p93 = por %p91, %p92
      %p94 = scmp.ne.s32.totalorder %s83, %s84
      %p95 = scmp.eq.s32.totalorder %s35, 0
      %p96 = por %p94, %p95
      %p97 = scmp.ne.s32.totalorder %s83, %s84
      %p98 = scmp.eq.s32.totalorder %s36, 1
      %p99 = por %p97, %p98
      %p101 = scmp.ne.s32.totalorder %s84, %s100
      %p102 = scmp.eq.s32.totalorder %s36, 0
      %p103 = por %p101, %p102
      %s104 = ssub.s32 %s37, %s49
      %s105 = ssub.s32 %s38, %s45
      %s106 = sor.u32 %s104, %s105
      %p107 = scmp.eq.s32.totalorder %s106, 0
      %s109 = sadd.s32 %s108, 1
      %s110 = scalar_select %p107, %s108, %s109
      %p113 = pneg %p107
      %p114 = scmp.eq.s32.totalorder %s30, 1
      %p115 = por %p113, %p114
      %p116 = scmp.ne.s32.totalorder %s108, %s111
      %p117 = scmp.eq.s32.totalorder %s30, 0
      %p118 = por %p116, %p117
      %p119 = scmp.ne.s32.totalorder %s108, %s111
      %p120 = scmp.eq.s32.totalorder %s35, 1
      %p121 = por %p119, %p120
      %p122 = scmp.ne.s32.totalorder %s111, %s112
      %p123 = scmp.eq.s32.totalorder %s35, 0
      %p124 = por %p122, %p123
      %p125 = scmp.ne.s32.totalorder %s111, %s112
      %p126 = scmp.eq.s32.totalorder %s36, 1
      %p127 = por %p125, %p126
      %p129 = scmp.ne.s32.totalorder %s112, %s128
      %p130 = scmp.eq.s32.totalorder %s36, 0
      %p131 = por %p129, %p130
      %s133 = sadd.s32 %s132, 1
      %p136 = scmp.eq.s32.totalorder %s30, 1
      %p137 = scmp.ne.s32.totalorder %s132, %s134
      %p138 = scmp.eq.s32.totalorder %s30, 0
      %p139 = por %p137, %p138
      %p140 = scmp.ne.s32.totalorder %s132, %s134
      %p141 = scmp.eq.s32.totalorder %s35, 1
      %p142 = por %p140, %p141
      %p143 = scmp.ne.s32.totalorder %s134, %s135
      %p144 = scmp.eq.s32.totalorder %s35, 0
      %p145 = por %p143, %p144
      %p146 = scmp.ne.s32.totalorder %s134, %s135
      %p147 = scmp.eq.s32.totalorder %s36, 1
      %p148 = por %p146, %p147
      %p150 = scmp.ne.s32.totalorder %s135, %s149
      %p151 = scmp.eq.s32.totalorder %s36, 0
      %p152 = por %p150, %p151
      %s154 = sadd.s32 %s153, 1
      %p157 = scmp.eq.s32.totalorder %s30, 1
      %p158 = scmp.ne.s32.totalorder %s153, %s155
      %p159 = scmp.eq.s32.totalorder %s30, 0
      %p160 = por %p158, %p159
      %p161 = scmp.ne.s32.totalorder %s153, %s155
      %p162 = scmp.eq.s32.totalorder %s35, 1
      %p163 = por %p161, %p162
      %p164 = scmp.ne.s32.totalorder %s155, %s156
      %p165 = scmp.eq.s32.totalorder %s35, 0
      %p166 = por %p164, %p165
      %p167 = scmp.ne.s32.totalorder %s155, %s156
      %p168 = scmp.eq.s32.totalorder %s36, 1
      %p169 = por %p167, %p168
      %p171 = scmp.ne.s32.totalorder %s156, %s170
      %p172 = scmp.eq.s32.totalorder %s36, 0
      %p173 = por %p171, %p172
      %s175 = sadd.s32 %s174, 1
      %p178 = scmp.eq.s32.totalorder %s30, 1
      %p179 = scmp.ne.s32.totalorder %s174, %s176
      %p180 = scmp.eq.s32.totalorder %s30, 0
      %p181 = por %p179, %p180
      %p182 = scmp.ne.s32.totalorder %s174, %s176
      %p183 = scmp.eq.s32.totalorder %s35, 1
      %p184 = por %p182, %p183
      %p185 = scmp.ne.s32.totalorder %s176, %s177
      %p186 = scmp.eq.s32.totalorder %s35, 0
      %p187 = por %p185, %p186
      %p188 = scmp.ne.s32.totalorder %s176, %s177
      %p189 = scmp.eq.s32.totalorder %s36, 1
      %p190 = por %p188, %p189
      %p192 = scmp.ne.s32.totalorder %s177, %s191
      %p193 = scmp.eq.s32.totalorder %s36, 0
      %p194 = por %p192, %p193
      %s196 = sadd.s32 %s195, 1
      %p199 = scmp.eq.s32.totalorder %s30, 1
      %p200 = scmp.ne.s32.totalorder %s195, %s197
      %p201 = scmp.eq.s32.totalorder %s30, 0
      %p202 = por %p200, %p201
      %p203 = scmp.ne.s32.totalorder %s195, %s197
      %p204 = scmp.eq.s32.totalorder %s35, 1
      %p205 = por %p203, %p204
      %p206 = scmp.ne.s32.totalorder %s197, %s198
      %p207 = scmp.eq.s32.totalorder %s35, 0
      %p208 = por %p206, %p207
      %p209 = scmp.ne.s32.totalorder %s197, %s198
      %p210 = scmp.eq.s32.totalorder %s36, 1
      %p211 = por %p209, %p210
      %p213 = scmp.ne.s32.totalorder %s198, %s212
      %p214 = scmp.eq.s32.totalorder %s36, 0
      %p215 = por %p213, %p214
      %s217 = sadd.s32 %s216, 1
      %p220 = scmp.eq.s32.totalorder %s30, 1
      %p221 = scmp.ne.s32.totalorder %s216, %s218
      %p222 = scmp.eq.s32.totalorder %s30, 0
      %p223 = por %p221, %p222
      %p224 = scmp.ne.s32.totalorder %s216, %s218
      %p225 = scmp.eq.s32.totalorder %s35, 1
      %p226 = por %p224, %p225
      %p227 = scmp.ne.s32.totalorder %s218, %s219
      %p228 = scmp.eq.s32.totalorder %s35, 0
      %p229 = por %p227, %p228
      %p230 = scmp.ne.s32.totalorder %s218, %s219
      %p231 = scmp.eq.s32.totalorder %s36, 1
      %p232 = por %p230, %p231
      %p234 = scmp.ne.s32.totalorder %s219, %s233
      %p235 = scmp.eq.s32.totalorder %s36, 0
      %p236 = por %p234, %p235
      %s238 = sadd.s32 %s237, 1
      %p241 = scmp.eq.s32.totalorder %s30, 1
      %p242 = scmp.ne.s32.totalorder %s237, %s239
      %p243 = scmp.eq.s32.totalorder %s30, 0
      %p244 = por %p242, %p243
      %p245 = scmp.ne.s32.totalorder %s237, %s239
      %p246 = scmp.eq.s32.totalorder %s35, 1
      %p247 = por %p245, %p246
      %p248 = scmp.ne.s32.totalorder %s239, %s240
      %p249 = scmp.eq.s32.totalorder %s35, 0
      %p250 = por %p248, %p249
      %p251 = scmp.ne.s32.totalorder %s239, %s240
      %p252 = scmp.eq.s32.totalorder %s36, 1
      %p253 = por %p251, %p252
      %p255 = scmp.ne.s32.totalorder %s240, %s254
      %p256 = scmp.eq.s32.totalorder %s36, 0
      %p257 = por %p255, %p256
      %s259 = sadd.s32 %s258, 1
      %p262 = scmp.eq.s32.totalorder %s30, 1
      %p263 = scmp.ne.s32.totalorder %s258, %s260
      %p264 = scmp.eq.s32.totalorder %s30, 0
      %p265 = por %p263, %p264
      %p266 = scmp.ne.s32.totalorder %s258, %s260
      %p267 = scmp.eq.s32.totalorder %s35, 1
      %p268 = por %p266, %p267
      %p269 = scmp.ne.s32.totalorder %s260, %s261
      %p270 = scmp.eq.s32.totalorder %s35, 0
      %p271 = por %p269, %p270
      %p272 = scmp.ne.s32.totalorder %s260, %s261
      %p273 = scmp.eq.s32.totalorder %s36, 1
      %p274 = por %p272, %p273
      %p276 = scmp.ne.s32.totalorder %s261, %s275
      %p277 = scmp.eq.s32.totalorder %s36, 0
      %p278 = por %p276, %p277
      %s280 = sadd.s32 %s279, 1
      %p283 = scmp.eq.s32.totalorder %s30, 1
      %p284 = scmp.ne.s32.totalorder %s279, %s281
      %p285 = scmp.eq.s32.totalorder %s30, 0
      %p286 = por %p284, %p285
      %p287 = scmp.ne.s32.totalorder %s279, %s281
      %p288 = scmp.eq.s32.totalorder %s35, 1
      %p289 = por %p287, %p288
      %p290 = scmp.ne.s32.totalorder %s281, %s282
      %p291 = scmp.eq.s32.totalorder %s35, 0
      %p292 = por %p290, %p291
      %p293 = scmp.ne.s32.totalorder %s281, %s282
      %p294 = scmp.eq.s32.totalorder %s36, 1
      %p295 = por %p293, %p294
      %p297 = scmp.ne.s32.totalorder %s282, %s296
      %p298 = scmp.eq.s32.totalorder %s36, 0
      %p299 = por %p297, %p298
      %s301 = sadd.s32 %s300, 1
      %p304 = scmp.eq.s32.totalorder %s30, 1
      %p305 = scmp.ne.s32.totalorder %s300, %s302
      %p306 = scmp.eq.s32.totalorder %s30, 0
      %p307 = por %p305, %p306
      %p308 = scmp.ne.s32.totalorder %s300, %s302
      %p309 = scmp.eq.s32.totalorder %s35, 1
      %p310 = por %p308, %p309
      %p311 = scmp.ne.s32.totalorder %s302, %s303
      %p312 = scmp.eq.s32.totalorder %s35, 0
      %p313 = por %p311, %p312
      %p314 = scmp.ne.s32.totalorder %s302, %s303
      %p315 = scmp.eq.s32.totalorder %s36, 1
      %p316 = por %p314, %p315
      %p318 = scmp.ne.s32.totalorder %s303, %s317
      %p319 = scmp.eq.s32.totalorder %s36, 0
      %p320 = por %p318, %p319
      %s322 = sadd.s32 %s321, 1
      %p325 = scmp.eq.s32.totalorder %s30, 1
      %p326 = scmp.ne.s32.totalorder %s321, %s323
      %p327 = scmp.eq.s32.totalorder %s30, 0
      %p328 = por %p326, %p327
      %p329 = scmp.ne.s32.totalorder %s321, %s323
      %p330 = scmp.eq.s32.totalorder %s35, 1
      %p331 = por %p329, %p330
      %p332 = scmp.ne.s32.totalorder %s323, %s324
      %p333 = scmp.eq.s32.totalorder %s35, 0
      %p334 = por %p332, %p333
      %p335 = scmp.ne.s32.totalorder %s323, %s324
      %p336 = scmp.eq.s32.totalorder %s36, 1
      %p337 = por %p335, %p336
      %p339 = scmp.ne.s32.totalorder %s324, %s338
      %p340 = scmp.eq.s32.totalorder %s36, 0
      %p341 = por %p339, %p340
      %s342 = ssub.s32 %s37, %s49
      %s343 = ssub.s32 %s38, %s45
      %s344 = sor.u32 %s342, %s343
      %p345 = scmp.eq.s32.totalorder %s344, 0
      %s347 = sadd.s32 %s346, 1
      %s348 = scalar_select %p345, %s346, %s347
      %p351 = pneg %p345
      %p352 = scmp.eq.s32.totalorder %s30, 1
      %p353 = por %p351, %p352
      %p354 = scmp.ne.s32.totalorder %s346, %s349
      %p355 = scmp.eq.s32.totalorder %s30, 0
      %p356 = por %p354, %p355
      %p357 = scmp.ne.s32.totalorder %s346, %s349
      %p358 = scmp.eq.s32.totalorder %s35, 1
      %p359 = por %p357, %p358
      %p360 = scmp.ne.s32.totalorder %s349, %s350
      %p361 = scmp.eq.s32.totalorder %s35, 0
      %p362 = por %p360, %p361
      %p363 = scmp.ne.s32.totalorder %s349, %s350
      %p364 = scmp.eq.s32.totalorder %s36, 1
      %p365 = por %p363, %p364
      %p367 = scmp.ne.s32.totalorder %s350, %s366
      %p368 = scmp.eq.s32.totalorder %s36, 0
      %p369 = por %p367, %p368
      %p370 = scmp.le.s32.totalorder 1, %s30
      %p371 = scmp.lt.s32.totalorder %s30, 3
      %p372 = pnand %p370, %p371
      %p373 = pneg %p372
      // Predicated region
      $region9: #{tpu_custom_call.1} parent=5 // pred_check
        _
      $region10: #{tpu_custom_call.1} parent=5 // pred_check_branch
        %375 = sbr.rel (%p372) target = $region12
      $region11: #{tpu_custom_call.1} parent=5 // pred_region
        %s376 = ssub.s32 %s30, 1
        // Predicated region
        $region13: #{tpu_custom_call.1} parent=11 // pred_check
          %p377 = pneg %p145
        $region14: #{tpu_custom_call.1} parent=11 // pred_check_branch
          %379 = sbr.rel (%p377) target = $region16
        $region15: #{tpu_custom_call.1} parent=11 // pred_region
          _
        $region16: #{tpu_custom_call.1} parent=11 // pred_fallthru
          _
        // Predicated region
        $region17: #{tpu_custom_call.1} parent=11 // pred_check
          %p380 = pneg %p166
        $region18: #{tpu_custom_call.1} parent=11 // pred_check_branch
          %382 = sbr.rel (%p380) target = $region20
        $region19: #{tpu_custom_call.1} parent=11 // pred_region
          _
        $region20: #{tpu_custom_call.1} parent=11 // pred_fallthru
          _
        // Predicated region
        $region21: #{tpu_custom_call.1} parent=11 // pred_check
          %p383 = pneg %p187
        $region22: #{tpu_custom_call.1} parent=11 // pred_check_branch
          %385 = sbr.rel (%p383) target = $region24
        $region23: #{tpu_custom_call.1} parent=11 // pred_region
          _
        $region24: #{tpu_custom_call.1} parent=11 // pred_fallthru
          _
        // Predicated region
        $region25: #{tpu_custom_call.1} parent=11 // pred_check
          %p386 = pneg %p208
        $region26: #{tpu_custom_call.1} parent=11 // pred_check_branch
          %388 = sbr.rel (%p386) target = $region28
        $region27: #{tpu_custom_call.1} parent=11 // pred_region
          _
        $region28: #{tpu_custom_call.1} parent=11 // pred_fallthru
          _
        // Predicated region
        $region29: #{tpu_custom_call.1} parent=11 // pred_check
          %p389 = pneg %p229
        $region30: #{tpu_custom_call.1} parent=11 // pred_check_branch
          %391 = sbr.rel (%p389) target = $region32
        $region31: #{tpu_custom_call.1} parent=11 // pred_region
          _
        $region32: #{tpu_custom_call.1} parent=11 // pred_fallthru
          _
        // Predicated region
        $region33: #{tpu_custom_call.1} parent=11 // pred_check
          %p392 = pneg %p250
        $region34: #{tpu_custom_call.1} parent=11 // pred_check_branch
          %394 = sbr.rel (%p392) target = $region36
        $region35: #{tpu_custom_call.1} parent=11 // pred_region
          _
        $region36: #{tpu_custom_call.1} parent=11 // pred_fallthru
          _
        // Predicated region
        $region37: #{tpu_custom_call.1} parent=11 // pred_check
          %p395 = pneg %p271
        $region38: #{tpu_custom_call.1} parent=11 // pred_check_branch
          %397 = sbr.rel (%p395) target = $region40
        $region39: #{tpu_custom_call.1} parent=11 // pred_region
          %399 = vsyncadd [#allocation12], 0
          %s400 = sshll.u32 %s9, 4
          %s401 = int_to_ptr.hbm [resolvable:$true] %s400
          %s402 = sshll.u32 [#allocation11], 4
          %s403 = int_to_ptr.vmem [resolvable:$true] %s402
          %408 = dma.hbm_to_vmem [thread:$0]  %s401, 2048, %s403, [#allocation12], 256, 256, 16
        $region40: #{tpu_custom_call.1} parent=11 // pred_fallthru
          _
        // Predicated region
        $region41: #{tpu_custom_call.1} parent=11 // pred_check
          %p409 = pneg %p292
        $region42: #{tpu_custom_call.1} parent=11 // pred_check_branch
          %411 = sbr.rel (%p409) target = $region44
        $region43: #{tpu_custom_call.1} parent=11 // pred_region
          %413 = vsyncadd [#allocation12], 0
          %s414 = sshll.u32 %s10, 4
          %s415 = int_to_ptr.hbm [resolvable:$true] %s414
          %s416 = sshll.u32 [#allocation13], 4
          %s417 = int_to_ptr.vmem [resolvable:$true] %s416
          %422 = dma.hbm_to_vmem [thread:$0]  %s415, 2560, %s417, [#allocation12], 256, 256, 16
        $region44: #{tpu_custom_call.1} parent=11 // pred_fallthru
          _
        // Predicated region
        $region45: #{tpu_custom_call.1} parent=11 // pred_check
          %p423 = pneg %p313
        $region46: #{tpu_custom_call.1} parent=11 // pred_check_branch
          %425 = sbr.rel (%p423) target = $region48
        $region47: #{tpu_custom_call.1} parent=11 // pred_region
          %427 = vsyncadd [#allocation15], 0
          %s428 = sshll.u32 %s11, 4
          %s429 = int_to_ptr.hbm [resolvable:$true] %s428
          %s430 = sshll.u32 [#allocation14], 4
          %s431 = int_to_ptr.vmem [resolvable:$true] %s430
          %436 = dma.hbm_to_vmem [thread:$0]  %s429, 2560, %s431, [#allocation15], 256, 256, 16
        $region48: #{tpu_custom_call.1} parent=11 // pred_fallthru
          _
        // Predicated region
        $region49: #{tpu_custom_call.1} parent=11 // pred_check
          %p437 = pneg %p334
        $region50: #{tpu_custom_call.1} parent=11 // pred_check_branch
          %439 = sbr.rel (%p437) target = $region52
        $region51: #{tpu_custom_call.1} parent=11 // pred_region
          %441 = vsyncadd [#allocation15], 0
          %s442 = sshll.u32 %s12, 4
          %s443 = int_to_ptr.hbm [resolvable:$true] %s442
          %s444 = sshll.u32 [#allocation16], 4
          %s445 = int_to_ptr.vmem [resolvable:$true] %s444
          %450 = dma.hbm_to_vmem [thread:$0]  %s443, 4096, %s445, [#allocation15], 64, 64, 4
        $region52: #{tpu_custom_call.1} parent=11 // pred_fallthru
          _
      $region12: #{tpu_custom_call.1} parent=5 // pred_fallthru
        _
      %p451 = scmp.lt.s32.totalorder %s30, 2
      // Predicated region
      $region53: #{tpu_custom_call.1} parent=5 // pred_check
        %p452 = pneg %p451
      $region54: #{tpu_custom_call.1} parent=5 // pred_check_branch
        %454 = sbr.rel (%p452) target = $region56
      $region55: #{tpu_custom_call.1} parent=5 // pred_region
        // Predicated region
        $region57: #{tpu_custom_call.1} parent=55 // pred_check
          %p455 = pneg %p64
        $region58: #{tpu_custom_call.1} parent=55 // pred_check_branch
          %457 = sbr.rel (%p455) target = $region60
        $region59: #{tpu_custom_call.1} parent=55 // pred_region
          %s458 = sand.u32 %s54, 1
          %s459 = scalar_lea.sflag [#allocation6], %s458
          %s460 = sand.u32 %s54, 1
          %s461 = smul.addr %s460, 8
          %s462 = scalar_lea.vmem [#allocation5], %s461
          %464 = vsyncadd %s459, 0
          %s465 = sadd.s32 %s38, %s37
          %s466 = smul.addr %s465, 8
          %s467 = scalar_lea.hbm %s0, %s466
          %s469 = sshll.u32 %s467, 4
          %s470 = int_to_ptr.hbm [resolvable:$true] %s469
          %s471 = sshll.u32 %s462, 4
          %s472 = int_to_ptr.vmem [resolvable:$true] %s471
          %474 = dma.hbm_to_vmem [thread:$0]  %s470, 128, %s472, %s459
        $region60: #{tpu_custom_call.1} parent=55 // pred_fallthru
          _
        // Predicated region
        $region61: #{tpu_custom_call.1} parent=55 // pred_check
          %p475 = pneg %p90
        $region62: #{tpu_custom_call.1} parent=55 // pred_check_branch
          %477 = sbr.rel (%p475) target = $region64
        $region63: #{tpu_custom_call.1} parent=55 // pred_region
          %s478 = sand.u32 %s30, 1
          %s479 = scalar_lea.sflag [#allocation9], %s478
          %s480 = sand.u32 %s80, 1
          %s481 = smul.addr %s480, 16
          %s482 = scalar_lea.vmem [#allocation8], %s481
          %484 = vsyncadd %s479, 0
          %s485 = smul.addr %s37, 2
          %s486 = smul.addr %s485, 8
          %s487 = scalar_lea.hbm %s1, %s486
          %s488 = sshll.u32 %s487, 4
          %s489 = int_to_ptr.hbm [resolvable:$true] %s488
          %s490 = sshll.u32 %s482, 4
          %s491 = int_to_ptr.vmem [resolvable:$true] %s490
          %496 = dma.hbm_to_vmem [thread:$0]  %s489, 256, %s491, %s479, 128, 128, 8
        $region64: #{tpu_custom_call.1} parent=55 // pred_fallthru
          _
        // Predicated region
        $region65: #{tpu_custom_call.1} parent=55 // pred_check
          %p497 = pneg %p118
        $region66: #{tpu_custom_call.1} parent=55 // pred_check_branch
          %499 = sbr.rel (%p497) target = $region68
        $region67: #{tpu_custom_call.1} parent=55 // pred_region
          %s500 = sand.u32 %s30, 1
          %s501 = scalar_lea.sflag [#allocation9], %s500
          %s502 = sand.u32 %s108, 1
          %s503 = smul.addr %s502, 4
          %s504 = scalar_lea.vmem [#allocation10], %s503
          %506 = vsyncadd %s501, 0
          %s507 = sadd.s32 %s38, %s37
          %s508 = smul.addr %s507, 4
          %s509 = scalar_lea.hbm %s2, %s508
          %s511 = sshll.u32 %s509, 4
          %s512 = int_to_ptr.hbm [resolvable:$true] %s511
          %s513 = sshll.u32 %s504, 4
          %s514 = int_to_ptr.vmem [resolvable:$true] %s513
          %516 = dma.hbm_to_vmem [thread:$0]  %s512, 64, %s514, %s501
        $region68: #{tpu_custom_call.1} parent=55 // pred_fallthru
          _
      $region56: #{tpu_custom_call.1} parent=5 // pred_fallthru
        _
      %p517 = scmp.le.s32.totalorder 1, %s30
      %p518 = scmp.lt.s32.totalorder %s30, 3
      %p519 = pnand %p517, %p518
      %p520 = pneg %p519
      // Predicated region
      $region69: #{tpu_custom_call.1} parent=5 // pred_check
        _
      $region70: #{tpu_custom_call.1} parent=5 // pred_check_branch
        %522 = sbr.rel (%p519) target = $region72
      $region71: #{tpu_custom_call.1} parent=5 // pred_region
        %s523 = ssub.s32 %s30, 1
        %s524 = sand.u32 %s57, 1
        %s525 = scalar_lea.sflag [#allocation6], %s524
        %s526 = sand.u32 %s57, 1
        %s527 = smul.addr %s526, 8
        %s528 = scalar_lea.vmem [#allocation5], %s527
        // Predicated region
        $region73: #{tpu_custom_call.1} parent=71 // pred_check
          %p529 = pneg %p70
        $region74: #{tpu_custom_call.1} parent=71 // pred_check_branch
          %531 = sbr.rel (%p529) target = $region76
        $region75: #{tpu_custom_call.1} parent=71 // pred_region
          %533 = dma.done %s525, 128
        $region76: #{tpu_custom_call.1} parent=71 // pred_fallthru
          _
        %s534 = sand.u32 %s35, 1
        %s535 = scalar_lea.sflag [#allocation9], %s534
        %s536 = sand.u32 %s83, 1
        %s537 = smul.addr %s536, 16
        %s538 = scalar_lea.vmem [#allocation8], %s537
        // Predicated region
        $region77: #{tpu_custom_call.1} parent=71 // pred_check
          %p539 = pneg %p96
        $region78: #{tpu_custom_call.1} parent=71 // pred_check_branch
          %541 = sbr.rel (%p539) target = $region80
        $region79: #{tpu_custom_call.1} parent=71 // pred_region
          %543 = dma.done %s535, 256
        $region80: #{tpu_custom_call.1} parent=71 // pred_fallthru
          _
        %s544 = sand.u32 %s35, 1
        %s545 = scalar_lea.sflag [#allocation9], %s544
        %s546 = sand.u32 %s111, 1
        %s547 = smul.addr %s546, 4
        %s548 = scalar_lea.vmem [#allocation10], %s547
        // Predicated region
        $region81: #{tpu_custom_call.1} parent=71 // pred_check
          %p549 = pneg %p124
        $region82: #{tpu_custom_call.1} parent=71 // pred_check_branch
          %551 = sbr.rel (%p549) target = $region84
        $region83: #{tpu_custom_call.1} parent=71 // pred_region
          %553 = dma.done %s545, 64
        $region84: #{tpu_custom_call.1} parent=71 // pred_fallthru
          _
        // Predicated region
        $region85: #{tpu_custom_call.1} parent=71 // pred_check
          %p554 = pneg %p271
        $region86: #{tpu_custom_call.1} parent=71 // pred_check_branch
          %556 = sbr.rel (%p554) target = $region88
        $region87: #{tpu_custom_call.1} parent=71 // pred_region
          %558 = dma.done [#allocation12], 2048
        $region88: #{tpu_custom_call.1} parent=71 // pred_fallthru
          _
        // Predicated region
        $region89: #{tpu_custom_call.1} parent=71 // pred_check
          %p559 = pneg %p292
        $region90: #{tpu_custom_call.1} parent=71 // pred_check_branch
          %561 = sbr.rel (%p559) target = $region92
        $region91: #{tpu_custom_call.1} parent=71 // pred_region
          %563 = dma.done [#allocation12], 2560
        $region92: #{tpu_custom_call.1} parent=71 // pred_fallthru
          _
        // Predicated region
        $region93: #{tpu_custom_call.1} parent=71 // pred_check
          %p564 = pneg %p313
        $region94: #{tpu_custom_call.1} parent=71 // pred_check_branch
          %566 = sbr.rel (%p564) target = $region96
        $region95: #{tpu_custom_call.1} parent=71 // pred_region
          %568 = dma.done [#allocation15], 2560
        $region96: #{tpu_custom_call.1} parent=71 // pred_fallthru
          _
        // Predicated region
        $region97: #{tpu_custom_call.1} parent=71 // pred_check
          %p569 = pneg %p334
        $region98: #{tpu_custom_call.1} parent=71 // pred_check_branch
          %571 = sbr.rel (%p569) target = $region100
        $region99: #{tpu_custom_call.1} parent=71 // pred_region
          %573 = dma.done [#allocation15], 4096
        $region100: #{tpu_custom_call.1} parent=71 // pred_fallthru
          _
        %s574 = sand.u32 %s57, 1
        %s575 = scalar_lea.sflag [#allocation6], %s574
        %s576 = sand.u32 %s57, 1
        %s577 = smul.addr %s576, 8
        %s578 = scalar_lea.vmem [#allocation5], %s577
        %p579 = pneg %p70
        %p580 = pneg %p67
        %s581 = sand.u32 %s35, 1
        %s582 = scalar_lea.sflag [#allocation9], %s581
        %s583 = sand.u32 %s83, 1
        %s584 = smul.addr %s583, 16
        %s585 = scalar_lea.vmem [#allocation8], %s584
        %p586 = pneg %p96
        %p587 = pneg %p93
        %s588 = sand.u32 %s35, 1
        %s589 = scalar_lea.sflag [#allocation9], %s588
        %s590 = sand.u32 %s111, 1
        %s591 = smul.addr %s590, 4
        %s592 = scalar_lea.vmem [#allocation10], %s591
        %p593 = pneg %p124
        %p594 = pneg %p121
        %p595 = pneg %p145
        %p596 = pneg %p142
        %p597 = pneg %p166
        %p598 = pneg %p163
        %p599 = pneg %p187
        %p600 = pneg %p184
        %p601 = pneg %p208
        %p602 = pneg %p205
        %p603 = pneg %p229
        %p604 = pneg %p226
        %p605 = pneg %p250
        %p606 = pneg %p247
        %p607 = pneg %p271
        %p608 = pneg %p268
        %p609 = pneg %p292
        %p610 = pneg %p289
        %p611 = pneg %p313
        %p612 = pneg %p310
        %p613 = pneg %p334
        %p614 = pneg %p331
        %p615 = pneg %p362
        %p616 = pneg %p359
        %s617 = sand.u32 %s349, 1
        %s618 = scalar_lea.sflag [#allocation7], %s617
        %s619 = sand.u32 %s349, 1
        %s620 = smul.addr %s619, 8
        %s621 = scalar_lea.vmem [#allocation17], %s620
        %p623 = scmp.eq.s32.totalorder %s40, 0
        // Predicated region
        $region101: #{tpu_custom_call.1} parent=71 // pred_check
          %p624 = pneg %p623
        $region102: #{tpu_custom_call.1} parent=71 // pred_check_branch
          %626 = sbr.rel (%p624) target = $region104
        $region103: #{tpu_custom_call.1} parent=71 // pred_region
          %v627 = vld [vmem:[%s538] sm:$0xff]
          %v628 = vld [vmem:[%s538 + $0x8] sm:$0xff]
          %vm629 = vcmask 654336
          %v630 = vsel %vm629, %v627, 0.0
          %631 = vadd.xlane.f32.xlu0 %v630
          %v632 = vpop.xlane.xlu0 %631
          %v633 = vsel %vm629, %v628, 0.0
          %634 = vadd.xlane.f32.xlu0 %v633
          %v635 = vpop.xlane.xlu0 %634
          %v636 = vrcp.pop 80.0
          %v637 = vmul.f32 80.0, %v636
          %v638 = vsub.f32 1.0, %v637
          %v639 = vmul.f32 %v636, %v638
          %v640 = vadd.f32 %v636, %v639
          %vm641 = vweird.f32 %v636
          %v642 = vsel %vm641, %v636, %v640
          %v643 = vmul.f32 %v632, %v642
          %v644 = vmul.f32 %v635, %v642
          %v645 = vsub.f32 %v627, %v643
          %v646 = vsub.f32 %v628, %v644
          %v647 = vmul.f32 %v645, %v645
          %v648 = vmul.f32 %v646, %v646
          %v649 = vsel %vm629, %v647, 0.0
          %650 = vadd.xlane.f32.xlu0 %v649
          %v651 = vpop.xlane.xlu0 %650
          %v652 = vsel %vm629, %v648, 0.0
          %653 = vadd.xlane.f32.xlu0 %v652
          %v654 = vpop.xlane.xlu0 %653
          %v655 = vmul.f32 %v651, %v642
          %v656 = vmul.f32 %v654, %v642
          %v657 = vadd.f32 %v655, 1e-05
          %v658 = vadd.f32 %v656, 1e-05
          %v659 = vrsqrt.pop %v657
          %v660 = vmul.f32 %v659, %v657
          %v661 = vmul.f32 %v660, %v659
          %v662 = vmul.f32 0.5, %v661
          %v663 = vsub.f32 1.5, %v662
          %v664 = vmul.f32 %v659, %v663
          %vm665 = vweird.f32 %v657
          %vm666 = vweird.f32 %v659
          %vm667 = vmor %vm665, %vm666
          %v668 = vsel %vm667, %v659, %v664
          %v669 = vrsqrt.pop %v658
          %v670 = vmul.f32 %v669, %v658
          %v671 = vmul.f32 %v670, %v669
          %v672 = vmul.f32 0.5, %v671
          %v673 = vsub.f32 1.5, %v672
          %v674 = vmul.f32 %v669, %v673
          %vm675 = vweird.f32 %v658
          %vm676 = vweird.f32 %v669
          %vm677 = vmor %vm675, %vm676
          %v678 = vsel %vm677, %v669, %v674
          %v679 = vmul.f32 %v645, %v668
          %v680 = vmul.f32 %v646, %v678
          %v681 = vld [vmem:[%s5] sm:$0x1]
          %v683 = vperm.slane %v681, 0
          %v685 = vmul.f32 %v679, %v683
          %v686 = vmul.f32 %v680, %v683
          %v687 = vld [vmem:[%s6] sm:$0x1]
          %v689 = vperm.slane %v687, 0
          %v691 = vadd.f32 %v685, %v689
          %v692 = vadd.f32 %v686, %v689
          %v693 = vpack.c.bf16 %v692, %v691
          %v694 = vld [vmem:[%s7] sm:$0x1]
          %v696 = vperm.slane %v694, 0
          %v698 = vmul.f32 %v679, %v696
          %v699 = vmul.f32 %v680, %v696
          %v700 = vld [vmem:[%s8] sm:$0x1]
          %v702 = vperm.slane %v700, 0
          %v704 = vadd.f32 %v698, %v702
          %v705 = vadd.f32 %v699, %v702
          %v706 = vpack.c.bf16 %v705, %v704
          %v707 = vld [vmem:[#allocation13] sm:$0xff]
          %v708 = vld [vmem:[#allocation13 + $0x8] sm:$0xff]
          %v709 = vld [vmem:[#allocation13 + $0x10] sm:$0xff]
          %v710 = vld [vmem:[#allocation13 + $0x18] sm:$0xff]
          %v711 = vld [vmem:[#allocation13 + $0x20] sm:$0xff]
          %v712 = vld [vmem:[#allocation13 + $0x28] sm:$0xff]
          %v713 = vld [vmem:[#allocation13 + $0x30] sm:$0xff]
          %v714 = vld [vmem:[#allocation13 + $0x38] sm:$0xff]
          %v715 = vld [vmem:[#allocation13 + $0x40] sm:$0xff]
          %v716 = vld [vmem:[#allocation13 + $0x48] sm:$0xff]
          %v717 = vld [vmem:[#allocation13 + $0x50] sm:$0xff]
          %v718 = vld [vmem:[#allocation13 + $0x58] sm:$0xff]
          %v719 = vld [vmem:[#allocation13 + $0x60] sm:$0xff]
          %v720 = vld [vmem:[#allocation13 + $0x68] sm:$0xff]
          %v721 = vld [vmem:[#allocation13 + $0x70] sm:$0xff]
          %v722 = vld [vmem:[#allocation13 + $0x78] sm:$0xff]
          %v723 = vld [vmem:[#allocation13 + $0x80] sm:$0xff]
          %v724 = vld [vmem:[#allocation13 + $0x88] sm:$0xff]
          %v725 = vld [vmem:[#allocation13 + $0x90] sm:$0xff]
          %v726 = vld [vmem:[#allocation13 + $0x98] sm:$0xff]
          %v747 = vunpack.c.l.b16 %v707
          %v748 = vunpack.c.h.b16 %v707
          %v749 = vunpack.c.l.b16 %v708
          %v750 = vunpack.c.h.b16 %v708
          %v751 = vunpack.c.l.b16 %v709
          %v752 = vunpack.c.h.b16 %v709
          %v753 = vunpack.c.l.b16 %v710
          %v754 = vunpack.c.h.b16 %v710
          %v755 = vunpack.c.l.b16 %v711
          %v756 = vunpack.c.h.b16 %v711
          %v757 = vunpack.c.l.b16 %v712
          %v758 = vunpack.c.h.b16 %v712
          %v759 = vunpack.c.l.b16 %v713
          %v760 = vunpack.c.h.b16 %v713
          %v761 = vunpack.c.l.b16 %v714
          %v762 = vunpack.c.h.b16 %v714
          %v763 = vunpack.c.l.b16 %v715
          %v764 = vunpack.c.h.b16 %v715
          %v765 = vunpack.c.l.b16 %v716
          %v766 = vunpack.c.h.b16 %v716
          %v767 = vunpack.c.l.b16 %v717
          %v768 = vunpack.c.h.b16 %v717
          %v769 = vunpack.c.l.b16 %v718
          %v770 = vunpack.c.h.b16 %v718
          %v771 = vunpack.c.l.b16 %v719
          %v772 = vunpack.c.h.b16 %v719
          %v773 = vunpack.c.l.b16 %v720
          %v774 = vunpack.c.h.b16 %v720
          %v775 = vunpack.c.l.b16 %v721
          %v776 = vunpack.c.h.b16 %v721
          %v777 = vunpack.c.l.b16 %v722
          %v778 = vunpack.c.h.b16 %v722
          %v779 = vunpack.c.l.b16 %v723
          %v780 = vunpack.c.h.b16 %v723
          %v781 = vunpack.c.l.b16 %v724
          %v782 = vunpack.c.h.b16 %v724
          %v783 = vunpack.c.l.b16 %v725
          %v784 = vunpack.c.h.b16 %v725
          %v785 = vunpack.c.l.b16 %v726
          %v786 = vunpack.c.h.b16 %v726
          %v787 = vpack.c.b16 %v751, %v747
          %v788 = vpack.c.b16 %v752, %v748
          %v789 = vpack.c.b16 %v753, %v749
          %v790 = vpack.c.b16 %v754, %v750
          %v791 = vpack.c.b16 %v759, %v755
          %v792 = vpack.c.b16 %v760, %v756
          %v793 = vpack.c.b16 %v761, %v757
          %v794 = vpack.c.b16 %v762, %v758
          %v795 = vpack.c.b16 %v767, %v763
          %v796 = vpack.c.b16 %v768, %v764
          %v797 = vpack.c.b16 %v769, %v765
          %v798 = vpack.c.b16 %v770, %v766
          %v799 = vpack.c.b16 %v775, %v771
          %v800 = vpack.c.b16 %v776, %v772
          %v801 = vpack.c.b16 %v777, %v773
          %v802 = vpack.c.b16 %v778, %v774
          %v803 = vpack.c.b16 %v783, %v779
          %v804 = vpack.c.b16 %v784, %v780
          %v805 = vpack.c.b16 %v785, %v781
          %v806 = vpack.c.b16 %v786, %v782
          %v828 = vsel %vm629, %v693, 0
          %830 = vmatpush.bf16.msra.mxu0 0
          %831 = vmatpush.bf16.msra.mxu0 0
          %832 = vmatpush.bf16.msra.mxu0 0
          %833 = vmatpush.bf16.msra.mxu0 %v803
          %834 = vmatpush.bf16.msra.mxu0 %v799
          %835 = vmatpush.bf16.msra.mxu0 %v795
          %836 = vmatpush.bf16.msra.mxu0 %v791
          %837 = vmatpush.bf16.msra.mxu0 %v787
          %838 = vmatmul.bf16.gmra.mxu0 %v828
          %v839 = vpop.f32.mrf.mxu0
          %v840 = vadd.f32 0.0, %v839
          %v841 = vpop.f32.mrf.mxu0
          %v842 = vadd.f32 0.0, %v841
          %843 = vdwg.mxu0
          %844 = vmatpush.bf16.msra.mxu0 0
          %845 = vmatpush.bf16.msra.mxu0 0
          %846 = vmatpush.bf16.msra.mxu0 0
          %847 = vmatpush.bf16.msra.mxu0 %v804
          %848 = vmatpush.bf16.msra.mxu0 %v800
          %849 = vmatpush.bf16.msra.mxu0 %v796
          %850 = vmatpush.bf16.msra.mxu0 %v792
          %851 = vmatpush.bf16.msra.mxu0 %v788
          %852 = vmatmul.bf16.gmra.mxu0 %v828
          %v853 = vpop.f32.mrf.mxu0
          %v854 = vadd.f32 0.0, %v853
          %v855 = vpop.f32.mrf.mxu0
          %v856 = vadd.f32 0.0, %v855
          %857 = vdwg.mxu0
          %858 = vmatpush.bf16.msra.mxu0 0
          %859 = vmatpush.bf16.msra.mxu0 0
          %860 = vmatpush.bf16.msra.mxu0 0
          %861 = vmatpush.bf16.msra.mxu0 %v805
          %862 = vmatpush.bf16.msra.mxu0 %v801
          %863 = vmatpush.bf16.msra.mxu0 %v797
          %864 = vmatpush.bf16.msra.mxu0 %v793
          %865 = vmatpush.bf16.msra.mxu0 %v789
          %866 = vmatmul.bf16.gmra.mxu0 %v828
          %v867 = vpop.f32.mrf.mxu0
          %v868 = vadd.f32 0.0, %v867
          %v869 = vpop.f32.mrf.mxu0
          %v870 = vadd.f32 0.0, %v869
          %871 = vdwg.mxu0
          %872 = vmatpush.bf16.msra.mxu0 0
          %873 = vmatpush.bf16.msra.mxu0 0
          %874 = vmatpush.bf16.msra.mxu0 0
          %875 = vmatpush.bf16.msra.mxu0 %v806
          %876 = vmatpush.bf16.msra.mxu0 %v802
          %877 = vmatpush.bf16.msra.mxu0 %v798
          %878 = vmatpush.bf16.msra.mxu0 %v794
          %879 = vmatpush.bf16.msra.mxu0 %v790
          %880 = vmatmul.bf16.gmra.mxu0 %v828
          %v881 = vpop.f32.mrf.mxu0
          %v882 = vadd.f32 0.0, %v881
          %v883 = vpop.f32.mrf.mxu0
          %v884 = vadd.f32 0.0, %v883
          %885 = vdwg.mxu0
          %v886 = vpack.c.bf16 %v854, %v840
          %v887 = vpack.c.bf16 %v882, %v868
          %v888 = vpack.c.bf16 %v856, %v842
          %v889 = vpack.c.bf16 %v884, %v870
          %890 = vst [vmem:[#allocation2] sm:$0xff] %v886
          %891 = vst [vmem:[#allocation2 + $0x8] sm:$0xff] %v887
          %892 = vst [vmem:[#allocation2 + $0x10] sm:$0xff] %v888
          %893 = vst [vmem:[#allocation2 + $0x18] sm:$0xff] %v889
          %v894 = vld [vmem:[#allocation14] sm:$0xff]
          %v895 = vld [vmem:[#allocation14 + $0x8] sm:$0xff]
          %v896 = vld [vmem:[#allocation14 + $0x10] sm:$0xff]
          %v897 = vld [vmem:[#allocation14 + $0x18] sm:$0xff]
          %v898 = vld [vmem:[#allocation14 + $0x20] sm:$0xff]
          %v899 = vld [vmem:[#allocation14 + $0x28] sm:$0xff]
          %v900 = vld [vmem:[#allocation14 + $0x30] sm:$0xff]
          %v901 = vld [vmem:[#allocation14 + $0x38] sm:$0xff]
          %v902 = vld [vmem:[#allocation14 + $0x40] sm:$0xff]
          %v903 = vld [vmem:[#allocation14 + $0x48] sm:$0xff]
          %v904 = vld [vmem:[#allocation14 + $0x50] sm:$0xff]
          %v905 = vld [vmem:[#allocation14 + $0x58] sm:$0xff]
          %v906 = vld [vmem:[#allocation14 + $0x60] sm:$0xff]
          %v907 = vld [vmem:[#allocation14 + $0x68] sm:$0xff]
          %v908 = vld [vmem:[#allocation14 + $0x70] sm:$0xff]
          %v909 = vld [vmem:[#allocation14 + $0x78] sm:$0xff]
          %v910 = vld [vmem:[#allocation14 + $0x80] sm:$0xff]
          %v911 = vld [vmem:[#allocation14 + $0x88] sm:$0xff]
          %v912 = vld [vmem:[#allocation14 + $0x90] sm:$0xff]
          %v913 = vld [vmem:[#allocation14 + $0x98] sm:$0xff]
          %v934 = vunpack.c.l.b16 %v894
          %v935 = vunpack.c.h.b16 %v894
          %v936 = vunpack.c.l.b16 %v895
          %v937 = vunpack.c.h.b16 %v895
          %v938 = vunpack.c.l.b16 %v896
          %v939 = vunpack.c.h.b16 %v896
          %v940 = vunpack.c.l.b16 %v897
          %v941 = vunpack.c.h.b16 %v897
          %v942 = vunpack.c.l.b16 %v898
          %v943 = vunpack.c.h.b16 %v898
          %v944 = vunpack.c.l.b16 %v899
          %v945 = vunpack.c.h.b16 %v899
          %v946 = vunpack.c.l.b16 %v900
          %v947 = vunpack.c.h.b16 %v900
          %v948 = vunpack.c.l.b16 %v901
          %v949 = vunpack.c.h.b16 %v901
          %v950 = vunpack.c.l.b16 %v902
          %v951 = vunpack.c.h.b16 %v902
          %v952 = vunpack.c.l.b16 %v903
          %v953 = vunpack.c.h.b16 %v903
          %v954 = vunpack.c.l.b16 %v904
          %v955 = vunpack.c.h.b16 %v904
          %v956 = vunpack.c.l.b16 %v905
          %v957 = vunpack.c.h.b16 %v905
          %v958 = vunpack.c.l.b16 %v906
          %v959 = vunpack.c.h.b16 %v906
          %v960 = vunpack.c.l.b16 %v907
          %v961 = vunpack.c.h.b16 %v907
          %v962 = vunpack.c.l.b16 %v908
          %v963 = vunpack.c.h.b16 %v908
          %v964 = vunpack.c.l.b16 %v909
          %v965 = vunpack.c.h.b16 %v909
          %v966 = vunpack.c.l.b16 %v910
          %v967 = vunpack.c.h.b16 %v910
          %v968 = vunpack.c.l.b16 %v911
          %v969 = vunpack.c.h.b16 %v911
          %v970 = vunpack.c.l.b16 %v912
          %v971 = vunpack.c.h.b16 %v912
          %v972 = vunpack.c.l.b16 %v913
          %v973 = vunpack.c.h.b16 %v913
          %v974 = vpack.c.b16 %v938, %v934
          %v975 = vpack.c.b16 %v939, %v935
          %v976 = vpack.c.b16 %v940, %v936
          %v977 = vpack.c.b16 %v941, %v937
          %v978 = vpack.c.b16 %v946, %v942
          %v979 = vpack.c.b16 %v947, %v943
          %v980 = vpack.c.b16 %v948, %v944
          %v981 = vpack.c.b16 %v949, %v945
          %v982 = vpack.c.b16 %v954, %v950
          %v983 = vpack.c.b16 %v955, %v951
          %v984 = vpack.c.b16 %v956, %v952
          %v985 = vpack.c.b16 %v957, %v953
          %v986 = vpack.c.b16 %v962, %v958
          %v987 = vpack.c.b16 %v963, %v959
          %v988 = vpack.c.b16 %v964, %v960
          %v989 = vpack.c.b16 %v965, %v961
          %v990 = vpack.c.b16 %v970, %v966
          %v991 = vpack.c.b16 %v971, %v967
          %v992 = vpack.c.b16 %v972, %v968
          %v993 = vpack.c.b16 %v973, %v969
          %v1015 = vsel %vm629, %v706, 0
          %1017 = vmatpush.bf16.msra.mxu0 0
          %1018 = vmatpush.bf16.msra.mxu0 0
          %1019 = vmatpush.bf16.msra.mxu0 0
          %1020 = vmatpush.bf16.msra.mxu0 %v990
          %1021 = vmatpush.bf16.msra.mxu0 %v986
          %1022 = vmatpush.bf16.msra.mxu0 %v982
          %1023 = vmatpush.bf16.msra.mxu0 %v978
          %1024 = vmatpush.bf16.msra.mxu0 %v974
          %1025 = vmatmul.bf16.gmra.mxu0 %v1015
          %v1026 = vpop.f32.mrf.mxu0
          %v1027 = vadd.f32 0.0, %v1026
          %v1028 = vpop.f32.mrf.mxu0
          %v1029 = vadd.f32 0.0, %v1028
          %1030 = vdwg.mxu0
          %1031 = vmatpush.bf16.msra.mxu0 0
          %1032 = vmatpush.bf16.msra.mxu0 0
          %1033 = vmatpush.bf16.msra.mxu0 0
          %1034 = vmatpush.bf16.msra.mxu0 %v991
          %1035 = vmatpush.bf16.msra.mxu0 %v987
          %1036 = vmatpush.bf16.msra.mxu0 %v983
          %1037 = vmatpush.bf16.msra.mxu0 %v979
          %1038 = vmatpush.bf16.msra.mxu0 %v975
          %1039 = vmatmul.bf16.gmra.mxu0 %v1015
          %v1040 = vpop.f32.mrf.mxu0
          %v1041 = vadd.f32 0.0, %v1040
          %v1042 = vpop.f32.mrf.mxu0
          %v1043 = vadd.f32 0.0, %v1042
          %1044 = vdwg.mxu0
          %1045 = vmatpush.bf16.msra.mxu0 0
          %1046 = vmatpush.bf16.msra.mxu0 0
          %1047 = vmatpush.bf16.msra.mxu0 0
          %1048 = vmatpush.bf16.msra.mxu0 %v992
          %1049 = vmatpush.bf16.msra.mxu0 %v988
          %1050 = vmatpush.bf16.msra.mxu0 %v984
          %1051 = vmatpush.bf16.msra.mxu0 %v980
          %1052 = vmatpush.bf16.msra.mxu0 %v976
          %1053 = vmatmul.bf16.gmra.mxu0 %v1015
          %v1054 = vpop.f32.mrf.mxu0
          %v1055 = vadd.f32 0.0, %v1054
          %v1056 = vpop.f32.mrf.mxu0
          %v1057 = vadd.f32 0.0, %v1056
          %1058 = vdwg.mxu0
          %1059 = vmatpush.bf16.msra.mxu0 0
          %1060 = vmatpush.bf16.msra.mxu0 0
          %1061 = vmatpush.bf16.msra.mxu0 0
          %1062 = vmatpush.bf16.msra.mxu0 %v993
          %1063 = vmatpush.bf16.msra.mxu0 %v989
          %1064 = vmatpush.bf16.msra.mxu0 %v985
          %1065 = vmatpush.bf16.msra.mxu0 %v981
          %1066 = vmatpush.bf16.msra.mxu0 %v977
          %1067 = vmatmul.bf16.gmra.mxu0 %v1015
          %v1068 = vpop.f32.mrf.mxu0
          %v1069 = vadd.f32 0.0, %v1068
          %v1070 = vpop.f32.mrf.mxu0
          %v1071 = vadd.f32 0.0, %v1070
          %1072 = vdwg.mxu0
          %v1073 = vpack.c.bf16 %v1041, %v1027
          %v1074 = vpack.c.bf16 %v1069, %v1055
          %v1075 = vpack.c.bf16 %v1043, %v1029
          %v1076 = vpack.c.bf16 %v1071, %v1057
          %1077 = vst [vmem:[#allocation3] sm:$0xff] %v1073
          %1078 = vst [vmem:[#allocation3 + $0x8] sm:$0xff] %v1074
          %1079 = vst [vmem:[#allocation3 + $0x10] sm:$0xff] %v1075
          %1080 = vst [vmem:[#allocation3 + $0x18] sm:$0xff] %v1076
        $region104: #{tpu_custom_call.1} parent=71 // pred_fallthru
          _
        %v1081 = vld [vmem:[%s528] sm:$0xff]
        %vm1082 = vcmask 523264
        %v1083 = vsel %vm1082, %v1081, 0.0
        %1084 = vadd.xlane.f32.xlu0 %v1083
        %v1085 = vpop.xlane.xlu0 %1084
        %v1086 = vrcp.pop 64.0
        %v1087 = vmul.f32 64.0, %v1086
        %v1088 = vsub.f32 1.0, %v1087
        %v1089 = vmul.f32 %v1086, %v1088
        %v1090 = vadd.f32 %v1086, %v1089
        %vm1091 = vweird.f32 %v1086
        %v1092 = vsel %vm1091, %v1086, %v1090
        %v1093 = vmul.f32 %v1085, %v1092
        %v1094 = vsub.f32 %v1081, %v1093
        %v1095 = vmul.f32 %v1094, %v1094
        %v1096 = vsel %vm1082, %v1095, 0.0
        %1097 = vadd.xlane.f32.xlu0 %v1096
        %v1098 = vpop.xlane.xlu0 %1097
        %v1099 = vmul.f32 %v1098, %v1092
        %v1100 = vadd.f32 %v1099, 1e-05
        %v1101 = vrsqrt.pop %v1100
        %v1102 = vmul.f32 %v1101, %v1100
        %v1103 = vmul.f32 %v1102, %v1101
        %v1104 = vmul.f32 0.5, %v1103
        %v1105 = vsub.f32 1.5, %v1104
        %v1106 = vmul.f32 %v1101, %v1105
        %vm1107 = vweird.f32 %v1100
        %vm1108 = vweird.f32 %v1101
        %vm1109 = vmor %vm1107, %vm1108
        %v1110 = vsel %vm1109, %v1101, %v1106
        %v1111 = vmul.f32 %v1094, %v1110
        %v1112 = vld [vmem:[%s3] sm:$0x1]
        %v1114 = vperm.slane %v1112, 0
        %v1116 = vmul.f32 %v1111, %v1114
        %v1117 = vld [vmem:[%s4] sm:$0x1]
        %v1119 = vperm.slane %v1117, 0
        %v1121 = vadd.f32 %v1116, %v1119
        %v1122 = vmul.f32 %v1121, 0.088388346
        %v1123 = vpack.c.bf16 %v1122, %v1122
        %v1124 = vld [vmem:[#allocation11] sm:$0xff]
        %v1125 = vld [vmem:[#allocation11 + $0x8] sm:$0xff]
        %v1126 = vld [vmem:[#allocation11 + $0x10] sm:$0xff]
        %v1127 = vld [vmem:[#allocation11 + $0x18] sm:$0xff]
        %v1128 = vld [vmem:[#allocation11 + $0x20] sm:$0xff]
        %v1129 = vld [vmem:[#allocation11 + $0x28] sm:$0xff]
        %v1130 = vld [vmem:[#allocation11 + $0x30] sm:$0xff]
        %v1131 = vld [vmem:[#allocation11 + $0x38] sm:$0xff]
        %v1132 = vld [vmem:[#allocation11 + $0x40] sm:$0xff]
        %v1133 = vld [vmem:[#allocation11 + $0x48] sm:$0xff]
        %v1134 = vld [vmem:[#allocation11 + $0x50] sm:$0xff]
        %v1135 = vld [vmem:[#allocation11 + $0x58] sm:$0xff]
        %v1136 = vld [vmem:[#allocation11 + $0x60] sm:$0xff]
        %v1137 = vld [vmem:[#allocation11 + $0x68] sm:$0xff]
        %v1138 = vld [vmem:[#allocation11 + $0x70] sm:$0xff]
        %v1139 = vld [vmem:[#allocation11 + $0x78] sm:$0xff]
        %v1156 = vunpack.c.l.b16 %v1124
        %v1157 = vunpack.c.h.b16 %v1124
        %v1158 = vunpack.c.l.b16 %v1125
        %v1159 = vunpack.c.h.b16 %v1125
        %v1160 = vunpack.c.l.b16 %v1126
        %v1161 = vunpack.c.h.b16 %v1126
        %v1162 = vunpack.c.l.b16 %v1127
        %v1163 = vunpack.c.h.b16 %v1127
        %v1164 = vunpack.c.l.b16 %v1128
        %v1165 = vunpack.c.h.b16 %v1128
        %v1166 = vunpack.c.l.b16 %v1129
        %v1167 = vunpack.c.h.b16 %v1129
        %v1168 = vunpack.c.l.b16 %v1130
        %v1169 = vunpack.c.h.b16 %v1130
        %v1170 = vunpack.c.l.b16 %v1131
        %v1171 = vunpack.c.h.b16 %v1131
        %v1172 = vunpack.c.l.b16 %v1132
        %v1173 = vunpack.c.h.b16 %v1132
        %v1174 = vunpack.c.l.b16 %v1133
        %v1175 = vunpack.c.h.b16 %v1133
        %v1176 = vunpack.c.l.b16 %v1134
        %v1177 = vunpack.c.h.b16 %v1134
        %v1178 = vunpack.c.l.b16 %v1135
        %v1179 = vunpack.c.h.b16 %v1135
        %v1180 = vunpack.c.l.b16 %v1136
        %v1181 = vunpack.c.h.b16 %v1136
        %v1182 = vunpack.c.l.b16 %v1137
        %v1183 = vunpack.c.h.b16 %v1137
        %v1184 = vunpack.c.l.b16 %v1138
        %v1185 = vunpack.c.h.b16 %v1138
        %v1186 = vunpack.c.l.b16 %v1139
        %v1187 = vunpack.c.h.b16 %v1139
        %v1188 = vpack.c.b16 %v1160, %v1156
        %v1189 = vpack.c.b16 %v1161, %v1157
        %v1190 = vpack.c.b16 %v1162, %v1158
        %v1191 = vpack.c.b16 %v1163, %v1159
        %v1192 = vpack.c.b16 %v1168, %v1164
        %v1193 = vpack.c.b16 %v1169, %v1165
        %v1194 = vpack.c.b16 %v1170, %v1166
        %v1195 = vpack.c.b16 %v1171, %v1167
        %v1196 = vpack.c.b16 %v1176, %v1172
        %v1197 = vpack.c.b16 %v1177, %v1173
        %v1198 = vpack.c.b16 %v1178, %v1174
        %v1199 = vpack.c.b16 %v1179, %v1175
        %v1200 = vpack.c.b16 %v1184, %v1180
        %v1201 = vpack.c.b16 %v1185, %v1181
        %v1202 = vpack.c.b16 %v1186, %v1182
        %v1203 = vpack.c.b16 %v1187, %v1183
        %v1221 = vsel %vm1082, %v1123, 0
        %1223 = vmatpush.bf16.msra.mxu0 0
        %1224 = vmatpush.bf16.msra.mxu0 0
        %1225 = vmatpush.bf16.msra.mxu0 0
        %1226 = vmatpush.bf16.msra.mxu0 0
        %1227 = vmatpush.bf16.msra.mxu0 %v1200
        %1228 = vmatpush.bf16.msra.mxu0 %v1196
        %1229 = vmatpush.bf16.msra.mxu0 %v1192
        %1230 = vmatpush.bf16.msra.mxu0 %v1188
        %1231 = vmatmul.bf16.gmra.mxu0 %v1221
        %v1232 = vpop.f32.mrf.mxu0
        %v1233 = vadd.f32 0.0, %v1232
        %v1234 = vpop.f32.mrf.mxu0
        %1235 = vdwg.mxu0
        %1236 = vmatpush.bf16.msra.mxu0 0
        %1237 = vmatpush.bf16.msra.mxu0 0
        %1238 = vmatpush.bf16.msra.mxu0 0
        %1239 = vmatpush.bf16.msra.mxu0 0
        %1240 = vmatpush.bf16.msra.mxu0 %v1201
        %1241 = vmatpush.bf16.msra.mxu0 %v1197
        %1242 = vmatpush.bf16.msra.mxu0 %v1193
        %1243 = vmatpush.bf16.msra.mxu0 %v1189
        %1244 = vmatmul.bf16.gmra.mxu0 %v1221
        %v1245 = vpop.f32.mrf.mxu0
        %v1246 = vadd.f32 0.0, %v1245
        %v1247 = vpop.f32.mrf.mxu0
        %1248 = vdwg.mxu0
        %1249 = vmatpush.bf16.msra.mxu0 0
        %1250 = vmatpush.bf16.msra.mxu0 0
        %1251 = vmatpush.bf16.msra.mxu0 0
        %1252 = vmatpush.bf16.msra.mxu0 0
        %1253 = vmatpush.bf16.msra.mxu0 %v1202
        %1254 = vmatpush.bf16.msra.mxu0 %v1198
        %1255 = vmatpush.bf16.msra.mxu0 %v1194
        %1256 = vmatpush.bf16.msra.mxu0 %v1190
        %1257 = vmatmul.bf16.gmra.mxu0 %v1221
        %v1258 = vpop.f32.mrf.mxu0
        %v1259 = vadd.f32 0.0, %v1258
        %v1260 = vpop.f32.mrf.mxu0
        %1261 = vdwg.mxu0
        %1262 = vmatpush.bf16.msra.mxu0 0
        %1263 = vmatpush.bf16.msra.mxu0 0
        %1264 = vmatpush.bf16.msra.mxu0 0
        %1265 = vmatpush.bf16.msra.mxu0 0
        %1266 = vmatpush.bf16.msra.mxu0 %v1203
        %1267 = vmatpush.bf16.msra.mxu0 %v1199
        %1268 = vmatpush.bf16.msra.mxu0 %v1195
        %1269 = vmatpush.bf16.msra.mxu0 %v1191
        %1270 = vmatmul.bf16.gmra.mxu0 %v1221
        %v1271 = vpop.f32.mrf.mxu0
        %v1272 = vadd.f32 0.0, %v1271
        %v1273 = vpop.f32.mrf.mxu0
        %1274 = vdwg.mxu0
        %v1275 = vpack.c.bf16 %v1246, %v1233
        %v1276 = vpack.c.bf16 %v1272, %v1259
        %v1277 = vld [vmem:[%s548] sm:$0xf]
        %v1278 = vunpack.c.l.bf16 %v1277
        %v1279 = vld [vmem:[#allocation2] sm:$0xf]
        %v1280 = vld [vmem:[#allocation2 + $0x10] sm:$0xf]
        %v1283 = vunpack.c.l.b16 %v1279
        %v1284 = vunpack.c.l.b16 %v1280
        %v1285 = vpack.c.b16 %v1284, %v1283
        %1287 = vmatpush.bf16.xpose.msra.mxu0 0
        %1288 = vmatpush.bf16.xpose.msra.mxu0 0
        %1289 = vmatpush.bf16.xpose.msra.mxu0 0
        %1290 = vmatpush.bf16.xpose.msra.mxu0 0
        %1291 = vmatpush.bf16.xpose.msra.mxu0 0
        %1292 = vmatpush.bf16.xpose.msra.mxu0 0
        %1293 = vmatpush.bf16.xpose.msra.mxu0 0
        %1294 = vmatpush.bf16.xpose.msra.mxu0 %v1285
        %1295 = vmatmul.bf16.gmra.mxu0 %v1275
        %v1296 = vpop.f32.mrf.mxu0
        %v1297 = vadd.f32 %v1278, %v1296
        %v1298 = vpop.f32.mrf.mxu0
        %1299 = vdwg.mxu0
        %vm1300 = vcmask 130048
        %v1301 = vsel %vm1300, %v1297, -inf
        %1302 = vmax.xlane.f32.xlu0 %v1301
        %v1303 = vpop.xlane.xlu0 %1302
        %v1304 = vsub.f32 %v1297, %v1303
        %v1305 = vmul.f32 %v1304, 1.442695
        %v1306 = vpow.pop %v1305
        %v1307 = vsel %vm1300, %v1306, 0.0
        %1308 = vadd.xlane.f32.xlu0 %v1307
        %v1309 = vpop.xlane.xlu0 %1308
        %v1310 = vrcp.pop %v1309
        %v1311 = vmul.f32 %v1306, %v1310
        %v1312 = vpack.c.bf16 %v1311, %v1311
        %v1313 = vld [vmem:[#allocation3] sm:$0xf]
        %v1314 = vld [vmem:[#allocation3 + $0x10] sm:$0xf]
        %v1317 = vunpack.c.l.b16 %v1313
        %v1318 = vunpack.c.l.b16 %v1314
        %v1319 = vpack.c.b16 %v1318, %v1317
        %v1322 = vsel %vm1300, %v1312, 0
        %1324 = vmatpush.bf16.msra.mxu0 0
        %1325 = vmatpush.bf16.msra.mxu0 0
        %1326 = vmatpush.bf16.msra.mxu0 0
        %1327 = vmatpush.bf16.msra.mxu0 0
        %1328 = vmatpush.bf16.msra.mxu0 0
        %1329 = vmatpush.bf16.msra.mxu0 0
        %1330 = vmatpush.bf16.msra.mxu0 0
        %1331 = vmatpush.bf16.msra.mxu0 %v1319
        %1332 = vmatmul.bf16.gmra.mxu0 %v1322
        %v1333 = vpop.f32.mrf.mxu0
        %v1334 = vadd.f32 0.0, %v1333
        %v1335 = vpop.f32.mrf.mxu0
        %1336 = vdwg.mxu0
        %v1337 = vpack.c.bf16 %v1334, %v1334
        %1338 = vst [vmem:[#allocation4] sm:$0xf] %v1337
        %v1339 = vld [vmem:[#allocation2 + $0x4] sm:$0xf]
        %v1340 = vld [vmem:[#allocation2 + $0x14] sm:$0xf]
        %v1342 = vunpack.c.h.b16 %v1275
        %v1343 = vpack.c.b16 %v1342, %v1342
        %v1347 = vunpack.c.l.b16 %v1339
        %v1348 = vunpack.c.l.b16 %v1340
        %v1349 = vpack.c.b16 %v1348, %v1347
        %1351 = vmatpush.bf16.xpose.msra.mxu0 0
        %1352 = vmatpush.bf16.xpose.msra.mxu0 0
        %1353 = vmatpush.bf16.xpose.msra.mxu0 0
        %1354 = vmatpush.bf16.xpose.msra.mxu0 0
        %1355 = vmatpush.bf16.xpose.msra.mxu0 0
        %1356 = vmatpush.bf16.xpose.msra.mxu0 0
        %1357 = vmatpush.bf16.xpose.msra.mxu0 0
        %1358 = vmatpush.bf16.xpose.msra.mxu0 %v1349
        %1359 = vmatmul.bf16.gmra.mxu0 %v1343
        %v1360 = vpop.f32.mrf.mxu0
        %v1361 = vadd.f32 %v1278, %v1360
        %v1362 = vpop.f32.mrf.mxu0
        %1363 = vdwg.mxu0
        %v1364 = vsel %vm1300, %v1361, -inf
        %1365 = vmax.xlane.f32.xlu0 %v1364
        %v1366 = vpop.xlane.xlu0 %1365
        %v1367 = vsub.f32 %v1361, %v1366
        %v1368 = vmul.f32 %v1367, 1.442695
        %v1369 = vpow.pop %v1368
        %v1370 = vsel %vm1300, %v1369, 0.0
        %1371 = vadd.xlane.f32.xlu0 %v1370
        %v1372 = vpop.xlane.xlu0 %1371
        %v1373 = vrcp.pop %v1372
        %v1374 = vmul.f32 %v1369, %v1373
        %v1375 = vpack.c.bf16 %v1374, %v1374
        %v1376 = vld [vmem:[#allocation3 + $0x4] sm:$0xf]
        %v1377 = vld [vmem:[#allocation3 + $0x14] sm:$0xf]
        %v1380 = vunpack.c.l.b16 %v1376
        %v1381 = vunpack.c.l.b16 %v1377
        %v1382 = vpack.c.b16 %v1381, %v1380
        %v1385 = vsel %vm1300, %v1375, 0
        %1387 = vmatpush.bf16.msra.mxu0 0
        %1388 = vmatpush.bf16.msra.mxu0 0
        %1389 = vmatpush.bf16.msra.mxu0 0
        %1390 = vmatpush.bf16.msra.mxu0 0
        %1391 = vmatpush.bf16.msra.mxu0 0
        %1392 = vmatpush.bf16.msra.mxu0 0
        %1393 = vmatpush.bf16.msra.mxu0 0
        %1394 = vmatpush.bf16.msra.mxu0 %v1382
        %1395 = vmatmul.bf16.gmra.mxu0 %v1385
        %v1396 = vpop.f32.mrf.mxu0
        %v1397 = vadd.f32 0.0, %v1396
        %v1398 = vpop.f32.mrf.mxu0
        %1399 = vdwg.mxu0
        %v1400 = vpack.c.bf16 %v1397, %v1397
        %1401 = vst [vmem:[#allocation4 + $0x4] sm:$0xf] %v1400
        %v1402 = vld [vmem:[#allocation2 + $0x8] sm:$0xf]
        %v1403 = vld [vmem:[#allocation2 + $0x18] sm:$0xf]
        %v1406 = vunpack.c.l.b16 %v1402
        %v1407 = vunpack.c.l.b16 %v1403
        %v1408 = vpack.c.b16 %v1407, %v1406
        %1410 = vmatpush.bf16.xpose.msra.mxu0 0
        %1411 = vmatpush.bf16.xpose.msra.mxu0 0
        %1412 = vmatpush.bf16.xpose.msra.mxu0 0
        %1413 = vmatpush.bf16.xpose.msra.mxu0 0
        %1414 = vmatpush.bf16.xpose.msra.mxu0 0
        %1415 = vmatpush.bf16.xpose.msra.mxu0 0
        %1416 = vmatpush.bf16.xpose.msra.mxu0 0
        %1417 = vmatpush.bf16.xpose.msra.mxu0 %v1408
        %1418 = vmatmul.bf16.gmra.mxu0 %v1276
        %v1419 = vpop.f32.mrf.mxu0
        %v1420 = vadd.f32 %v1278, %v1419
        %v1421 = vpop.f32.mrf.mxu0
        %1422 = vdwg.mxu0
        %v1423 = vsel %vm1300, %v1420, -inf
        %1424 = vmax.xlane.f32.xlu0 %v1423
        %v1425 = vpop.xlane.xlu0 %1424
        %v1426 = vsub.f32 %v1420, %v1425
        %v1427 = vmul.f32 %v1426, 1.442695
        %v1428 = vpow.pop %v1427
        %v1429 = vsel %vm1300, %v1428, 0.0
        %1430 = vadd.xlane.f32.xlu0 %v1429
        %v1431 = vpop.xlane.xlu0 %1430
        %v1432 = vrcp.pop %v1431
        %v1433 = vmul.f32 %v1428, %v1432
        %v1434 = vpack.c.bf16 %v1433, %v1433
        %v1435 = vld [vmem:[#allocation3 + $0x8] sm:$0xf]
        %v1436 = vld [vmem:[#allocation3 + $0x18] sm:$0xf]
        %v1439 = vunpack.c.l.b16 %v1435
        %v1440 = vunpack.c.l.b16 %v1436
        %v1441 = vpack.c.b16 %v1440, %v1439
        %v1444 = vsel %vm1300, %v1434, 0
        %1446 = vmatpush.bf16.msra.mxu0 0
        %1447 = vmatpush.bf16.msra.mxu0 0
        %1448 = vmatpush.bf16.msra.mxu0 0
        %1449 = vmatpush.bf16.msra.mxu0 0
        %1450 = vmatpush.bf16.msra.mxu0 0
        %1451 = vmatpush.bf16.msra.mxu0 0
        %1452 = vmatpush.bf16.msra.mxu0 0
        %1453 = vmatpush.bf16.msra.mxu0 %v1441
        %1454 = vmatmul.bf16.gmra.mxu0 %v1444
        %v1455 = vpop.f32.mrf.mxu0
        %v1456 = vadd.f32 0.0, %v1455
        %v1457 = vpop.f32.mrf.mxu0
        %1458 = vdwg.mxu0
        %v1459 = vpack.c.bf16 %v1456, %v1456
        %1460 = vst [vmem:[#allocation4 + $0x8] sm:$0xf] %v1459
        %v1461 = vld [vmem:[#allocation2 + $0xc] sm:$0xf]
        %v1462 = vld [vmem:[#allocation2 + $0x1c] sm:$0xf]
        %v1464 = vunpack.c.h.b16 %v1276
        %v1465 = vpack.c.b16 %v1464, %v1464
        %v1469 = vunpack.c.l.b16 %v1461
        %v1470 = vunpack.c.l.b16 %v1462
        %v1471 = vpack.c.b16 %v1470, %v1469
        %1473 = vmatpush.bf16.xpose.msra.mxu0 0
        %1474 = vmatpush.bf16.xpose.msra.mxu0 0
        %1475 = vmatpush.bf16.xpose.msra.mxu0 0
        %1476 = vmatpush.bf16.xpose.msra.mxu0 0
        %1477 = vmatpush.bf16.xpose.msra.mxu0 0
        %1478 = vmatpush.bf16.xpose.msra.mxu0 0
        %1479 = vmatpush.bf16.xpose.msra.mxu0 0
        %1480 = vmatpush.bf16.xpose.msra.mxu0 %v1471
        %1481 = vmatmul.bf16.gmra.mxu0 %v1465
        %v1482 = vpop.f32.mrf.mxu0
        %v1483 = vadd.f32 %v1278, %v1482
        %v1484 = vpop.f32.mrf.mxu0
        %1485 = vdwg.mxu0
        %v1486 = vsel %vm1300, %v1483, -inf
        %1487 = vmax.xlane.f32.xlu0 %v1486
        %v1488 = vpop.xlane.xlu0 %1487
        %v1489 = vsub.f32 %v1483, %v1488
        %v1490 = vmul.f32 %v1489, 1.442695
        %v1491 = vpow.pop %v1490
        %v1492 = vsel %vm1300, %v1491, 0.0
        %1493 = vadd.xlane.f32.xlu0 %v1492
        %v1494 = vpop.xlane.xlu0 %1493
        %v1495 = vrcp.pop %v1494
        %v1496 = vmul.f32 %v1491, %v1495
        %v1497 = vpack.c.bf16 %v1496, %v1496
        %v1498 = vld [vmem:[#allocation3 + $0xc] sm:$0xf]
        %v1499 = vld [vmem:[#allocation3 + $0x1c] sm:$0xf]
        %v1502 = vunpack.c.l.b16 %v1498
        %v1503 = vunpack.c.l.b16 %v1499
        %v1504 = vpack.c.b16 %v1503, %v1502
        %v1507 = vsel %vm1300, %v1497, 0
        %1509 = vmatpush.bf16.msra.mxu0 0
        %1510 = vmatpush.bf16.msra.mxu0 0
        %1511 = vmatpush.bf16.msra.mxu0 0
        %1512 = vmatpush.bf16.msra.mxu0 0
        %1513 = vmatpush.bf16.msra.mxu0 0
        %1514 = vmatpush.bf16.msra.mxu0 0
        %1515 = vmatpush.bf16.msra.mxu0 0
        %1516 = vmatpush.bf16.msra.mxu0 %v1504
        %1517 = vmatmul.bf16.gmra.mxu0 %v1507
        %v1518 = vpop.f32.mrf.mxu0
        %v1519 = vadd.f32 0.0, %v1518
        %v1520 = vpop.f32.mrf.mxu0
        %1521 = vdwg.mxu0
        %v1522 = vpack.c.bf16 %v1519, %v1519
        %1523 = vst [vmem:[#allocation4 + $0xc] sm:$0xf] %v1522
        %v1524 = vld [vmem:[#allocation4] sm:$0xff]
        %v1525 = vld [vmem:[#allocation4 + $0x8] sm:$0xff]
        %v1526 = vld [vmem:[#allocation16] sm:$0xf]
        %v1527 = vld [vmem:[#allocation16 + $0x4] sm:$0xf]
        %v1528 = vld [vmem:[#allocation16 + $0x8] sm:$0xf]
        %v1529 = vld [vmem:[#allocation16 + $0xc] sm:$0xf]
        %v1530 = vld [vmem:[#allocation16 + $0x10] sm:$0xf]
        %v1531 = vld [vmem:[#allocation16 + $0x14] sm:$0xf]
        %v1532 = vld [vmem:[#allocation16 + $0x18] sm:$0xf]
        %v1533 = vld [vmem:[#allocation16 + $0x1c] sm:$0xf]
        %v1534 = vld [vmem:[#allocation16 + $0x20] sm:$0xf]
        %v1535 = vld [vmem:[#allocation16 + $0x24] sm:$0xf]
        %v1536 = vld [vmem:[#allocation16 + $0x28] sm:$0xf]
        %v1537 = vld [vmem:[#allocation16 + $0x2c] sm:$0xf]
        %v1538 = vld [vmem:[#allocation16 + $0x30] sm:$0xf]
        %v1539 = vld [vmem:[#allocation16 + $0x34] sm:$0xf]
        %v1540 = vld [vmem:[#allocation16 + $0x38] sm:$0xf]
        %v1541 = vld [vmem:[#allocation16 + $0x3c] sm:$0xf]
        %v1542 = vld [vmem:[#allocation16 + $0x40] sm:$0xf]
        %v1543 = vld [vmem:[#allocation16 + $0x44] sm:$0xf]
        %v1544 = vld [vmem:[#allocation16 + $0x48] sm:$0xf]
        %v1545 = vld [vmem:[#allocation16 + $0x4c] sm:$0xf]
        %v1546 = vld [vmem:[#allocation16 + $0x50] sm:$0xf]
        %v1547 = vld [vmem:[#allocation16 + $0x54] sm:$0xf]
        %v1548 = vld [vmem:[#allocation16 + $0x58] sm:$0xf]
        %v1549 = vld [vmem:[#allocation16 + $0x5c] sm:$0xf]
        %v1550 = vld [vmem:[#allocation16 + $0x60] sm:$0xf]
        %v1551 = vld [vmem:[#allocation16 + $0x64] sm:$0xf]
        %v1552 = vld [vmem:[#allocation16 + $0x68] sm:$0xf]
        %v1553 = vld [vmem:[#allocation16 + $0x6c] sm:$0xf]
        %v1554 = vld [vmem:[#allocation16 + $0x70] sm:$0xf]
        %v1555 = vld [vmem:[#allocation16 + $0x74] sm:$0xf]
        %v1556 = vld [vmem:[#allocation16 + $0x78] sm:$0xf]
        %v1557 = vld [vmem:[#allocation16 + $0x7c] sm:$0xf]
        %v1558 = vld [vmem:[#allocation16 + $0x80] sm:$0xf]
        %v1559 = vld [vmem:[#allocation16 + $0x84] sm:$0xf]
        %v1560 = vld [vmem:[#allocation16 + $0x88] sm:$0xf]
        %v1561 = vld [vmem:[#allocation16 + $0x8c] sm:$0xf]
        %v1562 = vld [vmem:[#allocation16 + $0x90] sm:$0xf]
        %v1563 = vld [vmem:[#allocation16 + $0x94] sm:$0xf]
        %v1564 = vld [vmem:[#allocation16 + $0x98] sm:$0xf]
        %v1565 = vld [vmem:[#allocation16 + $0x9c] sm:$0xf]
        %v1566 = vld [vmem:[#allocation16 + $0xa0] sm:$0xf]
        %v1567 = vld [vmem:[#allocation16 + $0xa4] sm:$0xf]
        %v1568 = vld [vmem:[#allocation16 + $0xa8] sm:$0xf]
        %v1569 = vld [vmem:[#allocation16 + $0xac] sm:$0xf]
        %v1570 = vld [vmem:[#allocation16 + $0xb0] sm:$0xf]
        %v1571 = vld [vmem:[#allocation16 + $0xb4] sm:$0xf]
        %v1572 = vld [vmem:[#allocation16 + $0xb8] sm:$0xf]
        %v1573 = vld [vmem:[#allocation16 + $0xbc] sm:$0xf]
        %v1574 = vld [vmem:[#allocation16 + $0xc0] sm:$0xf]
        %v1575 = vld [vmem:[#allocation16 + $0xc4] sm:$0xf]
        %v1576 = vld [vmem:[#allocation16 + $0xc8] sm:$0xf]
        %v1577 = vld [vmem:[#allocation16 + $0xcc] sm:$0xf]
        %v1578 = vld [vmem:[#allocation16 + $0xd0] sm:$0xf]
        %v1579 = vld [vmem:[#allocation16 + $0xd4] sm:$0xf]
        %v1580 = vld [vmem:[#allocation16 + $0xd8] sm:$0xf]
        %v1581 = vld [vmem:[#allocation16 + $0xdc] sm:$0xf]
        %v1582 = vld [vmem:[#allocation16 + $0xe0] sm:$0xf]
        %v1583 = vld [vmem:[#allocation16 + $0xe4] sm:$0xf]
        %v1584 = vld [vmem:[#allocation16 + $0xe8] sm:$0xf]
        %v1585 = vld [vmem:[#allocation16 + $0xec] sm:$0xf]
        %v1586 = vld [vmem:[#allocation16 + $0xf0] sm:$0xf]
        %v1587 = vld [vmem:[#allocation16 + $0xf4] sm:$0xf]
        %v1588 = vld [vmem:[#allocation16 + $0xf8] sm:$0xf]
        %v1589 = vld [vmem:[#allocation16 + $0xfc] sm:$0xf]
        %v1592 = vunpack.c.l.b16 %v1524
        %v1593 = vunpack.c.h.b16 %v1524
        %v1594 = vunpack.c.l.b16 %v1525
        %v1595 = vunpack.c.h.b16 %v1525
        %v1596 = vpack.c.b16 %v1592, %v1592
        %v1597 = vpack.c.b16 %v1593, %v1593
        %v1598 = vpack.c.b16 %v1594, %v1594
        %v1599 = vpack.c.b16 %v1595, %v1595
        %v1668 = vunpack.c.l.b16 %v1526
        %v1669 = vunpack.c.l.b16 %v1527
        %v1670 = vunpack.c.l.b16 %v1528
        %v1671 = vunpack.c.l.b16 %v1529
        %v1672 = vunpack.c.l.b16 %v1530
        %v1673 = vunpack.c.l.b16 %v1531
        %v1674 = vunpack.c.l.b16 %v1532
        %v1675 = vunpack.c.l.b16 %v1533
        %v1676 = vunpack.c.l.b16 %v1534
        %v1677 = vunpack.c.l.b16 %v1535
        %v1678 = vunpack.c.l.b16 %v1536
        %v1679 = vunpack.c.l.b16 %v1537
        %v1680 = vunpack.c.l.b16 %v1538
        %v1681 = vunpack.c.l.b16 %v1539
        %v1682 = vunpack.c.l.b16 %v1540
        %v1683 = vunpack.c.l.b16 %v1541
        %v1684 = vunpack.c.l.b16 %v1542
        %v1685 = vunpack.c.l.b16 %v1543
        %v1686 = vunpack.c.l.b16 %v1544
        %v1687 = vunpack.c.l.b16 %v1545
        %v1688 = vunpack.c.l.b16 %v1546
        %v1689 = vunpack.c.l.b16 %v1547
        %v1690 = vunpack.c.l.b16 %v1548
        %v1691 = vunpack.c.l.b16 %v1549
        %v1692 = vunpack.c.l.b16 %v1550
        %v1693 = vunpack.c.l.b16 %v1551
        %v1694 = vunpack.c.l.b16 %v1552
        %v1695 = vunpack.c.l.b16 %v1553
        %v1696 = vunpack.c.l.b16 %v1554
        %v1697 = vunpack.c.l.b16 %v1555
        %v1698 = vunpack.c.l.b16 %v1556
        %v1699 = vunpack.c.l.b16 %v1557
        %v1700 = vunpack.c.l.b16 %v1558
        %v1701 = vunpack.c.l.b16 %v1559
        %v1702 = vunpack.c.l.b16 %v1560
        %v1703 = vunpack.c.l.b16 %v1561
        %v1704 = vunpack.c.l.b16 %v1562
        %v1705 = vunpack.c.l.b16 %v1563
        %v1706 = vunpack.c.l.b16 %v1564
        %v1707 = vunpack.c.l.b16 %v1565
        %v1708 = vunpack.c.l.b16 %v1566
        %v1709 = vunpack.c.l.b16 %v1567
        %v1710 = vunpack.c.l.b16 %v1568
        %v1711 = vunpack.c.l.b16 %v1569
        %v1712 = vunpack.c.l.b16 %v1570
        %v1713 = vunpack.c.l.b16 %v1571
        %v1714 = vunpack.c.l.b16 %v1572
        %v1715 = vunpack.c.l.b16 %v1573
        %v1716 = vunpack.c.l.b16 %v1574
        %v1717 = vunpack.c.l.b16 %v1575
        %v1718 = vunpack.c.l.b16 %v1576
        %v1719 = vunpack.c.l.b16 %v1577
        %v1720 = vunpack.c.l.b16 %v1578
        %v1721 = vunpack.c.l.b16 %v1579
        %v1722 = vunpack.c.l.b16 %v1580
        %v1723 = vunpack.c.l.b16 %v1581
        %v1724 = vunpack.c.l.b16 %v1582
        %v1725 = vunpack.c.l.b16 %v1583
        %v1726 = vunpack.c.l.b16 %v1584
        %v1727 = vunpack.c.l.b16 %v1585
        %v1728 = vunpack.c.l.b16 %v1586
        %v1729 = vunpack.c.l.b16 %v1587
        %v1730 = vunpack.c.l.b16 %v1588
        %v1731 = vunpack.c.l.b16 %v1589
        %v1732 = vpack.c.b16 %v1669, %v1668
        %v1733 = vpack.c.b16 %v1671, %v1670
        %v1734 = vpack.c.b16 %v1673, %v1672
        %v1735 = vpack.c.b16 %v1675, %v1674
        %v1736 = vpack.c.b16 %v1677, %v1676
        %v1737 = vpack.c.b16 %v1679, %v1678
        %v1738 = vpack.c.b16 %v1681, %v1680
        %v1739 = vpack.c.b16 %v1683, %v1682
        %v1740 = vpack.c.b16 %v1685, %v1684
        %v1741 = vpack.c.b16 %v1687, %v1686
        %v1742 = vpack.c.b16 %v1689, %v1688
        %v1743 = vpack.c.b16 %v1691, %v1690
        %v1744 = vpack.c.b16 %v1693, %v1692
        %v1745 = vpack.c.b16 %v1695, %v1694
        %v1746 = vpack.c.b16 %v1697, %v1696
        %v1747 = vpack.c.b16 %v1699, %v1698
        %v1748 = vpack.c.b16 %v1701, %v1700
        %v1749 = vpack.c.b16 %v1703, %v1702
        %v1750 = vpack.c.b16 %v1705, %v1704
        %v1751 = vpack.c.b16 %v1707, %v1706
        %v1752 = vpack.c.b16 %v1709, %v1708
        %v1753 = vpack.c.b16 %v1711, %v1710
        %v1754 = vpack.c.b16 %v1713, %v1712
        %v1755 = vpack.c.b16 %v1715, %v1714
        %v1756 = vpack.c.b16 %v1717, %v1716
        %v1757 = vpack.c.b16 %v1719, %v1718
        %v1758 = vpack.c.b16 %v1721, %v1720
        %v1759 = vpack.c.b16 %v1723, %v1722
        %v1760 = vpack.c.b16 %v1725, %v1724
        %v1761 = vpack.c.b16 %v1727, %v1726
        %v1762 = vpack.c.b16 %v1729, %v1728
        %v1763 = vpack.c.b16 %v1731, %v1730
        %1796 = vmatpush.bf16.msra.mxu0 %v1739
        %1797 = vmatpush.bf16.msra.mxu0 %v1738
        %1798 = vmatpush.bf16.msra.mxu0 %v1737
        %1799 = vmatpush.bf16.msra.mxu0 %v1736
        %1800 = vmatpush.bf16.msra.mxu0 %v1735
        %1801 = vmatpush.bf16.msra.mxu0 %v1734
        %1802 = vmatpush.bf16.msra.mxu0 %v1733
        %1803 = vmatpush.bf16.msra.mxu0 %v1732
        %1804 = vmatmul.bf16.gmra.mxu0 %v1596
        %v1805 = vpop.f32.mrf.mxu0
        %v1806 = vadd.f32 0.0, %v1805
        %v1807 = vpop.f32.mrf.mxu0
        %1808 = vdwg.mxu0
        %1809 = vmatpush.bf16.msra.mxu0 %v1747
        %1810 = vmatpush.bf16.msra.mxu0 %v1746
        %1811 = vmatpush.bf16.msra.mxu0 %v1745
        %1812 = vmatpush.bf16.msra.mxu0 %v1744
        %1813 = vmatpush.bf16.msra.mxu0 %v1743
        %1814 = vmatpush.bf16.msra.mxu0 %v1742
        %1815 = vmatpush.bf16.msra.mxu0 %v1741
        %1816 = vmatpush.bf16.msra.mxu0 %v1740
        %1817 = vmatmul.bf16.gmra.mxu0 %v1597
        %v1818 = vpop.f32.mrf.mxu0
        %v1819 = vadd.f32 %v1806, %v1818
        %v1820 = vpop.f32.mrf.mxu0
        %1821 = vdwg.mxu0
        %1822 = vmatpush.bf16.msra.mxu0 %v1755
        %1823 = vmatpush.bf16.msra.mxu0 %v1754
        %1824 = vmatpush.bf16.msra.mxu0 %v1753
        %1825 = vmatpush.bf16.msra.mxu0 %v1752
        %1826 = vmatpush.bf16.msra.mxu0 %v1751
        %1827 = vmatpush.bf16.msra.mxu0 %v1750
        %1828 = vmatpush.bf16.msra.mxu0 %v1749
        %1829 = vmatpush.bf16.msra.mxu0 %v1748
        %1830 = vmatmul.bf16.gmra.mxu0 %v1598
        %v1831 = vpop.f32.mrf.mxu0
        %v1832 = vadd.f32 %v1819, %v1831
        %v1833 = vpop.f32.mrf.mxu0
        %1834 = vdwg.mxu0
        %1835 = vmatpush.bf16.msra.mxu0 %v1763
        %1836 = vmatpush.bf16.msra.mxu0 %v1762
        %1837 = vmatpush.bf16.msra.mxu0 %v1761
        %1838 = vmatpush.bf16.msra.mxu0 %v1760
        %1839 = vmatpush.bf16.msra.mxu0 %v1759
        %1840 = vmatpush.bf16.msra.mxu0 %v1758
        %1841 = vmatpush.bf16.msra.mxu0 %v1757
        %1842 = vmatpush.bf16.msra.mxu0 %v1756
        %1843 = vmatmul.bf16.gmra.mxu0 %v1599
        %v1844 = vpop.f32.mrf.mxu0
        %v1845 = vadd.f32 %v1832, %v1844
        %v1846 = vpop.f32.mrf.mxu0
        %1847 = vdwg.mxu0
        %1848 = vst [vmem:[%s621] sm:$0xff] %v1845
        %s1849 = sand.u32 %s349, 1
        %s1850 = scalar_lea.sflag [#allocation7], %s1849
        %s1851 = sand.u32 %s349, 1
        %s1852 = smul.addr %s1851, 8
        %s1853 = scalar_lea.vmem [#allocation17], %s1852
        // Predicated region
        $region105: #{tpu_custom_call.1} parent=71 // pred_check
          %p1854 = pneg %p359
        $region106: #{tpu_custom_call.1} parent=71 // pred_check_branch
          %1856 = sbr.rel (%p1854) target = $region108
        $region107: #{tpu_custom_call.1} parent=71 // pred_region
          %1858 = vsyncadd %s1850, 0
          %s1859 = sadd.s32 %s40, %s39
          %s1860 = smul.addr %s1859, 8
          %s1861 = scalar_lea.hbm %s13, %s1860
          %s1863 = sshll.u32 %s1853, 4
          %s1864 = int_to_ptr.vmem [resolvable:$true] %s1863
          %s1865 = sshll.u32 %s1861, 4
          %s1866 = int_to_ptr.hbm [resolvable:$true] %s1865
          %1868 = dma.vmem_to_hbm [thread:$0]  %s1864, 128, %s1866, %s1850
        $region108: #{tpu_custom_call.1} parent=71 // pred_fallthru
          _
      $region72: #{tpu_custom_call.1} parent=5 // pred_fallthru
        _
      %p1869 = scmp.le.s32.totalorder 2, %s30
      // Predicated region
      $region109: #{tpu_custom_call.1} parent=5 // pred_check
        %p1870 = pneg %p1869
      $region110: #{tpu_custom_call.1} parent=5 // pred_check_branch
        %1872 = sbr.rel (%p1870) target = $region112
      $region111: #{tpu_custom_call.1} parent=5 // pred_region
        %s1873 = ssub.s32 %s30, 2
        // Predicated region
        $region113: #{tpu_custom_call.1} parent=111 // pred_check
          %p1874 = pneg %p365
        $region114: #{tpu_custom_call.1} parent=111 // pred_check_branch
          %1876 = sbr.rel (%p1874) target = $region116
        $region115: #{tpu_custom_call.1} parent=111 // pred_region
          %s1877 = sand.u32 %s350, 1
          %s1878 = scalar_lea.sflag [#allocation7], %s1877
          %s1879 = sand.u32 %s350, 1
          %s1880 = smul.addr %s1879, 8
          %s1881 = scalar_lea.vmem [#allocation17], %s1880
          %1883 = dma.done %s1878, 128
        $region116: #{tpu_custom_call.1} parent=111 // pred_fallthru
          _
      $region112: #{tpu_custom_call.1} parent=5 // pred_fallthru
        _
    $region6: #{tpu_custom_call.1} parent=1 // loop_footer
      %s34 = sadd.s32 1, %s30
    $region7: #{tpu_custom_call.1} parent=1 // loop_footer_branch
      %29 = sbr.rel target = $region3
    $region8: #{tpu_custom_call.1} parent=1 // loop_exit
      _
    %1884 = vsyncpa [#allocation6], 1
    %s1885 = scalar_lea.sflag [#allocation6], 1
    %1886 = vsyncpa %s1885, 1
    %1887 = vsyncpa [#allocation9], 1
    %s1888 = scalar_lea.sflag [#allocation9], 1
    %1889 = vsyncpa %s1888, 1
    %1890 = vsyncpa [#allocation12], 1
    %1891 = vsyncpa [#allocation15], 1
    %1892 = vsyncpa [#allocation7], 1
    %s1893 = scalar_lea.sflag [#allocation7], 1
    %1894 = vsyncpa %s1893, 1

// kernel: tpu_custom_call.1
$region0: #{tpu_custom_call.1}
  #allocation0 [shape = 'u32[]', space=smem, size = 0x4, offset = 0x4, fixed_abs, tag = 'smem constant byte address 0x4 - core index']
  #allocation1 [shape = 'u32[72,128]{1,0:T(1,128)}', space=vmem, size = 0x9000, scoped, tag = 'internal scratch']
  #allocation2 [shape = 'bf16[16,512]{1,0:T(8,128)(2,1)}', space=vmem, size = 0x4000, scoped, tag = 'scratch operand']
  #allocation3 [shape = 'bf16[16,512]{1,0:T(8,128)(2,1)}', space=vmem, size = 0x4000, scoped, tag = 'scratch operand']
  #allocation4 [shape = 'bf16[8,512]{1,0:T(8,128)(2,1)}', space=vmem, size = 0x2000, scoped, tag = 'scratch operand']
  %s0 = inlined_call_operand.hbm [shape: f32[2,8,64], index: 0, kind: input, shape index: {}]
  %s1 = inlined_call_operand.hbm [shape: f32[2,16,80], index: 1, kind: input, shape index: {}]
  %s2 = inlined_call_operand.hbm [shape: bf16[2,8,16], index: 2, kind: input, shape index: {}]
  %s3 = inlined_call_operand.vmem [shape: f32[1,64], index: 3, kind: input, shape index: {}]
  %s4 = inlined_call_operand.vmem [shape: f32[1,64], index: 4, kind: input, shape index: {}]
  %s5 = inlined_call_operand.vmem [shape: f32[1,80], index: 5, kind: input, shape index: {}]
  %s6 = inlined_call_operand.vmem [shape: f32[1,80], index: 6, kind: input, shape index: {}]
  %s7 = inlined_call_operand.vmem [shape: f32[1,80], index: 7, kind: input, shape index: {}]
  %s8 = inlined_call_operand.vmem [shape: f32[1,80], index: 8, kind: input, shape index: {}]
  %s9 = inlined_call_operand.hbm [shape: bf16[64,512], index: 9, kind: input, shape index: {}]
  %s10 = inlined_call_operand.hbm [shape: bf16[80,512], index: 10, kind: input, shape index: {}]
  %s11 = inlined_call_operand.hbm [shape: bf16[80,512], index: 11, kind: input, shape index: {}]
  %s12 = inlined_call_operand.hbm [shape: bf16[512,128], index: 12, kind: input, shape index: {}]
  %s13 = inlined_call_operand.hbm [shape: f32[2,8,128], index: 13, kind: output, shape index: {}]
  %s14 = sld [smem:[#allocation0]]
  $region117: #{tpu_custom_call.1} parent=0
    _
  %s16 = ssub.s32 1, %s14
  %s17 = scalar_select 0, %s16, %s14
  $region1: #{tpu_custom_call.1} parent=0
    #allocation5 [shape = 'u8[8192]{0}', space=vmem, size = 0x2000, scoped, tag = 'input window, operand 0']
    #allocation6 [shape = 's32[2]{0}', space=sflag, size = 0x8, scoped, tag = 'scoped memory for tpu_custom_call.1']
    #allocation7 [shape = 's32[2]{0}', space=sflag, size = 0x8, scoped, tag = 'scoped memory for tpu_custom_call.1']
    #allocation8 [shape = 'u8[16384]{0}', space=vmem, size = 0x4000, scoped, tag = 'input window, operand 1']
    #allocation9 [shape = 's32[2]{0}', space=sflag, size = 0x8, scoped, tag = 'scoped memory for tpu_custom_call.1']
    #allocation10 [shape = 'u8[4096]{0}', space=vmem, size = 0x1000, scoped, tag = 'input window, operand 2']
    #allocation11 [shape = 'u8[65536]{0}', space=vmem, size = 0x10000, scoped, tag = 'input window, operand 9, single buffered']
    #allocation12 [shape = 's32[1]{0}', space=sflag, size = 0x4, scoped, tag = 'scoped memory for tpu_custom_call.1']
    #allocation13 [shape = 'u8[81920]{0}', space=vmem, size = 0x14000, scoped, tag = 'input window, operand 10, single buffered']
    #allocation14 [shape = 'u8[81920]{0}', space=vmem, size = 0x14000, scoped, tag = 'input window, operand 11, single buffered']
    #allocation15 [shape = 's32[1]{0}', space=sflag, size = 0x4, scoped, tag = 'scoped memory for tpu_custom_call.1']
    #allocation16 [shape = 'u8[131072]{0}', space=vmem, size = 0x20000, scoped, tag = 'input window, operand 12, single buffered']
    #allocation17 [shape = 'u8[8192]{0}', space=vmem, size = 0x2000, scoped, tag = 'output window, operand 0']
    %18 = vsyncpa [#allocation6], 0
    %s19 = scalar_lea.sflag [#allocation6], 1
    %20 = vsyncpa %s19, 0
    %21 = vsyncpa [#allocation9], 0
    %s22 = scalar_lea.sflag [#allocation9], 1
    %23 = vsyncpa %s22, 0
    %24 = vsyncpa [#allocation12], 0
    %25 = vsyncpa [#allocation15], 0
    %26 = vsyncpa [#allocation7], 0
    %s27 = scalar_lea.sflag [#allocation7], 1
    %28 = vsyncpa %s27, 0
    loop: start=0, step=1, limit=4
    $region2: #{tpu_custom_call.1} parent=1 // loop_pre_header
      _
    $region3: #{tpu_custom_call.1} parent=1 // loop_header
      %s30 = sphi 0, %s34
      %p31 = scmp.ge.s32.totalorder %s30, 4
      %s37 = sphi 0, %s49
      %s38 = sphi 0, %s45
      %s39 = sphi 0, %s37
      %s40 = sphi 0, %s38
      %s41 = sphi 0, %s39
      %s42 = sphi 0, %s40
      %s54 = sphi 0, %s56
      %s57 = sphi 0, %s54
      %s58 = sphi 0, %s57
      %s74 = sphi 0, %s58
      %s80 = sphi 0, %s82
      %s83 = sphi 0, %s80
      %s84 = sphi 0, %s83
      %s100 = sphi 0, %s84
      %s108 = sphi 0, %s110
      %s111 = sphi 0, %s108
      %s112 = sphi 0, %s111
      %s128 = sphi 0, %s112
      %s132 = sphi 0, %s132
      %s134 = sphi 0, %s132
      %s135 = sphi 0, %s134
      %s149 = sphi 0, %s135
      %s153 = sphi 0, %s153
      %s155 = sphi 0, %s153
      %s156 = sphi 0, %s155
      %s170 = sphi 0, %s156
      %s174 = sphi 0, %s174
      %s176 = sphi 0, %s174
      %s177 = sphi 0, %s176
      %s191 = sphi 0, %s177
      %s195 = sphi 0, %s195
      %s197 = sphi 0, %s195
      %s198 = sphi 0, %s197
      %s212 = sphi 0, %s198
      %s216 = sphi 0, %s216
      %s218 = sphi 0, %s216
      %s219 = sphi 0, %s218
      %s233 = sphi 0, %s219
      %s237 = sphi 0, %s237
      %s239 = sphi 0, %s237
      %s240 = sphi 0, %s239
      %s254 = sphi 0, %s240
      %s258 = sphi 0, %s258
      %s260 = sphi 0, %s258
      %s261 = sphi 0, %s260
      %s275 = sphi 0, %s261
      %s279 = sphi 0, %s279
      %s281 = sphi 0, %s279
      %s282 = sphi 0, %s281
      %s296 = sphi 0, %s282
      %s300 = sphi 0, %s300
      %s302 = sphi 0, %s300
      %s303 = sphi 0, %s302
      %s317 = sphi 0, %s303
      %s321 = sphi 0, %s321
      %s323 = sphi 0, %s321
      %s324 = sphi 0, %s323
      %s338 = sphi 0, %s324
      %s346 = sphi 0, %s348
      %s349 = sphi 0, %s346
      %s350 = sphi 0, %s349
      %s366 = sphi 0, %s350
    $region4: #{tpu_custom_call.1} parent=1 // loop_header_branch
      %33 = sbr.rel (%p31) target = $region8
    $region5: #{tpu_custom_call.1} parent=1 // loop_body
      %s35 = ssub.s32 %s30, 1
      %s36 = ssub.s32 %s30, 2
      %s43 = sadd.s32 1, %s38
      %p44 = scmp.ge.s32.totalorder %s43, 1
      %s45 = scalar_select %p44, 0, %s43
      %s46 = sadd.s32 1, %s37
      %s47 = scalar_select %p44, %s46, %s37
      %p48 = scmp.ge.s32.totalorder %s47, 2
      %s49 = scalar_select %p48, 0, %s47
      %s50 = ssub.s32 %s37, %s49
      %s51 = ssub.s32 %s38, %s45
      %s52 = sor.u32 %s50, %s51
      %p53 = scmp.eq.s32.totalorder %s52, 0
      %s55 = sadd.s32 %s54, 1
      %s56 = scalar_select %p53, %s54, %s55
      %p59 = pneg %p53
      %p60 = scmp.eq.s32.totalorder %s30, 1
      %p61 = por %p59, %p60
      %p62 = scmp.ne.s32.totalorder %s54, %s57
      %p63 = scmp.eq.s32.totalorder %s30, 0
      %p64 = por %p62, %p63
      %p65 = scmp.ne.s32.totalorder %s54, %s57
      %p66 = scmp.eq.s32.totalorder %s35, 1
      %p67 = por %p65, %p66
      %p68 = scmp.ne.s32.totalorder %s57, %s58
      %p69 = scmp.eq.s32.totalorder %s35, 0
      %p70 = por %p68, %p69
      %p71 = scmp.ne.s32.totalorder %s57, %s58
      %p72 = scmp.eq.s32.totalorder %s36, 1
      %p73 = por %p71, %p72
      %p75 = scmp.ne.s32.totalorder %s58, %s74
      %p76 = scmp.eq.s32.totalorder %s36, 0
      %p77 = por %p75, %p76
      %s78 = ssub.s32 %s37, %s49
      %p79 = scmp.eq.s32.totalorder %s78, 0
      %s81 = sadd.s32 %s80, 1
      %s82 = scalar_select %p79, %s80, %s81
      %p85 = pneg %p79
      %p86 = scmp.eq.s32.totalorder %s30, 1
      %p87 = por %p85, %p86
      %p88 = scmp.ne.s32.totalorder %s80, %s83
      %p89 = scmp.eq.s32.totalorder %s30, 0
      %p90 = por %p88, %p89
      %p91 = scmp.ne.s32.totalorder %s80, %s83
      %p92 = scmp.eq.s32.totalorder %s35, 1
      %p93 = por %p91, %p92
      %p94 = scmp.ne.s32.totalorder %s83, %s84
      %p95 = scmp.eq.s32.totalorder %s35, 0
      %p96 = por %p94, %p95
      %p97 = scmp.ne.s32.totalorder %s83, %s84
      %p98 = scmp.eq.s32.totalorder %s36, 1
      %p99 = por %p97, %p98
      %p101 = scmp.ne.s32.totalorder %s84, %s100
      %p102 = scmp.eq.s32.totalorder %s36, 0
      %p103 = por %p101, %p102
      %s104 = ssub.s32 %s37, %s49
      %s105 = ssub.s32 %s38, %s45
      %s106 = sor.u32 %s104, %s105
      %p107 = scmp.eq.s32.totalorder %s106, 0
      %s109 = sadd.s32 %s108, 1
      %s110 = scalar_select %p107, %s108, %s109
      %p113 = pneg %p107
      %p114 = scmp.eq.s32.totalorder %s30, 1
      %p115 = por %p113, %p114
      %p116 = scmp.ne.s32.totalorder %s108, %s111
      %p117 = scmp.eq.s32.totalorder %s30, 0
      %p118 = por %p116, %p117
      %p119 = scmp.ne.s32.totalorder %s108, %s111
      %p120 = scmp.eq.s32.totalorder %s35, 1
      %p121 = por %p119, %p120
      %p122 = scmp.ne.s32.totalorder %s111, %s112
      %p123 = scmp.eq.s32.totalorder %s35, 0
      %p124 = por %p122, %p123
      %p125 = scmp.ne.s32.totalorder %s111, %s112
      %p126 = scmp.eq.s32.totalorder %s36, 1
      %p127 = por %p125, %p126
      %p129 = scmp.ne.s32.totalorder %s112, %s128
      %p130 = scmp.eq.s32.totalorder %s36, 0
      %p131 = por %p129, %p130
      %s133 = sadd.s32 %s132, 1
      %p136 = scmp.eq.s32.totalorder %s30, 1
      %p137 = scmp.ne.s32.totalorder %s132, %s134
      %p138 = scmp.eq.s32.totalorder %s30, 0
      %p139 = por %p137, %p138
      %p140 = scmp.ne.s32.totalorder %s132, %s134
      %p141 = scmp.eq.s32.totalorder %s35, 1
      %p142 = por %p140, %p141
      %p143 = scmp.ne.s32.totalorder %s134, %s135
      %p144 = scmp.eq.s32.totalorder %s35, 0
      %p145 = por %p143, %p144
      %p146 = scmp.ne.s32.totalorder %s134, %s135
      %p147 = scmp.eq.s32.totalorder %s36, 1
      %p148 = por %p146, %p147
      %p150 = scmp.ne.s32.totalorder %s135, %s149
      %p151 = scmp.eq.s32.totalorder %s36, 0
      %p152 = por %p150, %p151
      %s154 = sadd.s32 %s153, 1
      %p157 = scmp.eq.s32.totalorder %s30, 1
      %p158 = scmp.ne.s32.totalorder %s153, %s155
      %p159 = scmp.eq.s32.totalorder %s30, 0
      %p160 = por %p158, %p159
      %p161 = scmp.ne.s32.totalorder %s153, %s155
      %p162 = scmp.eq.s32.totalorder %s35, 1
      %p163 = por %p161, %p162
      %p164 = scmp.ne.s32.totalorder %s155, %s156
      %p165 = scmp.eq.s32.totalorder %s35, 0
      %p166 = por %p164, %p165
      %p167 = scmp.ne.s32.totalorder %s155, %s156
      %p168 = scmp.eq.s32.totalorder %s36, 1
      %p169 = por %p167, %p168
      %p171 = scmp.ne.s32.totalorder %s156, %s170
      %p172 = scmp.eq.s32.totalorder %s36, 0
      %p173 = por %p171, %p172
      %s175 = sadd.s32 %s174, 1
      %p178 = scmp.eq.s32.totalorder %s30, 1
      %p179 = scmp.ne.s32.totalorder %s174, %s176
      %p180 = scmp.eq.s32.totalorder %s30, 0
      %p181 = por %p179, %p180
      %p182 = scmp.ne.s32.totalorder %s174, %s176
      %p183 = scmp.eq.s32.totalorder %s35, 1
      %p184 = por %p182, %p183
      %p185 = scmp.ne.s32.totalorder %s176, %s177
      %p186 = scmp.eq.s32.totalorder %s35, 0
      %p187 = por %p185, %p186
      %p188 = scmp.ne.s32.totalorder %s176, %s177
      %p189 = scmp.eq.s32.totalorder %s36, 1
      %p190 = por %p188, %p189
      %p192 = scmp.ne.s32.totalorder %s177, %s191
      %p193 = scmp.eq.s32.totalorder %s36, 0
      %p194 = por %p192, %p193
      %s196 = sadd.s32 %s195, 1
      %p199 = scmp.eq.s32.totalorder %s30, 1
      %p200 = scmp.ne.s32.totalorder %s195, %s197
      %p201 = scmp.eq.s32.totalorder %s30, 0
      %p202 = por %p200, %p201
      %p203 = scmp.ne.s32.totalorder %s195, %s197
      %p204 = scmp.eq.s32.totalorder %s35, 1
      %p205 = por %p203, %p204
      %p206 = scmp.ne.s32.totalorder %s197, %s198
      %p207 = scmp.eq.s32.totalorder %s35, 0
      %p208 = por %p206, %p207
      %p209 = scmp.ne.s32.totalorder %s197, %s198
      %p210 = scmp.eq.s32.totalorder %s36, 1
      %p211 = por %p209, %p210
      %p213 = scmp.ne.s32.totalorder %s198, %s212
      %p214 = scmp.eq.s32.totalorder %s36, 0
      %p215 = por %p213, %p214
      %s217 = sadd.s32 %s216, 1
      %p220 = scmp.eq.s32.totalorder %s30, 1
      %p221 = scmp.ne.s32.totalorder %s216, %s218
      %p222 = scmp.eq.s32.totalorder %s30, 0
      %p223 = por %p221, %p222
      %p224 = scmp.ne.s32.totalorder %s216, %s218
      %p225 = scmp.eq.s32.totalorder %s35, 1
      %p226 = por %p224, %p225
      %p227 = scmp.ne.s32.totalorder %s218, %s219
      %p228 = scmp.eq.s32.totalorder %s35, 0
      %p229 = por %p227, %p228
      %p230 = scmp.ne.s32.totalorder %s218, %s219
      %p231 = scmp.eq.s32.totalorder %s36, 1
      %p232 = por %p230, %p231
      %p234 = scmp.ne.s32.totalorder %s219, %s233
      %p235 = scmp.eq.s32.totalorder %s36, 0
      %p236 = por %p234, %p235
      %s238 = sadd.s32 %s237, 1
      %p241 = scmp.eq.s32.totalorder %s30, 1
      %p242 = scmp.ne.s32.totalorder %s237, %s239
      %p243 = scmp.eq.s32.totalorder %s30, 0
      %p244 = por %p242, %p243
      %p245 = scmp.ne.s32.totalorder %s237, %s239
      %p246 = scmp.eq.s32.totalorder %s35, 1
      %p247 = por %p245, %p246
      %p248 = scmp.ne.s32.totalorder %s239, %s240
      %p249 = scmp.eq.s32.totalorder %s35, 0
      %p250 = por %p248, %p249
      %p251 = scmp.ne.s32.totalorder %s239, %s240
      %p252 = scmp.eq.s32.totalorder %s36, 1
      %p253 = por %p251, %p252
      %p255 = scmp.ne.s32.totalorder %s240, %s254
      %p256 = scmp.eq.s32.totalorder %s36, 0
      %p257 = por %p255, %p256
      %s259 = sadd.s32 %s258, 1
      %p262 = scmp.eq.s32.totalorder %s30, 1
      %p263 = scmp.ne.s32.totalorder %s258, %s260
      %p264 = scmp.eq.s32.totalorder %s30, 0
      %p265 = por %p263, %p264
      %p266 = scmp.ne.s32.totalorder %s258, %s260
      %p267 = scmp.eq.s32.totalorder %s35, 1
      %p268 = por %p266, %p267
      %p269 = scmp.ne.s32.totalorder %s260, %s261
      %p270 = scmp.eq.s32.totalorder %s35, 0
      %p271 = por %p269, %p270
      %p272 = scmp.ne.s32.totalorder %s260, %s261
      %p273 = scmp.eq.s32.totalorder %s36, 1
      %p274 = por %p272, %p273
      %p276 = scmp.ne.s32.totalorder %s261, %s275
      %p277 = scmp.eq.s32.totalorder %s36, 0
      %p278 = por %p276, %p277
      %s280 = sadd.s32 %s279, 1
      %p283 = scmp.eq.s32.totalorder %s30, 1
      %p284 = scmp.ne.s32.totalorder %s279, %s281
      %p285 = scmp.eq.s32.totalorder %s30, 0
      %p286 = por %p284, %p285
      %p287 = scmp.ne.s32.totalorder %s279, %s281
      %p288 = scmp.eq.s32.totalorder %s35, 1
      %p289 = por %p287, %p288
      %p290 = scmp.ne.s32.totalorder %s281, %s282
      %p291 = scmp.eq.s32.totalorder %s35, 0
      %p292 = por %p290, %p291
      %p293 = scmp.ne.s32.totalorder %s281, %s282
      %p294 = scmp.eq.s32.totalorder %s36, 1
      %p295 = por %p293, %p294
      %p297 = scmp.ne.s32.totalorder %s282, %s296
      %p298 = scmp.eq.s32.totalorder %s36, 0
      %p299 = por %p297, %p298
      %s301 = sadd.s32 %s300, 1
      %p304 = scmp.eq.s32.totalorder %s30, 1
      %p305 = scmp.ne.s32.totalorder %s300, %s302
      %p306 = scmp.eq.s32.totalorder %s30, 0
      %p307 = por %p305, %p306
      %p308 = scmp.ne.s32.totalorder %s300, %s302
      %p309 = scmp.eq.s32.totalorder %s35, 1
      %p310 = por %p308, %p309
      %p311 = scmp.ne.s32.totalorder %s302, %s303
      %p312 = scmp.eq.s32.totalorder %s35, 0
      %p313 = por %p311, %p312
      %p314 = scmp.ne.s32.totalorder %s302, %s303
      %p315 = scmp.eq.s32.totalorder %s36, 1
      %p316 = por %p314, %p315
      %p318 = scmp.ne.s32.totalorder %s303, %s317
      %p319 = scmp.eq.s32.totalorder %s36, 0
      %p320 = por %p318, %p319
      %s322 = sadd.s32 %s321, 1
      %p325 = scmp.eq.s32.totalorder %s30, 1
      %p326 = scmp.ne.s32.totalorder %s321, %s323
      %p327 = scmp.eq.s32.totalorder %s30, 0
      %p328 = por %p326, %p327
      %p329 = scmp.ne.s32.totalorder %s321, %s323
      %p330 = scmp.eq.s32.totalorder %s35, 1
      %p331 = por %p329, %p330
      %p332 = scmp.ne.s32.totalorder %s323, %s324
      %p333 = scmp.eq.s32.totalorder %s35, 0
      %p334 = por %p332, %p333
      %p335 = scmp.ne.s32.totalorder %s323, %s324
      %p336 = scmp.eq.s32.totalorder %s36, 1
      %p337 = por %p335, %p336
      %p339 = scmp.ne.s32.totalorder %s324, %s338
      %p340 = scmp.eq.s32.totalorder %s36, 0
      %p341 = por %p339, %p340
      %s342 = ssub.s32 %s37, %s49
      %s343 = ssub.s32 %s38, %s45
      %s344 = sor.u32 %s342, %s343
      %p345 = scmp.eq.s32.totalorder %s344, 0
      %s347 = sadd.s32 %s346, 1
      %s348 = scalar_select %p345, %s346, %s347
      %p351 = pneg %p345
      %p352 = scmp.eq.s32.totalorder %s30, 1
      %p353 = por %p351, %p352
      %p354 = scmp.ne.s32.totalorder %s346, %s349
      %p355 = scmp.eq.s32.totalorder %s30, 0
      %p356 = por %p354, %p355
      %p357 = scmp.ne.s32.totalorder %s346, %s349
      %p358 = scmp.eq.s32.totalorder %s35, 1
      %p359 = por %p357, %p358
      %p360 = scmp.ne.s32.totalorder %s349, %s350
      %p361 = scmp.eq.s32.totalorder %s35, 0
      %p362 = por %p360, %p361
      %p363 = scmp.ne.s32.totalorder %s349, %s350
      %p364 = scmp.eq.s32.totalorder %s36, 1
      %p365 = por %p363, %p364
      %p367 = scmp.ne.s32.totalorder %s350, %s366
      %p368 = scmp.eq.s32.totalorder %s36, 0
      %p369 = por %p367, %p368
      %p370 = scmp.le.s32.totalorder 1, %s30
      %p371 = scmp.lt.s32.totalorder %s30, 3
      %p372 = pnand %p370, %p371
      %p373 = pneg %p372
      // Predicated region
      $region9: #{tpu_custom_call.1} parent=5 // pred_check
        _
      $region10: #{tpu_custom_call.1} parent=5 // pred_check_branch
        %375 = sbr.rel (%p372) target = $region12
      $region11: #{tpu_custom_call.1} parent=5 // pred_region
        %s376 = ssub.s32 %s30, 1
        // Predicated region
        $region13: #{tpu_custom_call.1} parent=11 // pred_check
          %p377 = pneg %p145
        $region14: #{tpu_custom_call.1} parent=11 // pred_check_branch
          %379 = sbr.rel (%p377) target = $region16
        $region15: #{tpu_custom_call.1} parent=11 // pred_region
          _
        $region16: #{tpu_custom_call.1} parent=11 // pred_fallthru
          _
        // Predicated region
        $region17: #{tpu_custom_call.1} parent=11 // pred_check
          %p380 = pneg %p166
        $region18: #{tpu_custom_call.1} parent=11 // pred_check_branch
          %382 = sbr.rel (%p380) target = $region20
        $region19: #{tpu_custom_call.1} parent=11 // pred_region
          _
        $region20: #{tpu_custom_call.1} parent=11 // pred_fallthru
          _
        // Predicated region
        $region21: #{tpu_custom_call.1} parent=11 // pred_check
          %p383 = pneg %p187
        $region22: #{tpu_custom_call.1} parent=11 // pred_check_branch
          %385 = sbr.rel (%p383) target = $region24
        $region23: #{tpu_custom_call.1} parent=11 // pred_region
          _
        $region24: #{tpu_custom_call.1} parent=11 // pred_fallthru
          _
        // Predicated region
        $region25: #{tpu_custom_call.1} parent=11 // pred_check
          %p386 = pneg %p208
        $region26: #{tpu_custom_call.1} parent=11 // pred_check_branch
          %388 = sbr.rel (%p386) target = $region28
        $region27: #{tpu_custom_call.1} parent=11 // pred_region
          _
        $region28: #{tpu_custom_call.1} parent=11 // pred_fallthru
          _
        // Predicated region
        $region29: #{tpu_custom_call.1} parent=11 // pred_check
          %p389 = pneg %p229
        $region30: #{tpu_custom_call.1} parent=11 // pred_check_branch
          %391 = sbr.rel (%p389) target = $region32
        $region31: #{tpu_custom_call.1} parent=11 // pred_region
          _
        $region32: #{tpu_custom_call.1} parent=11 // pred_fallthru
          _
        // Predicated region
        $region33: #{tpu_custom_call.1} parent=11 // pred_check
          %p392 = pneg %p250
        $region34: #{tpu_custom_call.1} parent=11 // pred_check_branch
          %394 = sbr.rel (%p392) target = $region36
        $region35: #{tpu_custom_call.1} parent=11 // pred_region
          _
        $region36: #{tpu_custom_call.1} parent=11 // pred_fallthru
          _
        // Predicated region
        $region37: #{tpu_custom_call.1} parent=11 // pred_check
          %p395 = pneg %p271
        $region38: #{tpu_custom_call.1} parent=11 // pred_check_branch
          %397 = sbr.rel (%p395) target = $region40
        $region39: #{tpu_custom_call.1} parent=11 // pred_region
          %399 = vsyncadd [#allocation12], 0
          %s400 = sshll.u32 %s9, 4
          %s401 = int_to_ptr.hbm [resolvable:$true] %s400
          %s402 = sshll.u32 [#allocation11], 4
          %s403 = int_to_ptr.vmem [resolvable:$true] %s402
          %408 = dma.hbm_to_vmem [thread:$0]  %s401, 2048, %s403, [#allocation12], 256, 256, 16
        $region40: #{tpu_custom_call.1} parent=11 // pred_fallthru
          _
        // Predicated region
        $region41: #{tpu_custom_call.1} parent=11 // pred_check
          %p409 = pneg %p292
        $region42: #{tpu_custom_call.1} parent=11 // pred_check_branch
          %411 = sbr.rel (%p409) target = $region44
        $region43: #{tpu_custom_call.1} parent=11 // pred_region
          %413 = vsyncadd [#allocation12], 0
          %s414 = sshll.u32 %s10, 4
          %s415 = int_to_ptr.hbm [resolvable:$true] %s414
          %s416 = sshll.u32 [#allocation13], 4
          %s417 = int_to_ptr.vmem [resolvable:$true] %s416
          %422 = dma.hbm_to_vmem [thread:$0]  %s415, 2560, %s417, [#allocation12], 256, 256, 16
        $region44: #{tpu_custom_call.1} parent=11 // pred_fallthru
          _
        // Predicated region
        $region45: #{tpu_custom_call.1} parent=11 // pred_check
          %p423 = pneg %p313
        $region46: #{tpu_custom_call.1} parent=11 // pred_check_branch
          %425 = sbr.rel (%p423) target = $region48
        $region47: #{tpu_custom_call.1} parent=11 // pred_region
          %427 = vsyncadd [#allocation15], 0
          %s428 = sshll.u32 %s11, 4
          %s429 = int_to_ptr.hbm [resolvable:$true] %s428
          %s430 = sshll.u32 [#allocation14], 4
          %s431 = int_to_ptr.vmem [resolvable:$true] %s430
          %436 = dma.hbm_to_vmem [thread:$0]  %s429, 2560, %s431, [#allocation15], 256, 256, 16
        $region48: #{tpu_custom_call.1} parent=11 // pred_fallthru
          _
        // Predicated region
        $region49: #{tpu_custom_call.1} parent=11 // pred_check
          %p437 = pneg %p334
        $region50: #{tpu_custom_call.1} parent=11 // pred_check_branch
          %439 = sbr.rel (%p437) target = $region52
        $region51: #{tpu_custom_call.1} parent=11 // pred_region
          %441 = vsyncadd [#allocation15], 0
          %s442 = sshll.u32 %s12, 4
          %s443 = int_to_ptr.hbm [resolvable:$true] %s442
          %s444 = sshll.u32 [#allocation16], 4
          %s445 = int_to_ptr.vmem [resolvable:$true] %s444
          %450 = dma.hbm_to_vmem [thread:$0]  %s443, 4096, %s445, [#allocation15], 64, 64, 4
        $region52: #{tpu_custom_call.1} parent=11 // pred_fallthru
          _
      $region12: #{tpu_custom_call.1} parent=5 // pred_fallthru
        _
      %p451 = scmp.lt.s32.totalorder %s30, 2
      // Predicated region
      $region53: #{tpu_custom_call.1} parent=5 // pred_check
        %p452 = pneg %p451
      $region54: #{tpu_custom_call.1} parent=5 // pred_check_branch
        %454 = sbr.rel (%p452) target = $region56
      $region55: #{tpu_custom_call.1} parent=5 // pred_region
        // Predicated region
        $region57: #{tpu_custom_call.1} parent=55 // pred_check
          %p455 = pneg %p64
        $region58: #{tpu_custom_call.1} parent=55 // pred_check_branch
          %457 = sbr.rel (%p455) target = $region60
        $region59: #{tpu_custom_call.1} parent=55 // pred_region
          %s458 = sand.u32 %s54, 1
          %s459 = scalar_lea.sflag [#allocation6], %s458
          %s460 = sand.u32 %s54, 1
          %s461 = smul.addr %s460, 8
          %s462 = scalar_lea.vmem [#allocation5], %s461
          %464 = vsyncadd %s459, 0
          %s465 = sadd.s32 %s38, %s37
          %s466 = smul.addr %s465, 8
          %s467 = scalar_lea.hbm %s0, %s466
          %s469 = sshll.u32 %s467, 4
          %s470 = int_to_ptr.hbm [resolvable:$true] %s469
          %s471 = sshll.u32 %s462, 4
          %s472 = int_to_ptr.vmem [resolvable:$true] %s471
          %474 = dma.hbm_to_vmem [thread:$0]  %s470, 128, %s472, %s459
        $region60: #{tpu_custom_call.1} parent=55 // pred_fallthru
          _
        // Predicated region
        $region61: #{tpu_custom_call.1} parent=55 // pred_check
          %p475 = pneg %p90
        $region62: #{tpu_custom_call.1} parent=55 // pred_check_branch
          %477 = sbr.rel (%p475) target = $region64
        $region63: #{tpu_custom_call.1} parent=55 // pred_region
          %s478 = sand.u32 %s30, 1
          %s479 = scalar_lea.sflag [#allocation9], %s478
          %s480 = sand.u32 %s80, 1
          %s481 = smul.addr %s480, 16
          %s482 = scalar_lea.vmem [#allocation8], %s481
          %484 = vsyncadd %s479, 0
          %s485 = smul.addr %s37, 2
          %s486 = smul.addr %s485, 8
          %s487 = scalar_lea.hbm %s1, %s486
          %s488 = sshll.u32 %s487, 4
          %s489 = int_to_ptr.hbm [resolvable:$true] %s488
          %s490 = sshll.u32 %s482, 4
          %s491 = int_to_ptr.vmem [resolvable:$true] %s490
          %496 = dma.hbm_to_vmem [thread:$0]  %s489, 256, %s491, %s479, 128, 128, 8
        $region64: #{tpu_custom_call.1} parent=55 // pred_fallthru
          _
        // Predicated region
        $region65: #{tpu_custom_call.1} parent=55 // pred_check
          %p497 = pneg %p118
        $region66: #{tpu_custom_call.1} parent=55 // pred_check_branch
          %499 = sbr.rel (%p497) target = $region68
        $region67: #{tpu_custom_call.1} parent=55 // pred_region
          %s500 = sand.u32 %s30, 1
          %s501 = scalar_lea.sflag [#allocation9], %s500
          %s502 = sand.u32 %s108, 1
          %s503 = smul.addr %s502, 4
          %s504 = scalar_lea.vmem [#allocation10], %s503
          %506 = vsyncadd %s501, 0
          %s507 = sadd.s32 %s38, %s37
          %s508 = smul.addr %s507, 4
          %s509 = scalar_lea.hbm %s2, %s508
          %s511 = sshll.u32 %s509, 4
          %s512 = int_to_ptr.hbm [resolvable:$true] %s511
          %s513 = sshll.u32 %s504, 4
          %s514 = int_to_ptr.vmem [resolvable:$true] %s513
          %516 = dma.hbm_to_vmem [thread:$0]  %s512, 64, %s514, %s501
        $region68: #{tpu_custom_call.1} parent=55 // pred_fallthru
          _
      $region56: #{tpu_custom_call.1} parent=5 // pred_fallthru
        _
      %p517 = scmp.le.s32.totalorder 1, %s30
      %p518 = scmp.lt.s32.totalorder %s30, 3
      %p519 = pnand %p517, %p518
      %p520 = pneg %p519
      // Predicated region
      $region69: #{tpu_custom_call.1} parent=5 // pred_check
        _
      $region70: #{tpu_custom_call.1} parent=5 // pred_check_branch
        %522 = sbr.rel (%p519) target = $region72
      $region71: #{tpu_custom_call.1} parent=5 // pred_region
        %s523 = ssub.s32 %s30, 1
        %s524 = sand.u32 %s57, 1
        %s525 = scalar_lea.sflag [#allocation6], %s524
        %s526 = sand.u32 %s57, 1
        %s527 = smul.addr %s526, 8
        %s528 = scalar_lea.vmem [#allocation5], %s527
        // Predicated region
        $region73: #{tpu_custom_call.1} parent=71 // pred_check
          %p529 = pneg %p70
        $region74: #{tpu_custom_call.1} parent=71 // pred_check_branch
          %531 = sbr.rel (%p529) target = $region76
        $region75: #{tpu_custom_call.1} parent=71 // pred_region
          %533 = dma.done %s525, 128
        $region76: #{tpu_custom_call.1} parent=71 // pred_fallthru
          _
        %s534 = sand.u32 %s35, 1
        %s535 = scalar_lea.sflag [#allocation9], %s534
        %s536 = sand.u32 %s83, 1
        %s537 = smul.addr %s536, 16
        %s538 = scalar_lea.vmem [#allocation8], %s537
        // Predicated region
        $region77: #{tpu_custom_call.1} parent=71 // pred_check
          %p539 = pneg %p96
        $region78: #{tpu_custom_call.1} parent=71 // pred_check_branch
          %541 = sbr.rel (%p539) target = $region80
        $region79: #{tpu_custom_call.1} parent=71 // pred_region
          %543 = dma.done %s535, 256
        $region80: #{tpu_custom_call.1} parent=71 // pred_fallthru
          _
        %s544 = sand.u32 %s35, 1
        %s545 = scalar_lea.sflag [#allocation9], %s544
        %s546 = sand.u32 %s111, 1
        %s547 = smul.addr %s546, 4
        %s548 = scalar_lea.vmem [#allocation10], %s547
        // Predicated region
        $region81: #{tpu_custom_call.1} parent=71 // pred_check
          %p549 = pneg %p124
        $region82: #{tpu_custom_call.1} parent=71 // pred_check_branch
          %551 = sbr.rel (%p549) target = $region84
        $region83: #{tpu_custom_call.1} parent=71 // pred_region
          %553 = dma.done %s545, 64
        $region84: #{tpu_custom_call.1} parent=71 // pred_fallthru
          _
        // Predicated region
        $region85: #{tpu_custom_call.1} parent=71 // pred_check
          %p554 = pneg %p271
        $region86: #{tpu_custom_call.1} parent=71 // pred_check_branch
          %556 = sbr.rel (%p554) target = $region88
        $region87: #{tpu_custom_call.1} parent=71 // pred_region
          %558 = dma.done [#allocation12], 2048
        $region88: #{tpu_custom_call.1} parent=71 // pred_fallthru
          _
        // Predicated region
        $region89: #{tpu_custom_call.1} parent=71 // pred_check
          %p559 = pneg %p292
        $region90: #{tpu_custom_call.1} parent=71 // pred_check_branch
          %561 = sbr.rel (%p559) target = $region92
        $region91: #{tpu_custom_call.1} parent=71 // pred_region
          %563 = dma.done [#allocation12], 2560
        $region92: #{tpu_custom_call.1} parent=71 // pred_fallthru
          _
        // Predicated region
        $region93: #{tpu_custom_call.1} parent=71 // pred_check
          %p564 = pneg %p313
        $region94: #{tpu_custom_call.1} parent=71 // pred_check_branch
          %566 = sbr.rel (%p564) target = $region96
        $region95: #{tpu_custom_call.1} parent=71 // pred_region
          %568 = dma.done [#allocation15], 2560
        $region96: #{tpu_custom_call.1} parent=71 // pred_fallthru
          _
        // Predicated region
        $region97: #{tpu_custom_call.1} parent=71 // pred_check
          %p569 = pneg %p334
        $region98: #{tpu_custom_call.1} parent=71 // pred_check_branch
          %571 = sbr.rel (%p569) target = $region100
        $region99: #{tpu_custom_call.1} parent=71 // pred_region
          %573 = dma.done [#allocation15], 4096
        $region100: #{tpu_custom_call.1} parent=71 // pred_fallthru
          _
        %s574 = sand.u32 %s57, 1
        %s575 = scalar_lea.sflag [#allocation6], %s574
        %s576 = sand.u32 %s57, 1
        %s577 = smul.addr %s576, 8
        %s578 = scalar_lea.vmem [#allocation5], %s577
        %p579 = pneg %p70
        %p580 = pneg %p67
        %s581 = sand.u32 %s35, 1
        %s582 = scalar_lea.sflag [#allocation9], %s581
        %s583 = sand.u32 %s83, 1
        %s584 = smul.addr %s583, 16
        %s585 = scalar_lea.vmem [#allocation8], %s584
        %p586 = pneg %p96
        %p587 = pneg %p93
        %s588 = sand.u32 %s35, 1
        %s589 = scalar_lea.sflag [#allocation9], %s588
        %s590 = sand.u32 %s111, 1
        %s591 = smul.addr %s590, 4
        %s592 = scalar_lea.vmem [#allocation10], %s591
        %p593 = pneg %p124
        %p594 = pneg %p121
        %p595 = pneg %p145
        %p596 = pneg %p142
        %p597 = pneg %p166
        %p598 = pneg %p163
        %p599 = pneg %p187
        %p600 = pneg %p184
        %p601 = pneg %p208
        %p602 = pneg %p205
        %p603 = pneg %p229
        %p604 = pneg %p226
        %p605 = pneg %p250
        %p606 = pneg %p247
        %p607 = pneg %p271
        %p608 = pneg %p268
        %p609 = pneg %p292
        %p610 = pneg %p289
        %p611 = pneg %p313
        %p612 = pneg %p310
        %p613 = pneg %p334
        %p614 = pneg %p331
        %p615 = pneg %p362
        %p616 = pneg %p359
        %s617 = sand.u32 %s349, 1
        %s618 = scalar_lea.sflag [#allocation7], %s617
        %s619 = sand.u32 %s349, 1
        %s620 = smul.addr %s619, 8
        %s621 = scalar_lea.vmem [#allocation17], %s620
        %p623 = scmp.eq.s32.totalorder %s40, 0
        // Predicated region
        $region101: #{tpu_custom_call.1} parent=71 // pred_check
          %p624 = pneg %p623
        $region102: #{tpu_custom_call.1} parent=71 // pred_check_branch
          %626 = sbr.rel (%p624) target = $region104
        $region103: #{tpu_custom_call.1} parent=71 // pred_region
          %v627 = vld [vmem:[%s538] sm:$0xff]
          %v628 = vld [vmem:[%s538 + $0x8] sm:$0xff]
          %vm629 = vcmask 654336
          %v630 = vsel %vm629, %v627, 0.0
          %631 = vadd.xlane.f32.xlu0 %v630
          %v632 = vpop.xlane.xlu0 %631
          %v633 = vsel %vm629, %v628, 0.0
          %634 = vadd.xlane.f32.xlu0 %v633
          %v635 = vpop.xlane.xlu0 %634
          %v636 = vrcp.pop 80.0
          %v637 = vmul.f32 80.0, %v636
          %v638 = vsub.f32 1.0, %v637
          %v639 = vmul.f32 %v636, %v638
          %v640 = vadd.f32 %v636, %v639
          %vm641 = vweird.f32 %v636
          %v642 = vsel %vm641, %v636, %v640
          %v643 = vmul.f32 %v632, %v642
          %v644 = vmul.f32 %v635, %v642
          %v645 = vsub.f32 %v627, %v643
          %v646 = vsub.f32 %v628, %v644
          %v647 = vmul.f32 %v645, %v645
          %v648 = vmul.f32 %v646, %v646
          %v649 = vsel %vm629, %v647, 0.0
          %650 = vadd.xlane.f32.xlu0 %v649
          %v651 = vpop.xlane.xlu0 %650
          %v652 = vsel %vm629, %v648, 0.0
          %653 = vadd.xlane.f32.xlu0 %v652
          %v654 = vpop.xlane.xlu0 %653
          %v655 = vmul.f32 %v651, %v642
          %v656 = vmul.f32 %v654, %v642
          %v657 = vadd.f32 %v655, 1e-05
          %v658 = vadd.f32 %v656, 1e-05
          %v659 = vrsqrt.pop %v657
          %v660 = vmul.f32 %v659, %v657
          %v661 = vmul.f32 %v660, %v659
          %v662 = vmul.f32 0.5, %v661
          %v663 = vsub.f32 1.5, %v662
          %v664 = vmul.f32 %v659, %v663
          %vm665 = vweird.f32 %v657
          %vm666 = vweird.f32 %v659
          %vm667 = vmor %vm665, %vm666
          %v668 = vsel %vm667, %v659, %v664
          %v669 = vrsqrt.pop %v658
          %v670 = vmul.f32 %v669, %v658
          %v671 = vmul.f32 %v670, %v669
          %v672 = vmul.f32 0.5, %v671
          %v673 = vsub.f32 1.5, %v672
          %v674 = vmul.f32 %v669, %v673
          %vm675 = vweird.f32 %v658
          %vm676 = vweird.f32 %v669
          %vm677 = vmor %vm675, %vm676
          %v678 = vsel %vm677, %v669, %v674
          %v679 = vmul.f32 %v645, %v668
          %v680 = vmul.f32 %v646, %v678
          %v681 = vld [vmem:[%s5] sm:$0x1]
          %v683 = vperm.slane %v681, 0
          %v685 = vmul.f32 %v679, %v683
          %v686 = vmul.f32 %v680, %v683
          %v687 = vld [vmem:[%s6] sm:$0x1]
          %v689 = vperm.slane %v687, 0
          %v691 = vadd.f32 %v685, %v689
          %v692 = vadd.f32 %v686, %v689
          %v693 = vpack.c.bf16 %v692, %v691
          %v694 = vld [vmem:[%s7] sm:$0x1]
          %v696 = vperm.slane %v694, 0
          %v698 = vmul.f32 %v679, %v696
          %v699 = vmul.f32 %v680, %v696
          %v700 = vld [vmem:[%s8] sm:$0x1]
          %v702 = vperm.slane %v700, 0
          %v704 = vadd.f32 %v698, %v702
          %v705 = vadd.f32 %v699, %v702
          %v706 = vpack.c.bf16 %v705, %v704
          %v707 = vld [vmem:[#allocation13] sm:$0xff]
          %v708 = vld [vmem:[#allocation13 + $0x8] sm:$0xff]
          %v709 = vld [vmem:[#allocation13 + $0x10] sm:$0xff]
          %v710 = vld [vmem:[#allocation13 + $0x18] sm:$0xff]
          %v711 = vld [vmem:[#allocation13 + $0x20] sm:$0xff]
          %v712 = vld [vmem:[#allocation13 + $0x28] sm:$0xff]
          %v713 = vld [vmem:[#allocation13 + $0x30] sm:$0xff]
          %v714 = vld [vmem:[#allocation13 + $0x38] sm:$0xff]
          %v715 = vld [vmem:[#allocation13 + $0x40] sm:$0xff]
          %v716 = vld [vmem:[#allocation13 + $0x48] sm:$0xff]
          %v717 = vld [vmem:[#allocation13 + $0x50] sm:$0xff]
          %v718 = vld [vmem:[#allocation13 + $0x58] sm:$0xff]
          %v719 = vld [vmem:[#allocation13 + $0x60] sm:$0xff]
          %v720 = vld [vmem:[#allocation13 + $0x68] sm:$0xff]
          %v721 = vld [vmem:[#allocation13 + $0x70] sm:$0xff]
          %v722 = vld [vmem:[#allocation13 + $0x78] sm:$0xff]
          %v723 = vld [vmem:[#allocation13 + $0x80] sm:$0xff]
          %v724 = vld [vmem:[#allocation13 + $0x88] sm:$0xff]
          %v725 = vld [vmem:[#allocation13 + $0x90] sm:$0xff]
          %v726 = vld [vmem:[#allocation13 + $0x98] sm:$0xff]
          %v747 = vunpack.c.l.b16 %v707
          %v748 = vunpack.c.h.b16 %v707
          %v749 = vunpack.c.l.b16 %v708
          %v750 = vunpack.c.h.b16 %v708
          %v751 = vunpack.c.l.b16 %v709
          %v752 = vunpack.c.h.b16 %v709
          %v753 = vunpack.c.l.b16 %v710
          %v754 = vunpack.c.h.b16 %v710
          %v755 = vunpack.c.l.b16 %v711
          %v756 = vunpack.c.h.b16 %v711
          %v757 = vunpack.c.l.b16 %v712
          %v758 = vunpack.c.h.b16 %v712
          %v759 = vunpack.c.l.b16 %v713
          %v760 = vunpack.c.h.b16 %v713
          %v761 = vunpack.c.l.b16 %v714
          %v762 = vunpack.c.h.b16 %v714
          %v763 = vunpack.c.l.b16 %v715
          %v764 = vunpack.c.h.b16 %v715
          %v765 = vunpack.c.l.b16 %v716
          %v766 = vunpack.c.h.b16 %v716
          %v767 = vunpack.c.l.b16 %v717
          %v768 = vunpack.c.h.b16 %v717
          %v769 = vunpack.c.l.b16 %v718
          %v770 = vunpack.c.h.b16 %v718
          %v771 = vunpack.c.l.b16 %v719
          %v772 = vunpack.c.h.b16 %v719
          %v773 = vunpack.c.l.b16 %v720
          %v774 = vunpack.c.h.b16 %v720
          %v775 = vunpack.c.l.b16 %v721
          %v776 = vunpack.c.h.b16 %v721
          %v777 = vunpack.c.l.b16 %v722
          %v778 = vunpack.c.h.b16 %v722
          %v779 = vunpack.c.l.b16 %v723
          %v780 = vunpack.c.h.b16 %v723
          %v781 = vunpack.c.l.b16 %v724
          %v782 = vunpack.c.h.b16 %v724
          %v783 = vunpack.c.l.b16 %v725
          %v784 = vunpack.c.h.b16 %v725
          %v785 = vunpack.c.l.b16 %v726
          %v786 = vunpack.c.h.b16 %v726
          %v787 = vpack.c.b16 %v751, %v747
          %v788 = vpack.c.b16 %v752, %v748
          %v789 = vpack.c.b16 %v753, %v749
          %v790 = vpack.c.b16 %v754, %v750
          %v791 = vpack.c.b16 %v759, %v755
          %v792 = vpack.c.b16 %v760, %v756
          %v793 = vpack.c.b16 %v761, %v757
          %v794 = vpack.c.b16 %v762, %v758
          %v795 = vpack.c.b16 %v767, %v763
          %v796 = vpack.c.b16 %v768, %v764
          %v797 = vpack.c.b16 %v769, %v765
          %v798 = vpack.c.b16 %v770, %v766
          %v799 = vpack.c.b16 %v775, %v771
          %v800 = vpack.c.b16 %v776, %v772
          %v801 = vpack.c.b16 %v777, %v773
          %v802 = vpack.c.b16 %v778, %v774
          %v803 = vpack.c.b16 %v783, %v779
          %v804 = vpack.c.b16 %v784, %v780
          %v805 = vpack.c.b16 %v785, %v781
          %v806 = vpack.c.b16 %v786, %v782
          %v828 = vsel %vm629, %v693, 0
          %830 = vmatpush.bf16.msra.mxu0 0
          %831 = vmatpush.bf16.msra.mxu0 0
          %832 = vmatpush.bf16.msra.mxu0 0
          %833 = vmatpush.bf16.msra.mxu0 %v803
          %834 = vmatpush.bf16.msra.mxu0 %v799
          %835 = vmatpush.bf16.msra.mxu0 %v795
          %836 = vmatpush.bf16.msra.mxu0 %v791
          %837 = vmatpush.bf16.msra.mxu0 %v787
          %838 = vmatmul.bf16.gmra.mxu0 %v828
          %v839 = vpop.f32.mrf.mxu0
          %v840 = vadd.f32 0.0, %v839
          %v841 = vpop.f32.mrf.mxu0
          %v842 = vadd.f32 0.0, %v841
          %843 = vdwg.mxu0
          %844 = vmatpush.bf16.msra.mxu0 0
          %845 = vmatpush.bf16.msra.mxu0 0
          %846 = vmatpush.bf16.msra.mxu0 0
          %847 = vmatpush.bf16.msra.mxu0 %v804
          %848 = vmatpush.bf16.msra.mxu0 %v800
          %849 = vmatpush.bf16.msra.mxu0 %v796
          %850 = vmatpush.bf16.msra.mxu0 %v792
          %851 = vmatpush.bf16.msra.mxu0 %v788
          %852 = vmatmul.bf16.gmra.mxu0 %v828
          %v853 = vpop.f32.mrf.mxu0
          %v854 = vadd.f32 0.0, %v853
          %v855 = vpop.f32.mrf.mxu0
          %v856 = vadd.f32 0.0, %v855
          %857 = vdwg.mxu0
          %858 = vmatpush.bf16.msra.mxu0 0
          %859 = vmatpush.bf16.msra.mxu0 0
          %860 = vmatpush.bf16.msra.mxu0 0
          %861 = vmatpush.bf16.msra.mxu0 %v805
          %862 = vmatpush.bf16.msra.mxu0 %v801
          %863 = vmatpush.bf16.msra.mxu0 %v797
          %864 = vmatpush.bf16.msra.mxu0 %v793
          %865 = vmatpush.bf16.msra.mxu0 %v789
          %866 = vmatmul.bf16.gmra.mxu0 %v828
          %v867 = vpop.f32.mrf.mxu0
          %v868 = vadd.f32 0.0, %v867
          %v869 = vpop.f32.mrf.mxu0
          %v870 = vadd.f32 0.0, %v869
          %871 = vdwg.mxu0
          %872 = vmatpush.bf16.msra.mxu0 0
          %873 = vmatpush.bf16.msra.mxu0 0
          %874 = vmatpush.bf16.msra.mxu0 0
          %875 = vmatpush.bf16.msra.mxu0 %v806
          %876 = vmatpush.bf16.msra.mxu0 %v802
          %877 = vmatpush.bf16.msra.mxu0 %v798
          %878 = vmatpush.bf16.msra.mxu0 %v794
          %879 = vmatpush.bf16.msra.mxu0 %v790
          %880 = vmatmul.bf16.gmra.mxu0 %v828
          %v881 = vpop.f32.mrf.mxu0
          %v882 = vadd.f32 0.0, %v881
          %v883 = vpop.f32.mrf.mxu0
          %v884 = vadd.f32 0.0, %v883
          %885 = vdwg.mxu0
          %v886 = vpack.c.bf16 %v854, %v840
          %v887 = vpack.c.bf16 %v882, %v868
          %v888 = vpack.c.bf16 %v856, %v842
          %v889 = vpack.c.bf16 %v884, %v870
          %890 = vst [vmem:[#allocation2] sm:$0xff] %v886
          %891 = vst [vmem:[#allocation2 + $0x8] sm:$0xff] %v887
          %892 = vst [vmem:[#allocation2 + $0x10] sm:$0xff] %v888
          %893 = vst [vmem:[#allocation2 + $0x18] sm:$0xff] %v889
          %v894 = vld [vmem:[#allocation14] sm:$0xff]
          %v895 = vld [vmem:[#allocation14 + $0x8] sm:$0xff]
          %v896 = vld [vmem:[#allocation14 + $0x10] sm:$0xff]
          %v897 = vld [vmem:[#allocation14 + $0x18] sm:$0xff]
          %v898 = vld [vmem:[#allocation14 + $0x20] sm:$0xff]
          %v899 = vld [vmem:[#allocation14 + $0x28] sm:$0xff]
          %v900 = vld [vmem:[#allocation14 + $0x30] sm:$0xff]
          %v901 = vld [vmem:[#allocation14 + $0x38] sm:$0xff]
          %v902 = vld [vmem:[#allocation14 + $0x40] sm:$0xff]
          %v903 = vld [vmem:[#allocation14 + $0x48] sm:$0xff]
          %v904 = vld [vmem:[#allocation14 + $0x50] sm:$0xff]
          %v905 = vld [vmem:[#allocation14 + $0x58] sm:$0xff]
          %v906 = vld [vmem:[#allocation14 + $0x60] sm:$0xff]
          %v907 = vld [vmem:[#allocation14 + $0x68] sm:$0xff]
          %v908 = vld [vmem:[#allocation14 + $0x70] sm:$0xff]
          %v909 = vld [vmem:[#allocation14 + $0x78] sm:$0xff]
          %v910 = vld [vmem:[#allocation14 + $0x80] sm:$0xff]
          %v911 = vld [vmem:[#allocation14 + $0x88] sm:$0xff]
          %v912 = vld [vmem:[#allocation14 + $0x90] sm:$0xff]
          %v913 = vld [vmem:[#allocation14 + $0x98] sm:$0xff]
          %v934 = vunpack.c.l.b16 %v894
          %v935 = vunpack.c.h.b16 %v894
          %v936 = vunpack.c.l.b16 %v895
          %v937 = vunpack.c.h.b16 %v895
          %v938 = vunpack.c.l.b16 %v896
          %v939 = vunpack.c.h.b16 %v896
          %v940 = vunpack.c.l.b16 %v897
          %v941 = vunpack.c.h.b16 %v897
          %v942 = vunpack.c.l.b16 %v898
          %v943 = vunpack.c.h.b16 %v898
          %v944 = vunpack.c.l.b16 %v899
          %v945 = vunpack.c.h.b16 %v899
          %v946 = vunpack.c.l.b16 %v900
          %v947 = vunpack.c.h.b16 %v900
          %v948 = vunpack.c.l.b16 %v901
          %v949 = vunpack.c.h.b16 %v901
          %v950 = vunpack.c.l.b16 %v902
          %v951 = vunpack.c.h.b16 %v902
          %v952 = vunpack.c.l.b16 %v903
          %v953 = vunpack.c.h.b16 %v903
          %v954 = vunpack.c.l.b16 %v904
          %v955 = vunpack.c.h.b16 %v904
          %v956 = vunpack.c.l.b16 %v905
          %v957 = vunpack.c.h.b16 %v905
          %v958 = vunpack.c.l.b16 %v906
          %v959 = vunpack.c.h.b16 %v906
          %v960 = vunpack.c.l.b16 %v907
          %v961 = vunpack.c.h.b16 %v907
          %v962 = vunpack.c.l.b16 %v908
          %v963 = vunpack.c.h.b16 %v908
          %v964 = vunpack.c.l.b16 %v909
          %v965 = vunpack.c.h.b16 %v909
          %v966 = vunpack.c.l.b16 %v910
          %v967 = vunpack.c.h.b16 %v910
          %v968 = vunpack.c.l.b16 %v911
          %v969 = vunpack.c.h.b16 %v911
          %v970 = vunpack.c.l.b16 %v912
          %v971 = vunpack.c.h.b16 %v912
          %v972 = vunpack.c.l.b16 %v913
          %v973 = vunpack.c.h.b16 %v913
          %v974 = vpack.c.b16 %v938, %v934
          %v975 = vpack.c.b16 %v939, %v935
          %v976 = vpack.c.b16 %v940, %v936
          %v977 = vpack.c.b16 %v941, %v937
          %v978 = vpack.c.b16 %v946, %v942
          %v979 = vpack.c.b16 %v947, %v943
          %v980 = vpack.c.b16 %v948, %v944
          %v981 = vpack.c.b16 %v949, %v945
          %v982 = vpack.c.b16 %v954, %v950
          %v983 = vpack.c.b16 %v955, %v951
          %v984 = vpack.c.b16 %v956, %v952
          %v985 = vpack.c.b16 %v957, %v953
          %v986 = vpack.c.b16 %v962, %v958
          %v987 = vpack.c.b16 %v963, %v959
          %v988 = vpack.c.b16 %v964, %v960
          %v989 = vpack.c.b16 %v965, %v961
          %v990 = vpack.c.b16 %v970, %v966
          %v991 = vpack.c.b16 %v971, %v967
          %v992 = vpack.c.b16 %v972, %v968
          %v993 = vpack.c.b16 %v973, %v969
          %v1015 = vsel %vm629, %v706, 0
          %1017 = vmatpush.bf16.msra.mxu0 0
          %1018 = vmatpush.bf16.msra.mxu0 0
          %1019 = vmatpush.bf16.msra.mxu0 0
          %1020 = vmatpush.bf16.msra.mxu0 %v990
          %1021 = vmatpush.bf16.msra.mxu0 %v986
          %1022 = vmatpush.bf16.msra.mxu0 %v982
          %1023 = vmatpush.bf16.msra.mxu0 %v978
          %1024 = vmatpush.bf16.msra.mxu0 %v974
          %1025 = vmatmul.bf16.gmra.mxu0 %v1015
          %v1026 = vpop.f32.mrf.mxu0
          %v1027 = vadd.f32 0.0, %v1026
          %v1028 = vpop.f32.mrf.mxu0
          %v1029 = vadd.f32 0.0, %v1028
          %1030 = vdwg.mxu0
          %1031 = vmatpush.bf16.msra.mxu0 0
          %1032 = vmatpush.bf16.msra.mxu0 0
          %1033 = vmatpush.bf16.msra.mxu0 0
          %1034 = vmatpush.bf16.msra.mxu0 %v991
          %1035 = vmatpush.bf16.msra.mxu0 %v987
          %1036 = vmatpush.bf16.msra.mxu0 %v983
          %1037 = vmatpush.bf16.msra.mxu0 %v979
          %1038 = vmatpush.bf16.msra.mxu0 %v975
          %1039 = vmatmul.bf16.gmra.mxu0 %v1015
          %v1040 = vpop.f32.mrf.mxu0
          %v1041 = vadd.f32 0.0, %v1040
          %v1042 = vpop.f32.mrf.mxu0
          %v1043 = vadd.f32 0.0, %v1042
          %1044 = vdwg.mxu0
          %1045 = vmatpush.bf16.msra.mxu0 0
          %1046 = vmatpush.bf16.msra.mxu0 0
          %1047 = vmatpush.bf16.msra.mxu0 0
          %1048 = vmatpush.bf16.msra.mxu0 %v992
          %1049 = vmatpush.bf16.msra.mxu0 %v988
          %1050 = vmatpush.bf16.msra.mxu0 %v984
          %1051 = vmatpush.bf16.msra.mxu0 %v980
          %1052 = vmatpush.bf16.msra.mxu0 %v976
          %1053 = vmatmul.bf16.gmra.mxu0 %v1015
          %v1054 = vpop.f32.mrf.mxu0
          %v1055 = vadd.f32 0.0, %v1054
          %v1056 = vpop.f32.mrf.mxu0
          %v1057 = vadd.f32 0.0, %v1056
          %1058 = vdwg.mxu0
          %1059 = vmatpush.bf16.msra.mxu0 0
          %1060 = vmatpush.bf16.msra.mxu0 0
          %1061 = vmatpush.bf16.msra.mxu0 0
          %1062 = vmatpush.bf16.msra.mxu0 %v993
          %1063 = vmatpush.bf16.msra.mxu0 %v989
          %1064 = vmatpush.bf16.msra.mxu0 %v985
          %1065 = vmatpush.bf16.msra.mxu0 %v981
          %1066 = vmatpush.bf16.msra.mxu0 %v977
          %1067 = vmatmul.bf16.gmra.mxu0 %v1015
          %v1068 = vpop.f32.mrf.mxu0
          %v1069 = vadd.f32 0.0, %v1068
          %v1070 = vpop.f32.mrf.mxu0
          %v1071 = vadd.f32 0.0, %v1070
          %1072 = vdwg.mxu0
          %v1073 = vpack.c.bf16 %v1041, %v1027
          %v1074 = vpack.c.bf16 %v1069, %v1055
          %v1075 = vpack.c.bf16 %v1043, %v1029
          %v1076 = vpack.c.bf16 %v1071, %v1057
          %1077 = vst [vmem:[#allocation3] sm:$0xff] %v1073
          %1078 = vst [vmem:[#allocation3 + $0x8] sm:$0xff] %v1074
          %1079 = vst [vmem:[#allocation3 + $0x10] sm:$0xff] %v1075
          %1080 = vst [vmem:[#allocation3 + $0x18] sm:$0xff] %v1076
        $region104: #{tpu_custom_call.1} parent=71 // pred_fallthru
          _
        %v1081 = vld [vmem:[%s528] sm:$0xff]
        %vm1082 = vcmask 523264
        %v1083 = vsel %vm1082, %v1081, 0.0
        %1084 = vadd.xlane.f32.xlu0 %v1083
        %v1085 = vpop.xlane.xlu0 %1084
        %v1086 = vrcp.pop 64.0
        %v1087 = vmul.f32 64.0, %v1086
        %v1088 = vsub.f32 1.0, %v1087
        %v1089 = vmul.f32 %v1086, %v1088
        %v1090 = vadd.f32 %v1086, %v1089
        %vm1091 = vweird.f32 %v1086
        %v1092 = vsel %vm1091, %v1086, %v1090
        %v1093 = vmul.f32 %v1085, %v1092
        %v1094 = vsub.f32 %v1081, %v1093
        %v1095 = vmul.f32 %v1094, %v1094
        %v1096 = vsel %vm1082, %v1095, 0.0
        %1097 = vadd.xlane.f32.xlu0 %v1096
        %v1098 = vpop.xlane.xlu0 %1097
        %v1099 = vmul.f32 %v1098, %v1092
        %v1100 = vadd.f32 %v1099, 1e-05
        %v1101 = vrsqrt.pop %v1100
        %v1102 = vmul.f32 %v1101, %v1100
        %v1103 = vmul.f32 %v1102, %v1101
        %v1104 = vmul.f32 0.5, %v1103
        %v1105 = vsub.f32 1.5, %v1104
        %v1106 = vmul.f32 %v1101, %v1105
        %vm1107 = vweird.f32 %v1100
        %vm1108 = vweird.f32 %v1101
        %vm1109 = vmor %vm1107, %vm1108
        %v1110 = vsel %vm1109, %v1101, %v1106
        %v1111 = vmul.f32 %v1094, %v1110
        %v1112 = vld [vmem:[%s3] sm:$0x1]
        %v1114 = vperm.slane %v1112, 0
        %v1116 = vmul.f32 %v1111, %v1114
        %v1117 = vld [vmem:[%s4] sm:$0x1]
        %v1119 = vperm.slane %v1117, 0
        %v1121 = vadd.f32 %v1116, %v1119
        %v1122 = vmul.f32 %v1121, 0.088388346
        %v1123 = vpack.c.bf16 %v1122, %v1122
        %v1124 = vld [vmem:[#allocation11] sm:$0xff]
        %v1125 = vld [vmem:[#allocation11 + $0x8] sm:$0xff]
        %v1126 = vld [vmem:[#allocation11 + $0x10] sm:$0xff]
        %v1127 = vld [vmem:[#allocation11 + $0x18] sm:$0xff]
        %v1128 = vld [vmem:[#allocation11 + $0x20] sm:$0xff]
        %v1129 = vld [vmem:[#allocation11 + $0x28] sm:$0xff]
        %v1130 = vld [vmem:[#allocation11 + $0x30] sm:$0xff]
        %v1131 = vld [vmem:[#allocation11 + $0x38] sm:$0xff]
        %v1132 = vld [vmem:[#allocation11 + $0x40] sm:$0xff]
        %v1133 = vld [vmem:[#allocation11 + $0x48] sm:$0xff]
        %v1134 = vld [vmem:[#allocation11 + $0x50] sm:$0xff]
        %v1135 = vld [vmem:[#allocation11 + $0x58] sm:$0xff]
        %v1136 = vld [vmem:[#allocation11 + $0x60] sm:$0xff]
        %v1137 = vld [vmem:[#allocation11 + $0x68] sm:$0xff]
        %v1138 = vld [vmem:[#allocation11 + $0x70] sm:$0xff]
        %v1139 = vld [vmem:[#allocation11 + $0x78] sm:$0xff]
        %v1156 = vunpack.c.l.b16 %v1124
        %v1157 = vunpack.c.h.b16 %v1124
        %v1158 = vunpack.c.l.b16 %v1125
        %v1159 = vunpack.c.h.b16 %v1125
        %v1160 = vunpack.c.l.b16 %v1126
        %v1161 = vunpack.c.h.b16 %v1126
        %v1162 = vunpack.c.l.b16 %v1127
        %v1163 = vunpack.c.h.b16 %v1127
        %v1164 = vunpack.c.l.b16 %v1128
        %v1165 = vunpack.c.h.b16 %v1128
        %v1166 = vunpack.c.l.b16 %v1129
        %v1167 = vunpack.c.h.b16 %v1129
        %v1168 = vunpack.c.l.b16 %v1130
        %v1169 = vunpack.c.h.b16 %v1130
        %v1170 = vunpack.c.l.b16 %v1131
        %v1171 = vunpack.c.h.b16 %v1131
        %v1172 = vunpack.c.l.b16 %v1132
        %v1173 = vunpack.c.h.b16 %v1132
        %v1174 = vunpack.c.l.b16 %v1133
        %v1175 = vunpack.c.h.b16 %v1133
        %v1176 = vunpack.c.l.b16 %v1134
        %v1177 = vunpack.c.h.b16 %v1134
        %v1178 = vunpack.c.l.b16 %v1135
        %v1179 = vunpack.c.h.b16 %v1135
        %v1180 = vunpack.c.l.b16 %v1136
        %v1181 = vunpack.c.h.b16 %v1136
        %v1182 = vunpack.c.l.b16 %v1137
        %v1183 = vunpack.c.h.b16 %v1137
        %v1184 = vunpack.c.l.b16 %v1138
        %v1185 = vunpack.c.h.b16 %v1138
        %v1186 = vunpack.c.l.b16 %v1139
        %v1187 = vunpack.c.h.b16 %v1139
        %v1188 = vpack.c.b16 %v1160, %v1156
        %v1189 = vpack.c.b16 %v1161, %v1157
        %v1190 = vpack.c.b16 %v1162, %v1158
        %v1191 = vpack.c.b16 %v1163, %v1159
        %v1192 = vpack.c.b16 %v1168, %v1164
        %v1193 = vpack.c.b16 %v1169, %v1165
        %v1194 = vpack.c.b16 %v1170, %v1166
        %v1195 = vpack.c.b16 %v1171, %v1167
        %v1196 = vpack.c.b16 %v1176, %v1172
        %v1197 = vpack.c.b16 %v1177, %v1173
        %v1198 = vpack.c.b16 %v1178, %v1174
        %v1199 = vpack.c.b16 %v1179, %v1175
        %v1200 = vpack.c.b16 %v1184, %v1180
        %v1201 = vpack.c.b16 %v1185, %v1181
        %v1202 = vpack.c.b16 %v1186, %v1182
        %v1203 = vpack.c.b16 %v1187, %v1183
        %v1221 = vsel %vm1082, %v1123, 0
        %1223 = vmatpush.bf16.msra.mxu0 0
        %1224 = vmatpush.bf16.msra.mxu0 0
        %1225 = vmatpush.bf16.msra.mxu0 0
        %1226 = vmatpush.bf16.msra.mxu0 0
        %1227 = vmatpush.bf16.msra.mxu0 %v1200
        %1228 = vmatpush.bf16.msra.mxu0 %v1196
        %1229 = vmatpush.bf16.msra.mxu0 %v1192
        %1230 = vmatpush.bf16.msra.mxu0 %v1188
        %1231 = vmatmul.bf16.gmra.mxu0 %v1221
        %v1232 = vpop.f32.mrf.mxu0
        %v1233 = vadd.f32 0.0, %v1232
        %v1234 = vpop.f32.mrf.mxu0
        %1235 = vdwg.mxu0
        %1236 = vmatpush.bf16.msra.mxu0 0
        %1237 = vmatpush.bf16.msra.mxu0 0
        %1238 = vmatpush.bf16.msra.mxu0 0
        %1239 = vmatpush.bf16.msra.mxu0 0
        %1240 = vmatpush.bf16.msra.mxu0 %v1201
        %1241 = vmatpush.bf16.msra.mxu0 %v1197
        %1242 = vmatpush.bf16.msra.mxu0 %v1193
        %1243 = vmatpush.bf16.msra.mxu0 %v1189
        %1244 = vmatmul.bf16.gmra.mxu0 %v1221
        %v1245 = vpop.f32.mrf.mxu0
        %v1246 = vadd.f32 0.0, %v1245
        %v1247 = vpop.f32.mrf.mxu0
        %1248 = vdwg.mxu0
        %1249 = vmatpush.bf16.msra.mxu0 0
        %1250 = vmatpush.bf16.msra.mxu0 0
        %1251 = vmatpush.bf16.msra.mxu0 0
        %1252 = vmatpush.bf16.msra.mxu0 0
        %1253 = vmatpush.bf16.msra.mxu0 %v1202
        %1254 = vmatpush.bf16.msra.mxu0 %v1198
        %1255 = vmatpush.bf16.msra.mxu0 %v1194
        %1256 = vmatpush.bf16.msra.mxu0 %v1190
        %1257 = vmatmul.bf16.gmra.mxu0 %v1221
        %v1258 = vpop.f32.mrf.mxu0
        %v1259 = vadd.f32 0.0, %v1258
        %v1260 = vpop.f32.mrf.mxu0
        %1261 = vdwg.mxu0
        %1262 = vmatpush.bf16.msra.mxu0 0
        %1263 = vmatpush.bf16.msra.mxu0 0
        %1264 = vmatpush.bf16.msra.mxu0 0
        %1265 = vmatpush.bf16.msra.mxu0 0
        %1266 = vmatpush.bf16.msra.mxu0 %v1203
        %1267 = vmatpush.bf16.msra.mxu0 %v1199
        %1268 = vmatpush.bf16.msra.mxu0 %v1195
        %1269 = vmatpush.bf16.msra.mxu0 %v1191
        %1270 = vmatmul.bf16.gmra.mxu0 %v1221
        %v1271 = vpop.f32.mrf.mxu0
        %v1272 = vadd.f32 0.0, %v1271
        %v1273 = vpop.f32.mrf.mxu0
        %1274 = vdwg.mxu0
        %v1275 = vpack.c.bf16 %v1246, %v1233
        %v1276 = vpack.c.bf16 %v1272, %v1259
        %v1277 = vld [vmem:[%s548] sm:$0xf]
        %v1278 = vunpack.c.l.bf16 %v1277
        %v1279 = vld [vmem:[#allocation2] sm:$0xf]
        %v1280 = vld [vmem:[#allocation2 + $0x10] sm:$0xf]
        %v1283 = vunpack.c.l.b16 %v1279
        %v1284 = vunpack.c.l.b16 %v1280
        %v1285 = vpack.c.b16 %v1284, %v1283
        %1287 = vmatpush.bf16.xpose.msra.mxu0 0
        %1288 = vmatpush.bf16.xpose.msra.mxu0 0
        %1289 = vmatpush.bf16.xpose.msra.mxu0 0
        %1290 = vmatpush.bf16.xpose.msra.mxu0 0
        %1291 = vmatpush.bf16.xpose.msra.mxu0 0
        %1292 = vmatpush.bf16.xpose.msra.mxu0 0
        %1293 = vmatpush.bf16.xpose.msra.mxu0 0
        %1294 = vmatpush.bf16.xpose.msra.mxu0 %v1285
        %1295 = vmatmul.bf16.gmra.mxu0 %v1275
        %v1296 = vpop.f32.mrf.mxu0
        %v1297 = vadd.f32 %v1278, %v1296
        %v1298 = vpop.f32.mrf.mxu0
        %1299 = vdwg.mxu0
        %vm1300 = vcmask 130048
        %v1301 = vsel %vm1300, %v1297, -inf
        %1302 = vmax.xlane.f32.xlu0 %v1301
        %v1303 = vpop.xlane.xlu0 %1302
        %v1304 = vsub.f32 %v1297, %v1303
        %v1305 = vmul.f32 %v1304, 1.442695
        %v1306 = vpow.pop %v1305
        %v1307 = vsel %vm1300, %v1306, 0.0
        %1308 = vadd.xlane.f32.xlu0 %v1307
        %v1309 = vpop.xlane.xlu0 %1308
        %v1310 = vrcp.pop %v1309
        %v1311 = vmul.f32 %v1306, %v1310
        %v1312 = vpack.c.bf16 %v1311, %v1311
        %v1313 = vld [vmem:[#allocation3] sm:$0xf]
        %v1314 = vld [vmem:[#allocation3 + $0x10] sm:$0xf]
        %v1317 = vunpack.c.l.b16 %v1313
        %v1318 = vunpack.c.l.b16 %v1314
        %v1319 = vpack.c.b16 %v1318, %v1317
        %v1322 = vsel %vm1300, %v1312, 0
        %1324 = vmatpush.bf16.msra.mxu0 0
        %1325 = vmatpush.bf16.msra.mxu0 0
        %1326 = vmatpush.bf16.msra.mxu0 0
        %1327 = vmatpush.bf16.msra.mxu0 0
        %1328 = vmatpush.bf16.msra.mxu0 0
        %1329 = vmatpush.bf16.msra.mxu0 0
        %1330 = vmatpush.bf16.msra.mxu0 0
        %1331 = vmatpush.bf16.msra.mxu0 %v1319
        %1332 = vmatmul.bf16.gmra.mxu0 %v1322
        %v1333 = vpop.f32.mrf.mxu0
        %v1334 = vadd.f32 0.0, %v1333
        %v1335 = vpop.f32.mrf.mxu0
        %1336 = vdwg.mxu0
        %v1337 = vpack.c.bf16 %v1334, %v1334
        %1338 = vst [vmem:[#allocation4] sm:$0xf] %v1337
        %v1339 = vld [vmem:[#allocation2 + $0x4] sm:$0xf]
        %v1340 = vld [vmem:[#allocation2 + $0x14] sm:$0xf]
        %v1342 = vunpack.c.h.b16 %v1275
        %v1343 = vpack.c.b16 %v1342, %v1342
        %v1347 = vunpack.c.l.b16 %v1339
        %v1348 = vunpack.c.l.b16 %v1340
        %v1349 = vpack.c.b16 %v1348, %v1347
        %1351 = vmatpush.bf16.xpose.msra.mxu0 0
        %1352 = vmatpush.bf16.xpose.msra.mxu0 0
        %1353 = vmatpush.bf16.xpose.msra.mxu0 0
        %1354 = vmatpush.bf16.xpose.msra.mxu0 0
        %1355 = vmatpush.bf16.xpose.msra.mxu0 0
        %1356 = vmatpush.bf16.xpose.msra.mxu0 0
        %1357 = vmatpush.bf16.xpose.msra.mxu0 0
        %1358 = vmatpush.bf16.xpose.msra.mxu0 %v1349
        %1359 = vmatmul.bf16.gmra.mxu0 %v1343
        %v1360 = vpop.f32.mrf.mxu0
        %v1361 = vadd.f32 %v1278, %v1360
        %v1362 = vpop.f32.mrf.mxu0
        %1363 = vdwg.mxu0
        %v1364 = vsel %vm1300, %v1361, -inf
        %1365 = vmax.xlane.f32.xlu0 %v1364
        %v1366 = vpop.xlane.xlu0 %1365
        %v1367 = vsub.f32 %v1361, %v1366
        %v1368 = vmul.f32 %v1367, 1.442695
        %v1369 = vpow.pop %v1368
        %v1370 = vsel %vm1300, %v1369, 0.0
        %1371 = vadd.xlane.f32.xlu0 %v1370
        %v1372 = vpop.xlane.xlu0 %1371
        %v1373 = vrcp.pop %v1372
        %v1374 = vmul.f32 %v1369, %v1373
        %v1375 = vpack.c.bf16 %v1374, %v1374
        %v1376 = vld [vmem:[#allocation3 + $0x4] sm:$0xf]
        %v1377 = vld [vmem:[#allocation3 + $0x14] sm:$0xf]
        %v1380 = vunpack.c.l.b16 %v1376
        %v1381 = vunpack.c.l.b16 %v1377
        %v1382 = vpack.c.b16 %v1381, %v1380
        %v1385 = vsel %vm1300, %v1375, 0
        %1387 = vmatpush.bf16.msra.mxu0 0
        %1388 = vmatpush.bf16.msra.mxu0 0
        %1389 = vmatpush.bf16.msra.mxu0 0
        %1390 = vmatpush.bf16.msra.mxu0 0
        %1391 = vmatpush.bf16.msra.mxu0 0
        %1392 = vmatpush.bf16.msra.mxu0 0
        %1393 = vmatpush.bf16.msra.mxu0 0
        %1394 = vmatpush.bf16.msra.mxu0 %v1382
        %1395 = vmatmul.bf16.gmra.mxu0 %v1385
        %v1396 = vpop.f32.mrf.mxu0
        %v1397 = vadd.f32 0.0, %v1396
        %v1398 = vpop.f32.mrf.mxu0
        %1399 = vdwg.mxu0
        %v1400 = vpack.c.bf16 %v1397, %v1397
        %1401 = vst [vmem:[#allocation4 + $0x4] sm:$0xf] %v1400
        %v1402 = vld [vmem:[#allocation2 + $0x8] sm:$0xf]
        %v1403 = vld [vmem:[#allocation2 + $0x18] sm:$0xf]
        %v1406 = vunpack.c.l.b16 %v1402
        %v1407 = vunpack.c.l.b16 %v1403
        %v1408 = vpack.c.b16 %v1407, %v1406
        %1410 = vmatpush.bf16.xpose.msra.mxu0 0
        %1411 = vmatpush.bf16.xpose.msra.mxu0 0
        %1412 = vmatpush.bf16.xpose.msra.mxu0 0
        %1413 = vmatpush.bf16.xpose.msra.mxu0 0
        %1414 = vmatpush.bf16.xpose.msra.mxu0 0
        %1415 = vmatpush.bf16.xpose.msra.mxu0 0
        %1416 = vmatpush.bf16.xpose.msra.mxu0 0
        %1417 = vmatpush.bf16.xpose.msra.mxu0 %v1408
        %1418 = vmatmul.bf16.gmra.mxu0 %v1276
        %v1419 = vpop.f32.mrf.mxu0
        %v1420 = vadd.f32 %v1278, %v1419
        %v1421 = vpop.f32.mrf.mxu0
        %1422 = vdwg.mxu0
        %v1423 = vsel %vm1300, %v1420, -inf
        %1424 = vmax.xlane.f32.xlu0 %v1423
        %v1425 = vpop.xlane.xlu0 %1424
        %v1426 = vsub.f32 %v1420, %v1425
        %v1427 = vmul.f32 %v1426, 1.442695
        %v1428 = vpow.pop %v1427
        %v1429 = vsel %vm1300, %v1428, 0.0
        %1430 = vadd.xlane.f32.xlu0 %v1429
        %v1431 = vpop.xlane.xlu0 %1430
        %v1432 = vrcp.pop %v1431
        %v1433 = vmul.f32 %v1428, %v1432
        %v1434 = vpack.c.bf16 %v1433, %v1433
        %v1435 = vld [vmem:[#allocation3 + $0x8] sm:$0xf]
        %v1436 = vld [vmem:[#allocation3 + $0x18] sm:$0xf]
        %v1439 = vunpack.c.l.b16 %v1435
        %v1440 = vunpack.c.l.b16 %v1436
        %v1441 = vpack.c.b16 %v1440, %v1439
        %v1444 = vsel %vm1300, %v1434, 0
        %1446 = vmatpush.bf16.msra.mxu0 0
        %1447 = vmatpush.bf16.msra.mxu0 0
        %1448 = vmatpush.bf16.msra.mxu0 0
        %1449 = vmatpush.bf16.msra.mxu0 0
        %1450 = vmatpush.bf16.msra.mxu0 0
        %1451 = vmatpush.bf16.msra.mxu0 0
        %1452 = vmatpush.bf16.msra.mxu0 0
        %1453 = vmatpush.bf16.msra.mxu0 %v1441
        %1454 = vmatmul.bf16.gmra.mxu0 %v1444
        %v1455 = vpop.f32.mrf.mxu0
        %v1456 = vadd.f32 0.0, %v1455
        %v1457 = vpop.f32.mrf.mxu0
        %1458 = vdwg.mxu0
        %v1459 = vpack.c.bf16 %v1456, %v1456
        %1460 = vst [vmem:[#allocation4 + $0x8] sm:$0xf] %v1459
        %v1461 = vld [vmem:[#allocation2 + $0xc] sm:$0xf]
        %v1462 = vld [vmem:[#allocation2 + $0x1c] sm:$0xf]
        %v1464 = vunpack.c.h.b16 %v1276
        %v1465 = vpack.c.b16 %v1464, %v1464
        %v1469 = vunpack.c.l.b16 %v1461
        %v1470 = vunpack.c.l.b16 %v1462
        %v1471 = vpack.c.b16 %v1470, %v1469
        %1473 = vmatpush.bf16.xpose.msra.mxu0 0
        %1474 = vmatpush.bf16.xpose.msra.mxu0 0
        %1475 = vmatpush.bf16.xpose.msra.mxu0 0
        %1476 = vmatpush.bf16.xpose.msra.mxu0 0
        %1477 = vmatpush.bf16.xpose.msra.mxu0 0
        %1478 = vmatpush.bf16.xpose.msra.mxu0 0
        %1479 = vmatpush.bf16.xpose.msra.mxu0 0
        %1480 = vmatpush.bf16.xpose.msra.mxu0 %v1471
        %1481 = vmatmul.bf16.gmra.mxu0 %v1465
        %v1482 = vpop.f32.mrf.mxu0
        %v1483 = vadd.f32 %v1278, %v1482
        %v1484 = vpop.f32.mrf.mxu0
        %1485 = vdwg.mxu0
        %v1486 = vsel %vm1300, %v1483, -inf
        %1487 = vmax.xlane.f32.xlu0 %v1486
        %v1488 = vpop.xlane.xlu0 %1487
        %v1489 = vsub.f32 %v1483, %v1488
        %v1490 = vmul.f32 %v1489, 1.442695
        %v1491 = vpow.pop %v1490
        %v1492 = vsel %vm1300, %v1491, 0.0
        %1493 = vadd.xlane.f32.xlu0 %v1492
        %v1494 = vpop.xlane.xlu0 %1493
        %v1495 = vrcp.pop %v1494
        %v1496 = vmul.f32 %v1491, %v1495
        %v1497 = vpack.c.bf16 %v1496, %v1496
        %v1498 = vld [vmem:[#allocation3 + $0xc] sm:$0xf]
        %v1499 = vld [vmem:[#allocation3 + $0x1c] sm:$0xf]
        %v1502 = vunpack.c.l.b16 %v1498
        %v1503 = vunpack.c.l.b16 %v1499
        %v1504 = vpack.c.b16 %v1503, %v1502
        %v1507 = vsel %vm1300, %v1497, 0
        %1509 = vmatpush.bf16.msra.mxu0 0
        %1510 = vmatpush.bf16.msra.mxu0 0
        %1511 = vmatpush.bf16.msra.mxu0 0
        %1512 = vmatpush.bf16.msra.mxu0 0
        %1513 = vmatpush.bf16.msra.mxu0 0
        %1514 = vmatpush.bf16.msra.mxu0 0
        %1515 = vmatpush.bf16.msra.mxu0 0
        %1516 = vmatpush.bf16.msra.mxu0 %v1504
        %1517 = vmatmul.bf16.gmra.mxu0 %v1507
        %v1518 = vpop.f32.mrf.mxu0
        %v1519 = vadd.f32 0.0, %v1518
        %v1520 = vpop.f32.mrf.mxu0
        %1521 = vdwg.mxu0
        %v1522 = vpack.c.bf16 %v1519, %v1519
        %1523 = vst [vmem:[#allocation4 + $0xc] sm:$0xf] %v1522
        %v1524 = vld [vmem:[#allocation4] sm:$0xff]
        %v1525 = vld [vmem:[#allocation4 + $0x8] sm:$0xff]
        %v1526 = vld [vmem:[#allocation16] sm:$0xf]
        %v1527 = vld [vmem:[#allocation16 + $0x4] sm:$0xf]
        %v1528 = vld [vmem:[#allocation16 + $0x8] sm:$0xf]
        %v1529 = vld [vmem:[#allocation16 + $0xc] sm:$0xf]
        %v1530 = vld [vmem:[#allocation16 + $0x10] sm:$0xf]
        %v1531 = vld [vmem:[#allocation16 + $0x14] sm:$0xf]
        %v1532 = vld [vmem:[#allocation16 + $0x18] sm:$0xf]
        %v1533 = vld [vmem:[#allocation16 + $0x1c] sm:$0xf]
        %v1534 = vld [vmem:[#allocation16 + $0x20] sm:$0xf]
        %v1535 = vld [vmem:[#allocation16 + $0x24] sm:$0xf]
        %v1536 = vld [vmem:[#allocation16 + $0x28] sm:$0xf]
        %v1537 = vld [vmem:[#allocation16 + $0x2c] sm:$0xf]
        %v1538 = vld [vmem:[#allocation16 + $0x30] sm:$0xf]
        %v1539 = vld [vmem:[#allocation16 + $0x34] sm:$0xf]
        %v1540 = vld [vmem:[#allocation16 + $0x38] sm:$0xf]
        %v1541 = vld [vmem:[#allocation16 + $0x3c] sm:$0xf]
        %v1542 = vld [vmem:[#allocation16 + $0x40] sm:$0xf]
        %v1543 = vld [vmem:[#allocation16 + $0x44] sm:$0xf]
        %v1544 = vld [vmem:[#allocation16 + $0x48] sm:$0xf]
        %v1545 = vld [vmem:[#allocation16 + $0x4c] sm:$0xf]
        %v1546 = vld [vmem:[#allocation16 + $0x50] sm:$0xf]
        %v1547 = vld [vmem:[#allocation16 + $0x54] sm:$0xf]
        %v1548 = vld [vmem:[#allocation16 + $0x58] sm:$0xf]
        %v1549 = vld [vmem:[#allocation16 + $0x5c] sm:$0xf]
        %v1550 = vld [vmem:[#allocation16 + $0x60] sm:$0xf]
        %v1551 = vld [vmem:[#allocation16 + $0x64] sm:$0xf]
        %v1552 = vld [vmem:[#allocation16 + $0x68] sm:$0xf]
        %v1553 = vld [vmem:[#allocation16 + $0x6c] sm:$0xf]
        %v1554 = vld [vmem:[#allocation16 + $0x70] sm:$0xf]
        %v1555 = vld [vmem:[#allocation16 + $0x74] sm:$0xf]
        %v1556 = vld [vmem:[#allocation16 + $0x78] sm:$0xf]
        %v1557 = vld [vmem:[#allocation16 + $0x7c] sm:$0xf]
        %v1558 = vld [vmem:[#allocation16 + $0x80] sm:$0xf]
        %v1559 = vld [vmem:[#allocation16 + $0x84] sm:$0xf]
        %v1560 = vld [vmem:[#allocation16 + $0x88] sm:$0xf]
        %v1561 = vld [vmem:[#allocation16 + $0x8c] sm:$0xf]
        %v1562 = vld [vmem:[#allocation16 + $0x90] sm:$0xf]
        %v1563 = vld [vmem:[#allocation16 + $0x94] sm:$0xf]
        %v1564 = vld [vmem:[#allocation16 + $0x98] sm:$0xf]
        %v1565 = vld [vmem:[#allocation16 + $0x9c] sm:$0xf]
        %v1566 = vld [vmem:[#allocation16 + $0xa0] sm:$0xf]
        %v1567 = vld [vmem:[#allocation16 + $0xa4] sm:$0xf]
        %v1568 = vld [vmem:[#allocation16 + $0xa8] sm:$0xf]
        %v1569 = vld [vmem:[#allocation16 + $0xac] sm:$0xf]
        %v1570 = vld [vmem:[#allocation16 + $0xb0] sm:$0xf]
        %v1571 = vld [vmem:[#allocation16 + $0xb4] sm:$0xf]
        %v1572 = vld [vmem:[#allocation16 + $0xb8] sm:$0xf]
        %v1573 = vld [vmem:[#allocation16 + $0xbc] sm:$0xf]
        %v1574 = vld [vmem:[#allocation16 + $0xc0] sm:$0xf]
        %v1575 = vld [vmem:[#allocation16 + $0xc4] sm:$0xf]
        %v1576 = vld [vmem:[#allocation16 + $0xc8] sm:$0xf]
        %v1577 = vld [vmem:[#allocation16 + $0xcc] sm:$0xf]
        %v1578 = vld [vmem:[#allocation16 + $0xd0] sm:$0xf]
        %v1579 = vld [vmem:[#allocation16 + $0xd4] sm:$0xf]
        %v1580 = vld [vmem:[#allocation16 + $0xd8] sm:$0xf]
        %v1581 = vld [vmem:[#allocation16 + $0xdc] sm:$0xf]
        %v1582 = vld [vmem:[#allocation16 + $0xe0] sm:$0xf]
        %v1583 = vld [vmem:[#allocation16 + $0xe4] sm:$0xf]
        %v1584 = vld [vmem:[#allocation16 + $0xe8] sm:$0xf]
        %v1585 = vld [vmem:[#allocation16 + $0xec] sm:$0xf]
        %v1586 = vld [vmem:[#allocation16 + $0xf0] sm:$0xf]
        %v1587 = vld [vmem:[#allocation16 + $0xf4] sm:$0xf]
        %v1588 = vld [vmem:[#allocation16 + $0xf8] sm:$0xf]
        %v1589 = vld [vmem:[#allocation16 + $0xfc] sm:$0xf]
        %v1592 = vunpack.c.l.b16 %v1524
        %v1593 = vunpack.c.h.b16 %v1524
        %v1594 = vunpack.c.l.b16 %v1525
        %v1595 = vunpack.c.h.b16 %v1525
        %v1596 = vpack.c.b16 %v1592, %v1592
        %v1597 = vpack.c.b16 %v1593, %v1593
        %v1598 = vpack.c.b16 %v1594, %v1594
        %v1599 = vpack.c.b16 %v1595, %v1595
        %v1668 = vunpack.c.l.b16 %v1526
        %v1669 = vunpack.c.l.b16 %v1527
        %v1670 = vunpack.c.l.b16 %v1528
        %v1671 = vunpack.c.l.b16 %v1529
        %v1672 = vunpack.c.l.b16 %v1530
        %v1673 = vunpack.c.l.b16 %v1531
        %v1674 = vunpack.c.l.b16 %v1532
        %v1675 = vunpack.c.l.b16 %v1533
        %v1676 = vunpack.c.l.b16 %v1534
        %v1677 = vunpack.c.l.b16 %v1535
        %v1678 = vunpack.c.l.b16 %v1536
        %v1679 = vunpack.c.l.b16 %v1537
        %v1680 = vunpack.c.l.b16 %v1538
        %v1681 = vunpack.c.l.b16 %v1539
        %v1682 = vunpack.c.l.b16 %v1540
        %v1683 = vunpack.c.l.b16 %v1541
        %v1684 = vunpack.c.l.b16 %v1542
        %v1685 = vunpack.c.l.b16 %v1543
        %v1686 = vunpack.c.l.b16 %v1544
        %v1687 = vunpack.c.l.b16 %v1545
        %v1688 = vunpack.c.l.b16 %v1546
        %v1689 = vunpack.c.l.b16 %v1547
        %v1690 = vunpack.c.l.b16 %v1548
        %v1691 = vunpack.c.l.b16 %v1549
        %v1692 = vunpack.c.l.b16 %v1550
        %v1693 = vunpack.c.l.b16 %v1551
        %v1694 = vunpack.c.l.b16 %v1552
        %v1695 = vunpack.c.l.b16 %v1553
        %v1696 = vunpack.c.l.b16 %v1554
        %v1697 = vunpack.c.l.b16 %v1555
        %v1698 = vunpack.c.l.b16 %v1556
        %v1699 = vunpack.c.l.b16 %v1557
        %v1700 = vunpack.c.l.b16 %v1558
        %v1701 = vunpack.c.l.b16 %v1559
        %v1702 = vunpack.c.l.b16 %v1560
        %v1703 = vunpack.c.l.b16 %v1561
        %v1704 = vunpack.c.l.b16 %v1562
        %v1705 = vunpack.c.l.b16 %v1563
        %v1706 = vunpack.c.l.b16 %v1564
        %v1707 = vunpack.c.l.b16 %v1565
        %v1708 = vunpack.c.l.b16 %v1566
        %v1709 = vunpack.c.l.b16 %v1567
        %v1710 = vunpack.c.l.b16 %v1568
        %v1711 = vunpack.c.l.b16 %v1569
        %v1712 = vunpack.c.l.b16 %v1570
        %v1713 = vunpack.c.l.b16 %v1571
        %v1714 = vunpack.c.l.b16 %v1572
        %v1715 = vunpack.c.l.b16 %v1573
        %v1716 = vunpack.c.l.b16 %v1574
        %v1717 = vunpack.c.l.b16 %v1575
        %v1718 = vunpack.c.l.b16 %v1576
        %v1719 = vunpack.c.l.b16 %v1577
        %v1720 = vunpack.c.l.b16 %v1578
        %v1721 = vunpack.c.l.b16 %v1579
        %v1722 = vunpack.c.l.b16 %v1580
        %v1723 = vunpack.c.l.b16 %v1581
        %v1724 = vunpack.c.l.b16 %v1582
        %v1725 = vunpack.c.l.b16 %v1583
        %v1726 = vunpack.c.l.b16 %v1584
        %v1727 = vunpack.c.l.b16 %v1585
        %v1728 = vunpack.c.l.b16 %v1586
        %v1729 = vunpack.c.l.b16 %v1587
        %v1730 = vunpack.c.l.b16 %v1588
        %v1731 = vunpack.c.l.b16 %v1589
        %v1732 = vpack.c.b16 %v1669, %v1668
        %v1733 = vpack.c.b16 %v1671, %v1670
        %v1734 = vpack.c.b16 %v1673, %v1672
        %v1735 = vpack.c.b16 %v1675, %v1674
        %v1736 = vpack.c.b16 %v1677, %v1676
        %v1737 = vpack.c.b16 %v1679, %v1678
        %v1738 = vpack.c.b16 %v1681, %v1680
        %v1739 = vpack.c.b16 %v1683, %v1682
        %v1740 = vpack.c.b16 %v1685, %v1684
        %v1741 = vpack.c.b16 %v1687, %v1686
        %v1742 = vpack.c.b16 %v1689, %v1688
        %v1743 = vpack.c.b16 %v1691, %v1690
        %v1744 = vpack.c.b16 %v1693, %v1692
        %v1745 = vpack.c.b16 %v1695, %v1694
        %v1746 = vpack.c.b16 %v1697, %v1696
        %v1747 = vpack.c.b16 %v1699, %v1698
        %v1748 = vpack.c.b16 %v1701, %v1700
        %v1749 = vpack.c.b16 %v1703, %v1702
        %v1750 = vpack.c.b16 %v1705, %v1704
        %v1751 = vpack.c.b16 %v1707, %v1706
        %v1752 = vpack.c.b16 %v1709, %v1708
        %v1753 = vpack.c.b16 %v1711, %v1710
        %v1754 = vpack.c.b16 %v1713, %v1712
        %v1755 = vpack.c.b16 %v1715, %v1714
        %v1756 = vpack.c.b16 %v1717, %v1716
        %v1757 = vpack.c.b16 %v1719, %v1718
        %v1758 = vpack.c.b16 %v1721, %v1720
        %v1759 = vpack.c.b16 %v1723, %v1722
        %v1760 = vpack.c.b16 %v1725, %v1724
        %v1761 = vpack.c.b16 %v1727, %v1726
        %v1762 = vpack.c.b16 %v1729, %v1728
        %v1763 = vpack.c.b16 %v1731, %v1730
        %1796 = vmatpush.bf16.msra.mxu0 %v1739
        %1797 = vmatpush.bf16.msra.mxu0 %v1738
        %1798 = vmatpush.bf16.msra.mxu0 %v1737
        %1799 = vmatpush.bf16.msra.mxu0 %v1736
        %1800 = vmatpush.bf16.msra.mxu0 %v1735
        %1801 = vmatpush.bf16.msra.mxu0 %v1734
        %1802 = vmatpush.bf16.msra.mxu0 %v1733
        %1803 = vmatpush.bf16.msra.mxu0 %v1732
        %1804 = vmatmul.bf16.gmra.mxu0 %v1596
        %v1805 = vpop.f32.mrf.mxu0
        %v1806 = vadd.f32 0.0, %v1805
        %v1807 = vpop.f32.mrf.mxu0
        %1808 = vdwg.mxu0
        %1809 = vmatpush.bf16.msra.mxu0 %v1747
        %1810 = vmatpush.bf16.msra.mxu0 %v1746
        %1811 = vmatpush.bf16.msra.mxu0 %v1745
        %1812 = vmatpush.bf16.msra.mxu0 %v1744
        %1813 = vmatpush.bf16.msra.mxu0 %v1743
        %1814 = vmatpush.bf16.msra.mxu0 %v1742
        %1815 = vmatpush.bf16.msra.mxu0 %v1741
        %1816 = vmatpush.bf16.msra.mxu0 %v1740
        %1817 = vmatmul.bf16.gmra.mxu0 %v1597
        %v1818 = vpop.f32.mrf.mxu0
        %v1819 = vadd.f32 %v1806, %v1818
        %v1820 = vpop.f32.mrf.mxu0
        %1821 = vdwg.mxu0
        %1822 = vmatpush.bf16.msra.mxu0 %v1755
        %1823 = vmatpush.bf16.msra.mxu0 %v1754
        %1824 = vmatpush.bf16.msra.mxu0 %v1753
        %1825 = vmatpush.bf16.msra.mxu0 %v1752
        %1826 = vmatpush.bf16.msra.mxu0 %v1751
        %1827 = vmatpush.bf16.msra.mxu0 %v1750
        %1828 = vmatpush.bf16.msra.mxu0 %v1749
        %1829 = vmatpush.bf16.msra.mxu0 %v1748
        %1830 = vmatmul.bf16.gmra.mxu0 %v1598
        %v1831 = vpop.f32.mrf.mxu0
        %v1832 = vadd.f32 %v1819, %v1831
        %v1833 = vpop.f32.mrf.mxu0
        %1834 = vdwg.mxu0
        %1835 = vmatpush.bf16.msra.mxu0 %v1763
        %1836 = vmatpush.bf16.msra.mxu0 %v1762
        %1837 = vmatpush.bf16.msra.mxu0 %v1761
        %1838 = vmatpush.bf16.msra.mxu0 %v1760
        %1839 = vmatpush.bf16.msra.mxu0 %v1759
        %1840 = vmatpush.bf16.msra.mxu0 %v1758
        %1841 = vmatpush.bf16.msra.mxu0 %v1757
        %1842 = vmatpush.bf16.msra.mxu0 %v1756
        %1843 = vmatmul.bf16.gmra.mxu0 %v1599
        %v1844 = vpop.f32.mrf.mxu0
        %v1845 = vadd.f32 %v1832, %v1844
        %v1846 = vpop.f32.mrf.mxu0
        %1847 = vdwg.mxu0
        %1848 = vst [vmem:[%s621] sm:$0xff] %v1845
        %s1849 = sand.u32 %s349, 1
        %s1850 = scalar_lea.sflag [#allocation7], %s1849
        %s1851 = sand.u32 %s349, 1
        %s1852 = smul.addr %s1851, 8
        %s1853 = scalar_lea.vmem [#allocation17], %s1852
        // Predicated region
        $region105: #{tpu_custom_call.1} parent=71 // pred_check
          %p1854 = pneg %p359
        $region106: #{tpu_custom_call.1} parent=71 // pred_check_branch
          %1856 = sbr.rel (%p1854) target = $region108
        $region107: #{tpu_custom_call.1} parent=71 // pred_region
          %1858 = vsyncadd %s1850, 0
          %s1859 = sadd.s32 %s40, %s39
          %s1860 = smul.addr %s1859, 8
          %s1861 = scalar_lea.hbm %s13, %s1860
          %s1863 = sshll.u32 %s1853, 4
          %s1864 = int_to_ptr.vmem [resolvable:$true] %s1863
          %s1865 = sshll.u32 %s1861, 4
          %s1866 = int_to_ptr.hbm [resolvable:$true] %s1865
          %1868 = dma.vmem_to_hbm [thread:$0]  %s1864, 128, %s1866, %s1850
        $region108: #{tpu_custom_call.1} parent=71 // pred_fallthru
          _
      $region72: #{tpu_custom_call.1} parent=5 // pred_fallthru
        _
      %p1869 = scmp.le.s32.totalorder 2, %s30
      // Predicated region
      $region109: #{tpu_custom_call.1} parent=5 // pred_check
        %p1870 = pneg %p1869
      $region110: #{tpu_custom_call.1} parent=5 // pred_check_branch
        %1872 = sbr.rel (%p1870) target = $region112
      $region111: #{tpu_custom_call.1} parent=5 // pred_region
        %s1873 = ssub.s32 %s30, 2
        // Predicated region
        $region113: #{tpu_custom_call.1} parent=111 // pred_check
          %p1874 = pneg %p365
        $region114: #{tpu_custom_call.1} parent=111 // pred_check_branch
          %1876 = sbr.rel (%p1874) target = $region116
        $region115: #{tpu_custom_call.1} parent=111 // pred_region
          %s1877 = sand.u32 %s350, 1
          %s1878 = scalar_lea.sflag [#allocation7], %s1877
          %s1879 = sand.u32 %s350, 1
          %s1880 = smul.addr %s1879, 8
          %s1881 = scalar_lea.vmem [#allocation17], %s1880
          %1883 = dma.done %s1878, 128
        $region116: #{tpu_custom_call.1} parent=111 // pred_fallthru
          _
      $region112: #{tpu_custom_call.1} parent=5 // pred_fallthru
        _
    $region6: #{tpu_custom_call.1} parent=1 // loop_footer
      %s34 = sadd.s32 1, %s30
    $region7: #{tpu_custom_call.1} parent=1 // loop_footer_branch
      %29 = sbr.rel target = $region3
    $region8: #{tpu_custom_call.1} parent=1 // loop_exit
      _
    %1884 = vsyncpa [#allocation6], 1
    %s1885 = scalar_lea.sflag [#allocation6], 1
    %1886 = vsyncpa %s1885, 1
    %1887 = vsyncpa [#allocation9], 1
    %s1888 = scalar_lea.sflag [#allocation9], 1
    %1889 = vsyncpa %s1888, 1
    %1890 = vsyncpa [#allocation12], 1
    %1891 = vsyncpa [#allocation15], 1
    %1892 = vsyncpa [#allocation7], 1
    %s1893 = scalar_lea.sflag [#allocation7], 1
    %1894 = vsyncpa %s1893, 1

</llo_original>
